<compile_context>
chip_gen: v7x
topology: tpu7x:2x2x1
jax: 0.10.0
libtpu: 0.0.40
codegen_flags: <defaults>
</compile_context>

<pallas_src>
import numpy as np
import jax
import jax.numpy as jnp
from jax import lax
from jax.experimental import pallas as pl
from jax.experimental.pallas import tpu as pltpu

EPS = 1e-3  # matches nn.BatchNorm2d(eps=0.001)


# ---------------------------------------------------------------------------
# Pallas kernel: full Audio_Block forward for nb batch elements
# ---------------------------------------------------------------------------
def _audio_block_kernel(x_ref, w3_ref, mt3_ref, w5_ref, mt5_ref, ml_ref, bi_ref, o_ref):
    nb, H, WCi = x_ref.shape
    WCo = o_ref.shape[-1]
    cdt = x_ref.dtype                                   # MXU compute dtype (bfloat16)
    R = nb * H

    x = x_ref[...].reshape(R, WCi)                      # (nb*H, WCi), bf16
    xf = x.astype(jnp.float32)                          # 32-bit rows for sublane rotates
    # Row-within-image index, used to zero the vertical-conv boundary taps.
    hrow = lax.broadcasted_iota(jnp.int32, (nb, H, WCi), 1).reshape(R, WCi)

    def shifted(d):
        # view[h] = x[h + d] within each image, zero where h + d is outside [0, H).
        # Rolling the flattened (nb*H) rows is safe: rows whose source crosses an
        # image boundary are exactly the ones the mask zeroes.
        r = pltpu.roll(xf, shift=(-d) % R, axis=0).astype(cdt)
        valid = (hrow + d >= 0) if d < 0 else (hrow + d < H)
        return jnp.where(valid, r, jnp.zeros_like(r))

    def mm(a, w):
        return jnp.dot(a, w, preferred_element_type=jnp.float32)

    # Center tap (offset 0) feeds both branches straight from the unshifted bf16 input.
    acc5 = mm(x, w5_ref[2])
    acc3 = mm(x, w3_ref[1])
    # Off-center taps: build one shifted view at a time, accumulate in f32.
    for k5, d in ((0, -2), (1, -1), (3, 1), (4, 2)):
        xd = shifted(d)
        acc5 = acc5 + mm(xd, w5_ref[k5])
        if d in (-1, 1):                                # offsets +/-1 also feed the 3-tap conv
            acc3 = acc3 + mm(xd, w3_ref[1 + d])

    def bias_relu(y, i):
        # BN scale already folded into the weight columns; only bias + ReLU here (VPU).
        return jnp.maximum(y + bi_ref[i], 0.0)

    x3 = bias_relu(acc3, 0).astype(cdt)                 # m_3  + bn + relu
    x3 = bias_relu(mm(x3, mt3_ref[...]), 1)             # t_3  + bn + relu
    x5 = bias_relu(acc5, 2).astype(cdt)                 # m_5  + bn + relu
    x5 = bias_relu(mm(x5, mt5_ref[...]), 3)             # t_5  + bn + relu
    out = bias_relu(mm((x3 + x5).astype(cdt), ml_ref[...]), 4)   # last + bn + relu
    o_ref[...] = out.reshape(nb, H, WCo).astype(o_ref.dtype)


# ---------------------------------------------------------------------------
# Parameter init (matches the PyTorch module's parameter set, eval-mode BN stats)
# ---------------------------------------------------------------------------
def init_params(key, cin, cout):
    ks = jax.random.split(key, 10)

    def conv_w(k, shape):
        return (0.1 * jax.random.normal(k, shape)).astype(jnp.float32)

    def bn_p(k):
        k1, k2, k3, k4 = jax.random.split(k, 4)
        return dict(
            gamma=jax.random.uniform(k1, (cout,), minval=0.5, maxval=1.5).astype(jnp.float32),
            beta=(0.1 * jax.random.normal(k2, (cout,))).astype(jnp.float32),
            mean=(0.1 * jax.random.normal(k3, (cout,))).astype(jnp.float32),
            var=jax.random.uniform(k4, (cout,), minval=0.5, maxval=1.5).astype(jnp.float32),
        )

    return dict(
        m_3=conv_w(ks[0], (cout, cin, 3, 1)),  bn_m_3=bn_p(ks[1]),
        t_3=conv_w(ks[2], (cout, cout, 1, 3)), bn_t_3=bn_p(ks[3]),
        m_5=conv_w(ks[4], (cout, cin, 5, 1)),  bn_m_5=bn_p(ks[5]),
        t_5=conv_w(ks[6], (cout, cout, 1, 5)), bn_t_5=bn_p(ks[7]),
        last=conv_w(ks[8], (cout, cout, 1, 1)), bn_last=bn_p(ks[9]),
    )


# ---------------------------------------------------------------------------
# Host-side structured-weight construction (numpy)
# ---------------------------------------------------------------------------
def _h_tap_blocks(w_oihw, W):
    # Conv2d weight (Co, Ci, K, 1) -> (K, W*Ci, W*Co): per-tap block-diagonal
    # (over w) channel-mix matrices in the w-major / channel-minor layout.
    w = np.asarray(w_oihw, np.float32)
    Co, Ci, K, _ = w.shape
    eye = np.eye(W, dtype=np.float32)
    return np.stack([np.kron(eye, np.transpose(w[:, :, k, 0])) for k in range(K)], axis=0)


def _w_toeplitz_mat(w_oihw, W):
    # Conv2d weight (Co, Ci, 1, K) -> single block-Toeplitz matrix (W*Ci, W*Co)
    w = np.asarray(w_oihw, np.float32)
    Co, Ci, _, K = w.shape
    pad = K // 2
    wt = np.transpose(w[:, :, 0, :], (2, 1, 0))            # (K, Ci, Co)
    M = np.zeros((W * Ci, W * Co), np.float32)
    for wcol in range(W):
        for dw in range(K):
            v = wcol + dw - pad
            if 0 <= v < W:
                M[v * Ci:(v + 1) * Ci, wcol * Co:(wcol + 1) * Co] = wt[dw]
    return M


def _bn_fold(bn, W):
    g = np.asarray(bn['gamma'], np.float32)
    b = np.asarray(bn['beta'], np.float32)
    m = np.asarray(bn['mean'], np.float32)
    v = np.asarray(bn['var'], np.float32)
    scale = g / np.sqrt(v + EPS)
    bias = b - m * scale
    return np.tile(scale, W), np.tile(bias, W)   # per (w, channel) column, channel-minor


# ---------------------------------------------------------------------------
# Wrapper around pallas_call
# ---------------------------------------------------------------------------
def audio_block_pallas(x_nchw, params, batch_tile=16, compute_dtype=jnp.bfloat16):
    N, Cin, H, W = x_nchw.shape
    Cout = params['m_3'].shape[0]
    WCi, WCo = W * Cin, W * Cout

    # NCHW -> (N, H, W*Cin), w-major / channel-minor; bf16 for DMA + MXU.
    # TODO(synk): adjacent ops should adopt this flattened bf16 layout end-to-end so
    # these wrapper-side NCHW<->NHWC transposes (full HBM round trips) disappear.
    x2 = jnp.transpose(x_nchw, (0, 2, 3, 1)).reshape(N, H, WCi).astype(compute_dtype)

    # Fold eval-mode BN scale into the conv-weight output columns; bias stays f32.
    s_m3, b_m3 = _bn_fold(params['bn_m_3'], W)
    s_t3, b_t3 = _bn_fold(params['bn_t_3'], W)
    s_m5, b_m5 = _bn_fold(params['bn_m_5'], W)
    s_t5, b_t5 = _bn_fold(params['bn_t_5'], W)
    s_l,  b_l  = _bn_fold(params['bn_last'], W)

    # TODO(synk): if production Cout >= 128, drop the kron(eye(W), .) expansion
    # (channel-only lanes) to cut the ~W x MXU FLOP inflation noted in review.
    W3  = _h_tap_blocks(params['m_3'], W) * s_m3[None, None, :]     # (3, WCi, WCo)
    W5  = _h_tap_blocks(params['m_5'], W) * s_m5[None, None, :]     # (5, WCi, WCo)
    Mt3 = _w_toeplitz_mat(params['t_3'], W) * s_t3[None, :]         # (WCo, WCo)
    Mt5 = _w_toeplitz_mat(params['t_5'], W) * s_t5[None, :]         # (WCo, WCo)
    Ml  = (np.kron(np.eye(W, dtype=np.float32),
                   np.asarray(params['last'], np.float32)[:, :, 0, 0].T)
           * s_l[None, :])                                          # (WCo, WCo)

    W3, W5, Mt3, Mt5, Ml = [jnp.asarray(m, dtype=compute_dtype)
                            for m in (W3, W5, Mt3, Mt5, Ml)]
    bi = jnp.asarray(np.stack([b_m3, b_t3, b_m5, b_t5, b_l])[:, None, :],
                     dtype=jnp.float32)                             # (5, 1, WCo)

    # Batch tiling: >= 2 grid steps whenever N >= 2 (both v7x TensorCores get work
    # on the "parallel" grid axis); once N is large enough nb*H >= 256 fills the
    # v6e MXU M dimension and amortizes the ~0.35us per-step pipeline overhead.
    nb = max(1, min(batch_tile, -(-N // 2)))
    n_pad = (-N) % nb
    if n_pad:                                    # pad only the ragged tail block
        x2 = jnp.concatenate([x2, jnp.zeros((n_pad, H, WCi), x2.dtype)], axis=0)
    n_steps = (N + n_pad) // nb

    def const_spec(shape, buffered):
        if buffered:
            # Grid-invariant block: single-buffer it (it is only DMA'd once anyway),
            # halving its VMEM footprint — matters most on v7x's 64 MiB VMEM.
            return pl.BlockSpec(shape, lambda n: (0,) * len(shape),
                                pipeline_mode=pl.Buffered(1))
        return pl.BlockSpec(shape, lambda n: (0,) * len(shape))

    def build(buffered):
        return pl.pallas_call(
            _audio_block_kernel,
            out_shape=jax.ShapeDtypeStruct((n_steps * nb, H, WCo), compute_dtype),
            grid_spec=pltpu.PrefetchScalarGridSpec(
                num_scalar_prefetch=0,
                grid=(n_steps,),
                in_specs=[
                    pl.BlockSpec((nb, H, WCi), lambda n: (n, 0, 0)),
                    const_spec((3, WCi, WCo), buffered),
                    const_spec((WCo, WCo), buffered),
                    const_spec((5, WCi, WCo), buffered),
                    const_spec((WCo, WCo), buffered),
                    const_spec((WCo, WCo), buffered),
                    const_spec((5, 1, WCo), buffered),
                ],
                out_specs=pl.BlockSpec((nb, H, WCo), lambda n: (n, 0, 0)),
            ),
            compiler_params=pltpu.CompilerParams(
                dimension_semantics=("parallel",)),
        )

    args = (x2, W3, Mt3, W5, Mt5, Ml, bi)
    try:
        out2 = build(True)(*args)
    except Exception:
        # pipeline_mode / Buffered(1) not supported by this Pallas build: fall back
        # to default double-buffered specs (correctness identical, ~0.9 MiB more VMEM).
        out2 = build(False)(*args)

    out2 = out2[:N]
    # (N, H, W*Cout) bf16 -> NCHW f32 (transpose at bf16 width, widen at the end).
    return jnp.transpose(out2.reshape(N, H, W, Cout), (0, 3, 1, 2)).astype(jnp.float32)


# ---------------------------------------------------------------------------
# Pure-JAX reference (PyTorch semantics, eval-mode BatchNorm)
# ---------------------------------------------------------------------------
def audio_block_ref(x, p):
    def conv(t, w, ph, pw):
        return lax.conv_general_dilated(
            t, w, (1, 1), ((ph, ph), (pw, pw)),
            dimension_numbers=('NCHW', 'OIHW', 'NCHW'),
            precision=lax.Precision.HIGHEST)

    def bn(t, b):
        s = b['gamma'] / jnp.sqrt(b['var'] + EPS)
        return t * s[None, :, None, None] + (b['beta'] - b['mean'] * s)[None, :, None, None]

    relu = lambda t: jnp.maximum(t, 0.0)
    x3 = relu(bn(conv(x, p['m_3'], 1, 0), p['bn_m_3']))
    x3 = relu(bn(conv(x3, p['t_3'], 0, 1), p['bn_t_3']))
    x5 = relu(bn(conv(x, p['m_5'], 2, 0), p['bn_m_5']))
    x5 = relu(bn(conv(x5, p['t_5'], 0, 2), p['bn_t_5']))
    xs = x3 + x5
    return relu(bn(conv(xs, p['last'], 0, 0), p['bn_last']))


if __name__ == "__main__":
    key = jax.random.PRNGKey(0)
    kx, kp = jax.random.split(key)
    N, Cin, Cout, H, W = 2, 8, 16, 16, 16
    x = jax.random.normal(kx, (N, Cin, H, W), dtype=jnp.float32)
    params = init_params(kp, Cin, Cout)

    out = jax.block_until_ready(audio_block_pallas(x, params))
    ref = jax.block_until_ready(audio_block_ref(x, params))

    assert out.shape == (N, Cout, H, W)
    np.testing.assert_allclose(np.asarray(out), np.asarray(ref), rtol=2e-2, atol=2e-2)
    # TODO(synk): BatchNorm running-stat update (training mode / momentum) is not
    # modeled; kernel implements eval-mode BN folded into the conv weights.
    print("KERNEL_OK")
</pallas_src>

<mosaic_0001>
module attributes {stable_mosaic.version = 11 : i64} {
  func.func @_audio_block_kernel(%arg0: i32, %arg1: memref<1x16x128xbf16, #tpu.memory_space<vmem>>, %arg2: memref<3x128x256xbf16, #tpu.memory_space<vmem>>, %arg3: memref<256x256xbf16, #tpu.memory_space<vmem>>, %arg4: memref<5x128x256xbf16, #tpu.memory_space<vmem>>, %arg5: memref<256x256xbf16, #tpu.memory_space<vmem>>, %arg6: memref<256x256xbf16, #tpu.memory_space<vmem>>, %arg7: memref<5x1x256xf32, #tpu.memory_space<vmem>>, %arg8: memref<1x16x256xbf16, #tpu.memory_space<vmem>>) attributes {dimension_semantics = [#tpu.dimension_semantics<parallel>], iteration_bounds = array<i64: 2>, scalar_prefetch = 0 : i64, scratch_operands = 0 : i64, tpu.core_type = #tpu.core_type<tc>, window_params = [{transform_indices = @transform_0, window_bounds = array<i64: 1, 16, 128>}, {pipeline_mode = #tpu.pipeline_mode<synchronous>, transform_indices = @transform_1, window_bounds = array<i64: 3, 128, 256>}, {pipeline_mode = #tpu.pipeline_mode<synchronous>, transform_indices = @transform_2, window_bounds = array<i64: 256, 256>}, {pipeline_mode = #tpu.pipeline_mode<synchronous>, transform_indices = @transform_3, window_bounds = array<i64: 5, 128, 256>}, {pipeline_mode = #tpu.pipeline_mode<synchronous>, transform_indices = @transform_4, window_bounds = array<i64: 256, 256>}, {pipeline_mode = #tpu.pipeline_mode<synchronous>, transform_indices = @transform_5, window_bounds = array<i64: 256, 256>}, {pipeline_mode = #tpu.pipeline_mode<synchronous>, transform_indices = @transform_6, window_bounds = array<i64: 5, 1, 256>}, {transform_indices = @transform_7, window_bounds = array<i64: 1, 16, 256>}]} {
    %c0 = arith.constant 0 : index
    %c0_0 = arith.constant 0 : index
    %c0_1 = arith.constant 0 : index
    %0 = vector.load %arg1[%c0, %c0_0, %c0_1] : memref<1x16x128xbf16, #tpu.memory_space<vmem>>, vector<1x16x128xbf16>
    %1 = vector.shape_cast %0 : vector<1x16x128xbf16> to vector<16x128xbf16>
    %2 = arith.extf %1 : vector<16x128xbf16> to vector<16x128xf32>
    %3 = tpu.iota {dimensions = array<i32: 1>} : vector<1x16x128xi32>
    %4 = vector.shape_cast %3 : vector<1x16x128xi32> to vector<16x128xi32>
    %c2 = arith.constant 2 : index
    %c0_2 = arith.constant 0 : index
    %c0_3 = arith.constant 0 : index
    %5 = vector.load %arg4[%c2, %c0_2, %c0_3] : memref<5x128x256xbf16, #tpu.memory_space<vmem>>, vector<1x128x256xbf16>
    %6 = vector.shape_cast %5 : vector<1x128x256xbf16> to vector<128x256xbf16>
    %cst = arith.constant dense<0.000000e+00> : vector<16x256xf32>
    %7 = tpu.matmul %1, %6, %cst {dimension_numbers = #tpu.dot_dimension_numbers<[1], [0], [0], [1], [0, 0, 1, 1], [], []>} : vector<16x128xbf16>, vector<128x256xbf16>, vector<16x256xf32> -> vector<16x256xf32>
    %c1 = arith.constant 1 : index
    %c0_4 = arith.constant 0 : index
    %c0_5 = arith.constant 0 : index
    %8 = vector.load %arg2[%c1, %c0_4, %c0_5] : memref<3x128x256xbf16, #tpu.memory_space<vmem>>, vector<1x128x256xbf16>
    %9 = vector.shape_cast %8 : vector<1x128x256xbf16> to vector<128x256xbf16>
    %cst_6 = arith.constant dense<0.000000e+00> : vector<16x256xf32>
    %10 = tpu.matmul %1, %9, %cst_6 {dimension_numbers = #tpu.dot_dimension_numbers<[1], [0], [0], [1], [0, 0, 1, 1], [], []>} : vector<16x128xbf16>, vector<128x256xbf16>, vector<16x256xf32> -> vector<16x256xf32>
    %c2_i32 = arith.constant 2 : i32
    %11 = tpu.dynamic_rotate %2 by %c2_i32 dim 0 : vector<16x128xf32>, i32 -> vector<16x128xf32>
    %12 = arith.truncf %11 : vector<16x128xf32> to vector<16x128xbf16>
    %c-2_i32 = arith.constant -2 : i32
    %13 = vector.broadcast %c-2_i32 : i32 to vector<16x128xi32>
    %14 = arith.addi %4, %13 : vector<16x128xi32>
    %c0_i32 = arith.constant 0 : i32
    %15 = vector.broadcast %c0_i32 : i32 to vector<16x128xi32>
    %16 = arith.cmpi sge, %14, %15 : vector<16x128xi32>
    %cst_7 = arith.constant 0.000000e+00 : bf16
    %17 = vector.broadcast %cst_7 : bf16 to vector<16x128xbf16>
    %18 = arith.select %16, %12, %17 : vector<16x128xi1>, vector<16x128xbf16>
    %c0_8 = arith.constant 0 : index
    %c0_9 = arith.constant 0 : index
    %c0_10 = arith.constant 0 : index
    %19 = vector.load %arg4[%c0_8, %c0_9, %c0_10] : memref<5x128x256xbf16, #tpu.memory_space<vmem>>, vector<1x128x256xbf16>
    %20 = vector.shape_cast %19 : vector<1x128x256xbf16> to vector<128x256xbf16>
    %cst_11 = arith.constant dense<0.000000e+00> : vector<16x256xf32>
    %21 = tpu.matmul %18, %20, %cst_11 {dimension_numbers = #tpu.dot_dimension_numbers<[1], [0], [0], [1], [0, 0, 1, 1], [], []>} : vector<16x128xbf16>, vector<128x256xbf16>, vector<16x256xf32> -> vector<16x256xf32>
    %22 = arith.addf %7, %21 : vector<16x256xf32>
    %c1_i32 = arith.constant 1 : i32
    %23 = tpu.dynamic_rotate %2 by %c1_i32 dim 0 : vector<16x128xf32>, i32 -> vector<16x128xf32>
    %24 = arith.truncf %23 : vector<16x128xf32> to vector<16x128xbf16>
    %c-1_i32 = arith.constant -1 : i32
    %25 = vector.broadcast %c-1_i32 : i32 to vector<16x128xi32>
    %26 = arith.addi %4, %25 : vector<16x128xi32>
    %c0_i32_12 = arith.constant 0 : i32
    %27 = vector.broadcast %c0_i32_12 : i32 to vector<16x128xi32>
    %28 = arith.cmpi sge, %26, %27 : vector<16x128xi32>
    %cst_13 = arith.constant 0.000000e+00 : bf16
    %29 = vector.broadcast %cst_13 : bf16 to vector<16x128xbf16>
    %30 = arith.select %28, %24, %29 : vector<16x128xi1>, vector<16x128xbf16>
    %c1_14 = arith.constant 1 : index
    %c0_15 = arith.constant 0 : index
    %c0_16 = arith.constant 0 : index
    %31 = vector.load %arg4[%c1_14, %c0_15, %c0_16] : memref<5x128x256xbf16, #tpu.memory_space<vmem>>, vector<1x128x256xbf16>
    %32 = vector.shape_cast %31 : vector<1x128x256xbf16> to vector<128x256xbf16>
    %cst_17 = arith.constant dense<0.000000e+00> : vector<16x256xf32>
    %33 = tpu.matmul %30, %32, %cst_17 {dimension_numbers = #tpu.dot_dimension_numbers<[1], [0], [0], [1], [0, 0, 1, 1], [], []>} : vector<16x128xbf16>, vector<128x256xbf16>, vector<16x256xf32> -> vector<16x256xf32>
    %34 = arith.addf %22, %33 : vector<16x256xf32>
    %c0_18 = arith.constant 0 : index
    %c0_19 = arith.constant 0 : index
    %c0_20 = arith.constant 0 : index
    %35 = vector.load %arg2[%c0_18, %c0_19, %c0_20] : memref<3x128x256xbf16, #tpu.memory_space<vmem>>, vector<1x128x256xbf16>
    %36 = vector.shape_cast %35 : vector<1x128x256xbf16> to vector<128x256xbf16>
    %cst_21 = arith.constant dense<0.000000e+00> : vector<16x256xf32>
    %37 = tpu.matmul %30, %36, %cst_21 {dimension_numbers = #tpu.dot_dimension_numbers<[1], [0], [0], [1], [0, 0, 1, 1], [], []>} : vector<16x128xbf16>, vector<128x256xbf16>, vector<16x256xf32> -> vector<16x256xf32>
    %38 = arith.addf %10, %37 : vector<16x256xf32>
    %c15_i32 = arith.constant 15 : i32
    %39 = tpu.dynamic_rotate %2 by %c15_i32 dim 0 : vector<16x128xf32>, i32 -> vector<16x128xf32>
    %40 = arith.truncf %39 : vector<16x128xf32> to vector<16x128xbf16>
    %c1_i32_22 = arith.constant 1 : i32
    %41 = vector.broadcast %c1_i32_22 : i32 to vector<16x128xi32>
    %42 = arith.addi %4, %41 : vector<16x128xi32>
    %c16_i32 = arith.constant 16 : i32
    %43 = vector.broadcast %c16_i32 : i32 to vector<16x128xi32>
    %44 = arith.cmpi slt, %42, %43 : vector<16x128xi32>
    %cst_23 = arith.constant 0.000000e+00 : bf16
    %45 = vector.broadcast %cst_23 : bf16 to vector<16x128xbf16>
    %46 = arith.select %44, %40, %45 : vector<16x128xi1>, vector<16x128xbf16>
    %c3 = arith.constant 3 : index
    %c0_24 = arith.constant 0 : index
    %c0_25 = arith.constant 0 : index
    %47 = vector.load %arg4[%c3, %c0_24, %c0_25] : memref<5x128x256xbf16, #tpu.memory_space<vmem>>, vector<1x128x256xbf16>
    %48 = vector.shape_cast %47 : vector<1x128x256xbf16> to vector<128x256xbf16>
    %cst_26 = arith.constant dense<0.000000e+00> : vector<16x256xf32>
    %49 = tpu.matmul %46, %48, %cst_26 {dimension_numbers = #tpu.dot_dimension_numbers<[1], [0], [0], [1], [0, 0, 1, 1], [], []>} : vector<16x128xbf16>, vector<128x256xbf16>, vector<16x256xf32> -> vector<16x256xf32>
    %50 = arith.addf %34, %49 : vector<16x256xf32>
    %c2_27 = arith.constant 2 : index
    %c0_28 = arith.constant 0 : index
    %c0_29 = arith.constant 0 : index
    %51 = vector.load %arg2[%c2_27, %c0_28, %c0_29] : memref<3x128x256xbf16, #tpu.memory_space<vmem>>, vector<1x128x256xbf16>
    %52 = vector.shape_cast %51 : vector<1x128x256xbf16> to vector<128x256xbf16>
    %cst_30 = arith.constant dense<0.000000e+00> : vector<16x256xf32>
    %53 = tpu.matmul %46, %52, %cst_30 {dimension_numbers = #tpu.dot_dimension_numbers<[1], [0], [0], [1], [0, 0, 1, 1], [], []>} : vector<16x128xbf16>, vector<128x256xbf16>, vector<16x256xf32> -> vector<16x256xf32>
    %54 = arith.addf %38, %53 : vector<16x256xf32>
    %c14_i32 = arith.constant 14 : i32
    %55 = tpu.dynamic_rotate %2 by %c14_i32 dim 0 : vector<16x128xf32>, i32 -> vector<16x128xf32>
    %56 = arith.truncf %55 : vector<16x128xf32> to vector<16x128xbf16>
    %c2_i32_31 = arith.constant 2 : i32
    %57 = vector.broadcast %c2_i32_31 : i32 to vector<16x128xi32>
    %58 = arith.addi %4, %57 : vector<16x128xi32>
    %c16_i32_32 = arith.constant 16 : i32
    %59 = vector.broadcast %c16_i32_32 : i32 to vector<16x128xi32>
    %60 = arith.cmpi slt, %58, %59 : vector<16x128xi32>
    %cst_33 = arith.constant 0.000000e+00 : bf16
    %61 = vector.broadcast %cst_33 : bf16 to vector<16x128xbf16>
    %62 = arith.select %60, %56, %61 : vector<16x128xi1>, vector<16x128xbf16>
    %c4 = arith.constant 4 : index
    %c0_34 = arith.constant 0 : index
    %c0_35 = arith.constant 0 : index
    %63 = vector.load %arg4[%c4, %c0_34, %c0_35] : memref<5x128x256xbf16, #tpu.memory_space<vmem>>, vector<1x128x256xbf16>
    %64 = vector.shape_cast %63 : vector<1x128x256xbf16> to vector<128x256xbf16>
    %cst_36 = arith.constant dense<0.000000e+00> : vector<16x256xf32>
    %65 = tpu.matmul %62, %64, %cst_36 {dimension_numbers = #tpu.dot_dimension_numbers<[1], [0], [0], [1], [0, 0, 1, 1], [], []>} : vector<16x128xbf16>, vector<128x256xbf16>, vector<16x256xf32> -> vector<16x256xf32>
    %66 = arith.addf %50, %65 : vector<16x256xf32>
    %c0_37 = arith.constant 0 : index
    %c0_38 = arith.constant 0 : index
    %c0_39 = arith.constant 0 : index
    %67 = vector.load %arg7[%c0_37, %c0_38, %c0_39] : memref<5x1x256xf32, #tpu.memory_space<vmem>>, vector<1x1x256xf32>
    %68 = vector.shape_cast %67 : vector<1x1x256xf32> to vector<1x256xf32>
    %69 = vector.broadcast %68 : vector<1x256xf32> to vector<16x256xf32>
    %70 = arith.addf %54, %69 : vector<16x256xf32>
    %cst_40 = arith.constant 0.000000e+00 : f32
    %71 = vector.broadcast %cst_40 : f32 to vector<16x256xf32>
    %72 = arith.maximumf %70, %71 : vector<16x256xf32>
    %73 = arith.truncf %72 : vector<16x256xf32> to vector<16x256xbf16>
    %c0_41 = arith.constant 0 : index
    %c0_42 = arith.constant 0 : index
    %74 = vector.load %arg3[%c0_41, %c0_42] : memref<256x256xbf16, #tpu.memory_space<vmem>>, vector<256x256xbf16>
    %cst_43 = arith.constant dense<0.000000e+00> : vector<16x256xf32>
    %75 = tpu.matmul %73, %74, %cst_43 {dimension_numbers = #tpu.dot_dimension_numbers<[1], [0], [0], [1], [0, 0, 1, 1], [], []>} : vector<16x256xbf16>, vector<256x256xbf16>, vector<16x256xf32> -> vector<16x256xf32>
    %c1_44 = arith.constant 1 : index
    %c0_45 = arith.constant 0 : index
    %c0_46 = arith.constant 0 : index
    %76 = vector.load %arg7[%c1_44, %c0_45, %c0_46] : memref<5x1x256xf32, #tpu.memory_space<vmem>>, vector<1x1x256xf32>
    %77 = vector.shape_cast %76 : vector<1x1x256xf32> to vector<1x256xf32>
    %78 = vector.broadcast %77 : vector<1x256xf32> to vector<16x256xf32>
    %79 = arith.addf %75, %78 : vector<16x256xf32>
    %cst_47 = arith.constant 0.000000e+00 : f32
    %80 = vector.broadcast %cst_47 : f32 to vector<16x256xf32>
    %81 = arith.maximumf %79, %80 : vector<16x256xf32>
    %c2_48 = arith.constant 2 : index
    %c0_49 = arith.constant 0 : index
    %c0_50 = arith.constant 0 : index
    %82 = vector.load %arg7[%c2_48, %c0_49, %c0_50] : memref<5x1x256xf32, #tpu.memory_space<vmem>>, vector<1x1x256xf32>
    %83 = vector.shape_cast %82 : vector<1x1x256xf32> to vector<1x256xf32>
    %84 = vector.broadcast %83 : vector<1x256xf32> to vector<16x256xf32>
    %85 = arith.addf %66, %84 : vector<16x256xf32>
    %cst_51 = arith.constant 0.000000e+00 : f32
    %86 = vector.broadcast %cst_51 : f32 to vector<16x256xf32>
    %87 = arith.maximumf %85, %86 : vector<16x256xf32>
    %88 = arith.truncf %87 : vector<16x256xf32> to vector<16x256xbf16>
    %c0_52 = arith.constant 0 : index
    %c0_53 = arith.constant 0 : index
    %89 = vector.load %arg5[%c0_52, %c0_53] : memref<256x256xbf16, #tpu.memory_space<vmem>>, vector<256x256xbf16>
    %cst_54 = arith.constant dense<0.000000e+00> : vector<16x256xf32>
    %90 = tpu.matmul %88, %89, %cst_54 {dimension_numbers = #tpu.dot_dimension_numbers<[1], [0], [0], [1], [0, 0, 1, 1], [], []>} : vector<16x256xbf16>, vector<256x256xbf16>, vector<16x256xf32> -> vector<16x256xf32>
    %c3_55 = arith.constant 3 : index
    %c0_56 = arith.constant 0 : index
    %c0_57 = arith.constant 0 : index
    %91 = vector.load %arg7[%c3_55, %c0_56, %c0_57] : memref<5x1x256xf32, #tpu.memory_space<vmem>>, vector<1x1x256xf32>
    %92 = vector.shape_cast %91 : vector<1x1x256xf32> to vector<1x256xf32>
    %93 = vector.broadcast %92 : vector<1x256xf32> to vector<16x256xf32>
    %94 = arith.addf %90, %93 : vector<16x256xf32>
    %cst_58 = arith.constant 0.000000e+00 : f32
    %95 = vector.broadcast %cst_58 : f32 to vector<16x256xf32>
    %96 = arith.maximumf %94, %95 : vector<16x256xf32>
    %97 = arith.addf %81, %96 : vector<16x256xf32>
    %98 = arith.truncf %97 : vector<16x256xf32> to vector<16x256xbf16>
    %c0_59 = arith.constant 0 : index
    %c0_60 = arith.constant 0 : index
    %99 = vector.load %arg6[%c0_59, %c0_60] : memref<256x256xbf16, #tpu.memory_space<vmem>>, vector<256x256xbf16>
    %cst_61 = arith.constant dense<0.000000e+00> : vector<16x256xf32>
    %100 = tpu.matmul %98, %99, %cst_61 {dimension_numbers = #tpu.dot_dimension_numbers<[1], [0], [0], [1], [0, 0, 1, 1], [], []>} : vector<16x256xbf16>, vector<256x256xbf16>, vector<16x256xf32> -> vector<16x256xf32>
    %c4_62 = arith.constant 4 : index
    %c0_63 = arith.constant 0 : index
    %c0_64 = arith.constant 0 : index
    %101 = vector.load %arg7[%c4_62, %c0_63, %c0_64] : memref<5x1x256xf32, #tpu.memory_space<vmem>>, vector<1x1x256xf32>
    %102 = vector.shape_cast %101 : vector<1x1x256xf32> to vector<1x256xf32>
    %103 = vector.broadcast %102 : vector<1x256xf32> to vector<16x256xf32>
    %104 = arith.addf %100, %103 : vector<16x256xf32>
    %cst_65 = arith.constant 0.000000e+00 : f32
    %105 = vector.broadcast %cst_65 : f32 to vector<16x256xf32>
    %106 = arith.maximumf %104, %105 : vector<16x256xf32>
    %107 = vector.shape_cast %106 : vector<16x256xf32> to vector<1x16x256xf32>
    %108 = arith.truncf %107 : vector<1x16x256xf32> to vector<1x16x256xbf16>
    %c0_66 = arith.constant 0 : index
    %c0_67 = arith.constant 0 : index
    %c0_68 = arith.constant 0 : index
    %109 = vector.load %arg8[%c0_66, %c0_67, %c0_68] : memref<1x16x256xbf16, #tpu.memory_space<vmem>>, vector<1x16x256xbf16>
    tpu.vector_store %arg8[%c0_66, %c0_67, %c0_68], %108 {strides = array<i32>} : memref<1x16x256xbf16, #tpu.memory_space<vmem>>, vector<1x16x256xbf16>,
    return
  }
  func.func @transform_0(%arg0: i32) -> (i32, i32, i32) {
    %c0_i32 = arith.constant 0 : i32
    %c0_i32_0 = arith.constant 0 : i32
    %c0_i32_1 = arith.constant 0 : i32
    return %arg0, %c0_i32, %c0_i32_0 : i32, i32, i32
  }
  func.func @transform_1(%arg0: i32) -> (i32, i32, i32) {
    %c0_i32 = arith.constant 0 : i32
    %c0_i32_0 = arith.constant 0 : i32
    %c0_i32_1 = arith.constant 0 : i32
    %c0_i32_2 = arith.constant 0 : i32
    return %c0_i32, %c0_i32_0, %c0_i32_1 : i32, i32, i32
  }
  func.func @transform_2(%arg0: i32) -> (i32, i32) {
    %c0_i32 = arith.constant 0 : i32
    %c0_i32_0 = arith.constant 0 : i32
    %c0_i32_1 = arith.constant 0 : i32
    return %c0_i32, %c0_i32_0 : i32, i32
  }
  func.func @transform_3(%arg0: i32) -> (i32, i32, i32) {
    %c0_i32 = arith.constant 0 : i32
    %c0_i32_0 = arith.constant 0 : i32
    %c0_i32_1 = arith.constant 0 : i32
    %c0_i32_2 = arith.constant 0 : i32
    return %c0_i32, %c0_i32_0, %c0_i32_1 : i32, i32, i32
  }
  func.func @transform_4(%arg0: i32) -> (i32, i32) {
    %c0_i32 = arith.constant 0 : i32
    %c0_i32_0 = arith.constant 0 : i32
    %c0_i32_1 = arith.constant 0 : i32
    return %c0_i32, %c0_i32_0 : i32, i32
  }
  func.func @transform_5(%arg0: i32) -> (i32, i32) {
    %c0_i32 = arith.constant 0 : i32
    %c0_i32_0 = arith.constant 0 : i32
    %c0_i32_1 = arith.constant 0 : i32
    return %c0_i32, %c0_i32_0 : i32, i32
  }
  func.func @transform_6(%arg0: i32) -> (i32, i32, i32) {
    %c0_i32 = arith.constant 0 : i32
    %c0_i32_0 = arith.constant 0 : i32
    %c0_i32_1 = arith.constant 0 : i32
    %c0_i32_2 = arith.constant 0 : i32
    return %c0_i32, %c0_i32_0, %c0_i32_1 : i32, i32, i32
  }
  func.func @transform_7(%arg0: i32) -> (i32, i32, i32) {
    %c0_i32 = arith.constant 0 : i32
    %c0_i32_0 = arith.constant 0 : i32
    %c0_i32_1 = arith.constant 0 : i32
    return %arg0, %c0_i32, %c0_i32_0 : i32, i32, i32
  }
}

module attributes {stable_mosaic.version = 11 : i64} {
  func.func @_audio_block_kernel(%arg0: i32, %arg1: memref<1x16x128xbf16, #tpu.memory_space<vmem>>, %arg2: memref<3x128x256xbf16, #tpu.memory_space<vmem>>, %arg3: memref<256x256xbf16, #tpu.memory_space<vmem>>, %arg4: memref<5x128x256xbf16, #tpu.memory_space<vmem>>, %arg5: memref<256x256xbf16, #tpu.memory_space<vmem>>, %arg6: memref<256x256xbf16, #tpu.memory_space<vmem>>, %arg7: memref<5x1x256xf32, #tpu.memory_space<vmem>>, %arg8: memref<1x16x256xbf16, #tpu.memory_space<vmem>>) attributes {dimension_semantics = [#tpu.dimension_semantics<parallel>], iteration_bounds = array<i64: 2>, scalar_prefetch = 0 : i64, scratch_operands = 0 : i64, tpu.core_type = #tpu.core_type<tc>, window_params = [{transform_indices = @transform_0, window_bounds = array<i64: 1, 16, 128>}, {pipeline_mode = #tpu.pipeline_mode<synchronous>, transform_indices = @transform_1, window_bounds = array<i64: 3, 128, 256>}, {pipeline_mode = #tpu.pipeline_mode<synchronous>, transform_indices = @transform_2, window_bounds = array<i64: 256, 256>}, {pipeline_mode = #tpu.pipeline_mode<synchronous>, transform_indices = @transform_3, window_bounds = array<i64: 5, 128, 256>}, {pipeline_mode = #tpu.pipeline_mode<synchronous>, transform_indices = @transform_4, window_bounds = array<i64: 256, 256>}, {pipeline_mode = #tpu.pipeline_mode<synchronous>, transform_indices = @transform_5, window_bounds = array<i64: 256, 256>}, {pipeline_mode = #tpu.pipeline_mode<synchronous>, transform_indices = @transform_6, window_bounds = array<i64: 5, 1, 256>}, {transform_indices = @transform_7, window_bounds = array<i64: 1, 16, 256>}]} {
    %c0 = arith.constant 0 : index
    %c0_0 = arith.constant 0 : index
    %c0_1 = arith.constant 0 : index
    %0 = vector.load %arg1[%c0, %c0_0, %c0_1] : memref<1x16x128xbf16, #tpu.memory_space<vmem>>, vector<1x16x128xbf16>
    %1 = vector.shape_cast %0 : vector<1x16x128xbf16> to vector<16x128xbf16>
    %2 = arith.extf %1 : vector<16x128xbf16> to vector<16x128xf32>
    %3 = tpu.iota {dimensions = array<i32: 1>} : vector<1x16x128xi32>
    %4 = vector.shape_cast %3 : vector<1x16x128xi32> to vector<16x128xi32>
    %c2 = arith.constant 2 : index
    %c0_2 = arith.constant 0 : index
    %c0_3 = arith.constant 0 : index
    %5 = vector.load %arg4[%c2, %c0_2, %c0_3] : memref<5x128x256xbf16, #tpu.memory_space<vmem>>, vector<1x128x256xbf16>
    %6 = vector.shape_cast %5 : vector<1x128x256xbf16> to vector<128x256xbf16>
    %cst = arith.constant dense<0.000000e+00> : vector<16x256xf32>
    %7 = tpu.matmul %1, %6, %cst {dimension_numbers = #tpu.dot_dimension_numbers<[1], [0], [0], [1], [0, 0, 1, 1], [], []>} : vector<16x128xbf16>, vector<128x256xbf16>, vector<16x256xf32> -> vector<16x256xf32>
    %c1 = arith.constant 1 : index
    %c0_4 = arith.constant 0 : index
    %c0_5 = arith.constant 0 : index
    %8 = vector.load %arg2[%c1, %c0_4, %c0_5] : memref<3x128x256xbf16, #tpu.memory_space<vmem>>, vector<1x128x256xbf16>
    %9 = vector.shape_cast %8 : vector<1x128x256xbf16> to vector<128x256xbf16>
    %cst_6 = arith.constant dense<0.000000e+00> : vector<16x256xf32>
    %10 = tpu.matmul %1, %9, %cst_6 {dimension_numbers = #tpu.dot_dimension_numbers<[1], [0], [0], [1], [0, 0, 1, 1], [], []>} : vector<16x128xbf16>, vector<128x256xbf16>, vector<16x256xf32> -> vector<16x256xf32>
    %c2_i32 = arith.constant 2 : i32
    %11 = tpu.dynamic_rotate %2 by %c2_i32 dim 0 : vector<16x128xf32>, i32 -> vector<16x128xf32>
    %12 = arith.truncf %11 : vector<16x128xf32> to vector<16x128xbf16>
    %c-2_i32 = arith.constant -2 : i32
    %13 = vector.broadcast %c-2_i32 : i32 to vector<16x128xi32>
    %14 = arith.addi %4, %13 : vector<16x128xi32>
    %c0_i32 = arith.constant 0 : i32
    %15 = vector.broadcast %c0_i32 : i32 to vector<16x128xi32>
    %16 = arith.cmpi sge, %14, %15 : vector<16x128xi32>
    %cst_7 = arith.constant 0.000000e+00 : bf16
    %17 = vector.broadcast %cst_7 : bf16 to vector<16x128xbf16>
    %18 = arith.select %16, %12, %17 : vector<16x128xi1>, vector<16x128xbf16>
    %c0_8 = arith.constant 0 : index
    %c0_9 = arith.constant 0 : index
    %c0_10 = arith.constant 0 : index
    %19 = vector.load %arg4[%c0_8, %c0_9, %c0_10] : memref<5x128x256xbf16, #tpu.memory_space<vmem>>, vector<1x128x256xbf16>
    %20 = vector.shape_cast %19 : vector<1x128x256xbf16> to vector<128x256xbf16>
    %cst_11 = arith.constant dense<0.000000e+00> : vector<16x256xf32>
    %21 = tpu.matmul %18, %20, %cst_11 {dimension_numbers = #tpu.dot_dimension_numbers<[1], [0], [0], [1], [0, 0, 1, 1], [], []>} : vector<16x128xbf16>, vector<128x256xbf16>, vector<16x256xf32> -> vector<16x256xf32>
    %22 = arith.addf %7, %21 : vector<16x256xf32>
    %c1_i32 = arith.constant 1 : i32
    %23 = tpu.dynamic_rotate %2 by %c1_i32 dim 0 : vector<16x128xf32>, i32 -> vector<16x128xf32>
    %24 = arith.truncf %23 : vector<16x128xf32> to vector<16x128xbf16>
    %c-1_i32 = arith.constant -1 : i32
    %25 = vector.broadcast %c-1_i32 : i32 to vector<16x128xi32>
    %26 = arith.addi %4, %25 : vector<16x128xi32>
    %c0_i32_12 = arith.constant 0 : i32
    %27 = vector.broadcast %c0_i32_12 : i32 to vector<16x128xi32>
    %28 = arith.cmpi sge, %26, %27 : vector<16x128xi32>
    %cst_13 = arith.constant 0.000000e+00 : bf16
    %29 = vector.broadcast %cst_13 : bf16 to vector<16x128xbf16>
    %30 = arith.select %28, %24, %29 : vector<16x128xi1>, vector<16x128xbf16>
    %c1_14 = arith.constant 1 : index
    %c0_15 = arith.constant 0 : index
    %c0_16 = arith.constant 0 : index
    %31 = vector.load %arg4[%c1_14, %c0_15, %c0_16] : memref<5x128x256xbf16, #tpu.memory_space<vmem>>, vector<1x128x256xbf16>
    %32 = vector.shape_cast %31 : vector<1x128x256xbf16> to vector<128x256xbf16>
    %cst_17 = arith.constant dense<0.000000e+00> : vector<16x256xf32>
    %33 = tpu.matmul %30, %32, %cst_17 {dimension_numbers = #tpu.dot_dimension_numbers<[1], [0], [0], [1], [0, 0, 1, 1], [], []>} : vector<16x128xbf16>, vector<128x256xbf16>, vector<16x256xf32> -> vector<16x256xf32>
    %34 = arith.addf %22, %33 : vector<16x256xf32>
    %c0_18 = arith.constant 0 : index
    %c0_19 = arith.constant 0 : index
    %c0_20 = arith.constant 0 : index
    %35 = vector.load %arg2[%c0_18, %c0_19, %c0_20] : memref<3x128x256xbf16, #tpu.memory_space<vmem>>, vector<1x128x256xbf16>
    %36 = vector.shape_cast %35 : vector<1x128x256xbf16> to vector<128x256xbf16>
    %cst_21 = arith.constant dense<0.000000e+00> : vector<16x256xf32>
    %37 = tpu.matmul %30, %36, %cst_21 {dimension_numbers = #tpu.dot_dimension_numbers<[1], [0], [0], [1], [0, 0, 1, 1], [], []>} : vector<16x128xbf16>, vector<128x256xbf16>, vector<16x256xf32> -> vector<16x256xf32>
    %38 = arith.addf %10, %37 : vector<16x256xf32>
    %c15_i32 = arith.constant 15 : i32
    %39 = tpu.dynamic_rotate %2 by %c15_i32 dim 0 : vector<16x128xf32>, i32 -> vector<16x128xf32>
    %40 = arith.truncf %39 : vector<16x128xf32> to vector<16x128xbf16>
    %c1_i32_22 = arith.constant 1 : i32
    %41 = vector.broadcast %c1_i32_22 : i32 to vector<16x128xi32>
    %42 = arith.addi %4, %41 : vector<16x128xi32>
    %c16_i32 = arith.constant 16 : i32
    %43 = vector.broadcast %c16_i32 : i32 to vector<16x128xi32>
    %44 = arith.cmpi slt, %42, %43 : vector<16x128xi32>
    %cst_23 = arith.constant 0.000000e+00 : bf16
    %45 = vector.broadcast %cst_23 : bf16 to vector<16x128xbf16>
    %46 = arith.select %44, %40, %45 : vector<16x128xi1>, vector<16x128xbf16>
    %c3 = arith.constant 3 : index
    %c0_24 = arith.constant 0 : index
    %c0_25 = arith.constant 0 : index
    %47 = vector.load %arg4[%c3, %c0_24, %c0_25] : memref<5x128x256xbf16, #tpu.memory_space<vmem>>, vector<1x128x256xbf16>
    %48 = vector.shape_cast %47 : vector<1x128x256xbf16> to vector<128x256xbf16>
    %cst_26 = arith.constant dense<0.000000e+00> : vector<16x256xf32>
    %49 = tpu.matmul %46, %48, %cst_26 {dimension_numbers = #tpu.dot_dimension_numbers<[1], [0], [0], [1], [0, 0, 1, 1], [], []>} : vector<16x128xbf16>, vector<128x256xbf16>, vector<16x256xf32> -> vector<16x256xf32>
    %50 = arith.addf %34, %49 : vector<16x256xf32>
    %c2_27 = arith.constant 2 : index
    %c0_28 = arith.constant 0 : index
    %c0_29 = arith.constant 0 : index
    %51 = vector.load %arg2[%c2_27, %c0_28, %c0_29] : memref<3x128x256xbf16, #tpu.memory_space<vmem>>, vector<1x128x256xbf16>
    %52 = vector.shape_cast %51 : vector<1x128x256xbf16> to vector<128x256xbf16>
    %cst_30 = arith.constant dense<0.000000e+00> : vector<16x256xf32>
    %53 = tpu.matmul %46, %52, %cst_30 {dimension_numbers = #tpu.dot_dimension_numbers<[1], [0], [0], [1], [0, 0, 1, 1], [], []>} : vector<16x128xbf16>, vector<128x256xbf16>, vector<16x256xf32> -> vector<16x256xf32>
    %54 = arith.addf %38, %53 : vector<16x256xf32>
    %c14_i32 = arith.constant 14 : i32
    %55 = tpu.dynamic_rotate %2 by %c14_i32 dim 0 : vector<16x128xf32>, i32 -> vector<16x128xf32>
    %56 = arith.truncf %55 : vector<16x128xf32> to vector<16x128xbf16>
    %c2_i32_31 = arith.constant 2 : i32
    %57 = vector.broadcast %c2_i32_31 : i32 to vector<16x128xi32>
    %58 = arith.addi %4, %57 : vector<16x128xi32>
    %c16_i32_32 = arith.constant 16 : i32
    %59 = vector.broadcast %c16_i32_32 : i32 to vector<16x128xi32>
    %60 = arith.cmpi slt, %58, %59 : vector<16x128xi32>
    %cst_33 = arith.constant 0.000000e+00 : bf16
    %61 = vector.broadcast %cst_33 : bf16 to vector<16x128xbf16>
    %62 = arith.select %60, %56, %61 : vector<16x128xi1>, vector<16x128xbf16>
    %c4 = arith.constant 4 : index
    %c0_34 = arith.constant 0 : index
    %c0_35 = arith.constant 0 : index
    %63 = vector.load %arg4[%c4, %c0_34, %c0_35] : memref<5x128x256xbf16, #tpu.memory_space<vmem>>, vector<1x128x256xbf16>
    %64 = vector.shape_cast %63 : vector<1x128x256xbf16> to vector<128x256xbf16>
    %cst_36 = arith.constant dense<0.000000e+00> : vector<16x256xf32>
    %65 = tpu.matmul %62, %64, %cst_36 {dimension_numbers = #tpu.dot_dimension_numbers<[1], [0], [0], [1], [0, 0, 1, 1], [], []>} : vector<16x128xbf16>, vector<128x256xbf16>, vector<16x256xf32> -> vector<16x256xf32>
    %66 = arith.addf %50, %65 : vector<16x256xf32>
    %c0_37 = arith.constant 0 : index
    %c0_38 = arith.constant 0 : index
    %c0_39 = arith.constant 0 : index
    %67 = vector.load %arg7[%c0_37, %c0_38, %c0_39] : memref<5x1x256xf32, #tpu.memory_space<vmem>>, vector<1x1x256xf32>
    %68 = vector.shape_cast %67 : vector<1x1x256xf32> to vector<1x256xf32>
    %69 = vector.broadcast %68 : vector<1x256xf32> to vector<16x256xf32>
    %70 = arith.addf %54, %69 : vector<16x256xf32>
    %cst_40 = arith.constant 0.000000e+00 : f32
    %71 = vector.broadcast %cst_40 : f32 to vector<16x256xf32>
    %72 = arith.maximumf %70, %71 : vector<16x256xf32>
    %73 = arith.truncf %72 : vector<16x256xf32> to vector<16x256xbf16>
    %c0_41 = arith.constant 0 : index
    %c0_42 = arith.constant 0 : index
    %74 = vector.load %arg3[%c0_41, %c0_42] : memref<256x256xbf16, #tpu.memory_space<vmem>>, vector<256x256xbf16>
    %cst_43 = arith.constant dense<0.000000e+00> : vector<16x256xf32>
    %75 = tpu.matmul %73, %74, %cst_43 {dimension_numbers = #tpu.dot_dimension_numbers<[1], [0], [0], [1], [0, 0, 1, 1], [], []>} : vector<16x256xbf16>, vector<256x256xbf16>, vector<16x256xf32> -> vector<16x256xf32>
    %c1_44 = arith.constant 1 : index
    %c0_45 = arith.constant 0 : index
    %c0_46 = arith.constant 0 : index
    %76 = vector.load %arg7[%c1_44, %c0_45, %c0_46] : memref<5x1x256xf32, #tpu.memory_space<vmem>>, vector<1x1x256xf32>
    %77 = vector.shape_cast %76 : vector<1x1x256xf32> to vector<1x256xf32>
    %78 = vector.broadcast %77 : vector<1x256xf32> to vector<16x256xf32>
    %79 = arith.addf %75, %78 : vector<16x256xf32>
    %cst_47 = arith.constant 0.000000e+00 : f32
    %80 = vector.broadcast %cst_47 : f32 to vector<16x256xf32>
    %81 = arith.maximumf %79, %80 : vector<16x256xf32>
    %c2_48 = arith.constant 2 : index
    %c0_49 = arith.constant 0 : index
    %c0_50 = arith.constant 0 : index
    %82 = vector.load %arg7[%c2_48, %c0_49, %c0_50] : memref<5x1x256xf32, #tpu.memory_space<vmem>>, vector<1x1x256xf32>
    %83 = vector.shape_cast %82 : vector<1x1x256xf32> to vector<1x256xf32>
    %84 = vector.broadcast %83 : vector<1x256xf32> to vector<16x256xf32>
    %85 = arith.addf %66, %84 : vector<16x256xf32>
    %cst_51 = arith.constant 0.000000e+00 : f32
    %86 = vector.broadcast %cst_51 : f32 to vector<16x256xf32>
    %87 = arith.maximumf %85, %86 : vector<16x256xf32>
    %88 = arith.truncf %87 : vector<16x256xf32> to vector<16x256xbf16>
    %c0_52 = arith.constant 0 : index
    %c0_53 = arith.constant 0 : index
    %89 = vector.load %arg5[%c0_52, %c0_53] : memref<256x256xbf16, #tpu.memory_space<vmem>>, vector<256x256xbf16>
    %cst_54 = arith.constant dense<0.000000e+00> : vector<16x256xf32>
    %90 = tpu.matmul %88, %89, %cst_54 {dimension_numbers = #tpu.dot_dimension_numbers<[1], [0], [0], [1], [0, 0, 1, 1], [], []>} : vector<16x256xbf16>, vector<256x256xbf16>, vector<16x256xf32> -> vector<16x256xf32>
    %c3_55 = arith.constant 3 : index
    %c0_56 = arith.constant 0 : index
    %c0_57 = arith.constant 0 : index
    %91 = vector.load %arg7[%c3_55, %c0_56, %c0_57] : memref<5x1x256xf32, #tpu.memory_space<vmem>>, vector<1x1x256xf32>
    %92 = vector.shape_cast %91 : vector<1x1x256xf32> to vector<1x256xf32>
    %93 = vector.broadcast %92 : vector<1x256xf32> to vector<16x256xf32>
    %94 = arith.addf %90, %93 : vector<16x256xf32>
    %cst_58 = arith.constant 0.000000e+00 : f32
    %95 = vector.broadcast %cst_58 : f32 to vector<16x256xf32>
    %96 = arith.maximumf %94, %95 : vector<16x256xf32>
    %97 = arith.addf %81, %96 : vector<16x256xf32>
    %98 = arith.truncf %97 : vector<16x256xf32> to vector<16x256xbf16>
    %c0_59 = arith.constant 0 : index
    %c0_60 = arith.constant 0 : index
    %99 = vector.load %arg6[%c0_59, %c0_60] : memref<256x256xbf16, #tpu.memory_space<vmem>>, vector<256x256xbf16>
    %cst_61 = arith.constant dense<0.000000e+00> : vector<16x256xf32>
    %100 = tpu.matmul %98, %99, %cst_61 {dimension_numbers = #tpu.dot_dimension_numbers<[1], [0], [0], [1], [0, 0, 1, 1], [], []>} : vector<16x256xbf16>, vector<256x256xbf16>, vector<16x256xf32> -> vector<16x256xf32>
    %c4_62 = arith.constant 4 : index
    %c0_63 = arith.constant 0 : index
    %c0_64 = arith.constant 0 : index
    %101 = vector.load %arg7[%c4_62, %c0_63, %c0_64] : memref<5x1x256xf32, #tpu.memory_space<vmem>>, vector<1x1x256xf32>
    %102 = vector.shape_cast %101 : vector<1x1x256xf32> to vector<1x256xf32>
    %103 = vector.broadcast %102 : vector<1x256xf32> to vector<16x256xf32>
    %104 = arith.addf %100, %103 : vector<16x256xf32>
    %cst_65 = arith.constant 0.000000e+00 : f32
    %105 = vector.broadcast %cst_65 : f32 to vector<16x256xf32>
    %106 = arith.maximumf %104, %105 : vector<16x256xf32>
    %107 = vector.shape_cast %106 : vector<16x256xf32> to vector<1x16x256xf32>
    %108 = arith.truncf %107 : vector<1x16x256xf32> to vector<1x16x256xbf16>
    %c0_66 = arith.constant 0 : index
    %c0_67 = arith.constant 0 : index
    %c0_68 = arith.constant 0 : index
    %109 = vector.load %arg8[%c0_66, %c0_67, %c0_68] : memref<1x16x256xbf16, #tpu.memory_space<vmem>>, vector<1x16x256xbf16>
    tpu.vector_store %arg8[%c0_66, %c0_67, %c0_68], %108 {strides = array<i32>} : memref<1x16x256xbf16, #tpu.memory_space<vmem>>, vector<1x16x256xbf16>,
    return
  }
  func.func @transform_0(%arg0: i32) -> (i32, i32, i32) {
    %c0_i32 = arith.constant 0 : i32
    %c0_i32_0 = arith.constant 0 : i32
    %c0_i32_1 = arith.constant 0 : i32
    return %arg0, %c0_i32, %c0_i32_0 : i32, i32, i32
  }
  func.func @transform_1(%arg0: i32) -> (i32, i32, i32) {
    %c0_i32 = arith.constant 0 : i32
    %c0_i32_0 = arith.constant 0 : i32
    %c0_i32_1 = arith.constant 0 : i32
    %c0_i32_2 = arith.constant 0 : i32
    return %c0_i32, %c0_i32_0, %c0_i32_1 : i32, i32, i32
  }
  func.func @transform_2(%arg0: i32) -> (i32, i32) {
    %c0_i32 = arith.constant 0 : i32
    %c0_i32_0 = arith.constant 0 : i32
    %c0_i32_1 = arith.constant 0 : i32
    return %c0_i32, %c0_i32_0 : i32, i32
  }
  func.func @transform_3(%arg0: i32) -> (i32, i32, i32) {
    %c0_i32 = arith.constant 0 : i32
    %c0_i32_0 = arith.constant 0 : i32
    %c0_i32_1 = arith.constant 0 : i32
    %c0_i32_2 = arith.constant 0 : i32
    return %c0_i32, %c0_i32_0, %c0_i32_1 : i32, i32, i32
  }
  func.func @transform_4(%arg0: i32) -> (i32, i32) {
    %c0_i32 = arith.constant 0 : i32
    %c0_i32_0 = arith.constant 0 : i32
    %c0_i32_1 = arith.constant 0 : i32
    return %c0_i32, %c0_i32_0 : i32, i32
  }
  func.func @transform_5(%arg0: i32) -> (i32, i32) {
    %c0_i32 = arith.constant 0 : i32
    %c0_i32_0 = arith.constant 0 : i32
    %c0_i32_1 = arith.constant 0 : i32
    return %c0_i32, %c0_i32_0 : i32, i32
  }
  func.func @transform_6(%arg0: i32) -> (i32, i32, i32) {
    %c0_i32 = arith.constant 0 : i32
    %c0_i32_0 = arith.constant 0 : i32
    %c0_i32_1 = arith.constant 0 : i32
    %c0_i32_2 = arith.constant 0 : i32
    return %c0_i32, %c0_i32_0, %c0_i32_1 : i32, i32, i32
  }
  func.func @transform_7(%arg0: i32) -> (i32, i32, i32) {
    %c0_i32 = arith.constant 0 : i32
    %c0_i32_0 = arith.constant 0 : i32
    %c0_i32_1 = arith.constant 0 : i32
    return %arg0, %c0_i32, %c0_i32_0 : i32, i32, i32
  }
}

</mosaic_0001>

<llo_original>
// kernel: tpu_custom_call.1
$region0: #{tpu_custom_call.1}
  #allocation0 [shape = 'u32[]', space=smem, size = 0x4, offset = 0x4, fixed_abs, tag = 'smem constant byte address 0x4 - core index']
  #allocation1 [shape = 'u32[144,128]{1,0:T(1,128)}', space=vmem, size = 0x12000, scoped, tag = 'internal scratch']
  %s0 = inlined_call_operand.hbm [shape: bf16[2,16,128], index: 0, kind: input, shape index: {}]
  %s1 = inlined_call_operand.hbm [shape: bf16[3,128,256], index: 1, kind: input, shape index: {}]
  %s2 = inlined_call_operand.hbm [shape: bf16[256,256], index: 2, kind: input, shape index: {}]
  %s3 = inlined_call_operand.hbm [shape: bf16[5,128,256], index: 3, kind: input, shape index: {}]
  %s4 = inlined_call_operand.hbm [shape: bf16[256,256], index: 4, kind: input, shape index: {}]
  %s5 = inlined_call_operand.hbm [shape: bf16[256,256], index: 5, kind: input, shape index: {}]
  %s6 = inlined_call_operand.vmem [shape: f32[5,1,256], index: 6, kind: input, shape index: {}]
  %s7 = inlined_call_operand.hbm [shape: bf16[2,16,256], index: 7, kind: output, shape index: {}]
  %s8 = sld [smem:[#allocation0]]
  $region85: #{tpu_custom_call.1} parent=0
    _
  %s10 = ssub.s32 1, %s8
  %s11 = scalar_select 0, %s10, %s8
  $region1: #{tpu_custom_call.1} parent=0
    #allocation2 [shape = 'u8[8192]{0}', space=vmem, size = 0x2000, scoped, tag = 'input window, operand 0']
    #allocation3 [shape = 's32[2]{0}', space=sflag, size = 0x8, scoped, tag = 'scoped memory for tpu_custom_call.1']
    #allocation4 [shape = 's32[2]{0}', space=sflag, size = 0x8, scoped, tag = 'scoped memory for tpu_custom_call.1']
    #allocation5 [shape = 'u8[196608]{0}', space=vmem, size = 0x30000, scoped, tag = 'input window, operand 1, single buffered']
    #allocation6 [shape = 's32[1]{0}', space=sflag, size = 0x4, scoped, tag = 'scoped memory for tpu_custom_call.1']
    #allocation7 [shape = 'u8[131072]{0}', space=vmem, size = 0x20000, scoped, tag = 'input window, operand 2, single buffered']
    #allocation8 [shape = 'u8[327680]{0}', space=vmem, size = 0x50000, scoped, tag = 'input window, operand 3, single buffered']
    #allocation9 [shape = 's32[1]{0}', space=sflag, size = 0x4, scoped, tag = 'scoped memory for tpu_custom_call.1']
    #allocation10 [shape = 'u8[131072]{0}', space=vmem, size = 0x20000, scoped, tag = 'input window, operand 4, single buffered']
    #allocation11 [shape = 'u8[131072]{0}', space=vmem, size = 0x20000, scoped, tag = 'input window, operand 5, single buffered']
    #allocation12 [shape = 's32[1]{0}', space=sflag, size = 0x4, scoped, tag = 'scoped memory for tpu_custom_call.1']
    #allocation13 [shape = 'u8[16384]{0}', space=vmem, size = 0x4000, scoped, tag = 'output window, operand 0']
    %12 = vsyncpa [#allocation3], 0
    %s13 = scalar_lea.sflag [#allocation3], 1
    %14 = vsyncpa %s13, 0
    %15 = vsyncpa [#allocation6], 0
    %16 = vsyncpa [#allocation9], 0
    %17 = vsyncpa [#allocation12], 0
    %18 = vsyncpa [#allocation4], 0
    %s19 = scalar_lea.sflag [#allocation4], 1
    %20 = vsyncpa %s19, 0
    loop: start=0, step=1, limit=4
    $region2: #{tpu_custom_call.1} parent=1 // loop_pre_header
      _
    $region3: #{tpu_custom_call.1} parent=1 // loop_header
      %s22 = sphi 0, %s26
      %p23 = scmp.ge.s32.totalorder %s22, 4
      %s32 = sphi 0, %s34
      %s35 = sphi 0, %s32
      %s36 = sphi 0, %s35
      %s52 = sphi 0, %s36
      %s56 = sphi 0, %s56
      %s58 = sphi 0, %s56
      %s59 = sphi 0, %s58
      %s73 = sphi 0, %s59
      %s77 = sphi 0, %s77
      %s79 = sphi 0, %s77
      %s80 = sphi 0, %s79
      %s94 = sphi 0, %s80
      %s98 = sphi 0, %s98
      %s100 = sphi 0, %s98
      %s101 = sphi 0, %s100
      %s115 = sphi 0, %s101
      %s119 = sphi 0, %s119
      %s121 = sphi 0, %s119
      %s122 = sphi 0, %s121
      %s136 = sphi 0, %s122
      %s140 = sphi 0, %s140
      %s142 = sphi 0, %s140
      %s143 = sphi 0, %s142
      %s157 = sphi 0, %s143
      %s161 = sphi 0, %s161
      %s163 = sphi 0, %s161
      %s164 = sphi 0, %s163
      %s178 = sphi 0, %s164
      %s184 = sphi 0, %s186
      %s187 = sphi 0, %s184
      %s188 = sphi 0, %s187
      %s204 = sphi 0, %s188
    $region4: #{tpu_custom_call.1} parent=1 // loop_header_branch
      %25 = sbr.rel (%p23) target = $region8
    $region5: #{tpu_custom_call.1} parent=1 // loop_body
      %s27 = ssub.s32 %s22, 1
      %s28 = ssub.s32 %s22, 2
      %s29 = sadd.s32 %s22, 1
      %s30 = ssub.s32 %s22, %s29
      %p31 = scmp.eq.s32.totalorder %s30, 0
      %s33 = sadd.s32 %s32, 1
      %s34 = scalar_select %p31, %s32, %s33
      %p37 = pneg %p31
      %p38 = scmp.eq.s32.totalorder %s22, 1
      %p39 = por %p37, %p38
      %p40 = scmp.ne.s32.totalorder %s32, %s35
      %p41 = scmp.eq.s32.totalorder %s22, 0
      %p42 = por %p40, %p41
      %p43 = scmp.ne.s32.totalorder %s32, %s35
      %p44 = scmp.eq.s32.totalorder %s27, 1
      %p45 = por %p43, %p44
      %p46 = scmp.ne.s32.totalorder %s35, %s36
      %p47 = scmp.eq.s32.totalorder %s27, 0
      %p48 = por %p46, %p47
      %p49 = scmp.ne.s32.totalorder %s35, %s36
      %p50 = scmp.eq.s32.totalorder %s28, 1
      %p51 = por %p49, %p50
      %p53 = scmp.ne.s32.totalorder %s36, %s52
      %p54 = scmp.eq.s32.totalorder %s28, 0
      %p55 = por %p53, %p54
      %s57 = sadd.s32 %s56, 1
      %p60 = scmp.eq.s32.totalorder %s22, 1
      %p61 = scmp.ne.s32.totalorder %s56, %s58
      %p62 = scmp.eq.s32.totalorder %s22, 0
      %p63 = por %p61, %p62
      %p64 = scmp.ne.s32.totalorder %s56, %s58
      %p65 = scmp.eq.s32.totalorder %s27, 1
      %p66 = por %p64, %p65
      %p67 = scmp.ne.s32.totalorder %s58, %s59
      %p68 = scmp.eq.s32.totalorder %s27, 0
      %p69 = por %p67, %p68
      %p70 = scmp.ne.s32.totalorder %s58, %s59
      %p71 = scmp.eq.s32.totalorder %s28, 1
      %p72 = por %p70, %p71
      %p74 = scmp.ne.s32.totalorder %s59, %s73
      %p75 = scmp.eq.s32.totalorder %s28, 0
      %p76 = por %p74, %p75
      %s78 = sadd.s32 %s77, 1
      %p81 = scmp.eq.s32.totalorder %s22, 1
      %p82 = scmp.ne.s32.totalorder %s77, %s79
      %p83 = scmp.eq.s32.totalorder %s22, 0
      %p84 = por %p82, %p83
      %p85 = scmp.ne.s32.totalorder %s77, %s79
      %p86 = scmp.eq.s32.totalorder %s27, 1
      %p87 = por %p85, %p86
      %p88 = scmp.ne.s32.totalorder %s79, %s80
      %p89 = scmp.eq.s32.totalorder %s27, 0
      %p90 = por %p88, %p89
      %p91 = scmp.ne.s32.totalorder %s79, %s80
      %p92 = scmp.eq.s32.totalorder %s28, 1
      %p93 = por %p91, %p92
      %p95 = scmp.ne.s32.totalorder %s80, %s94
      %p96 = scmp.eq.s32.totalorder %s28, 0
      %p97 = por %p95, %p96
      %s99 = sadd.s32 %s98, 1
      %p102 = scmp.eq.s32.totalorder %s22, 1
      %p103 = scmp.ne.s32.totalorder %s98, %s100
      %p104 = scmp.eq.s32.totalorder %s22, 0
      %p105 = por %p103, %p104
      %p106 = scmp.ne.s32.totalorder %s98, %s100
      %p107 = scmp.eq.s32.totalorder %s27, 1
      %p108 = por %p106, %p107
      %p109 = scmp.ne.s32.totalorder %s100, %s101
      %p110 = scmp.eq.s32.totalorder %s27, 0
      %p111 = por %p109, %p110
      %p112 = scmp.ne.s32.totalorder %s100, %s101
      %p113 = scmp.eq.s32.totalorder %s28, 1
      %p114 = por %p112, %p113
      %p116 = scmp.ne.s32.totalorder %s101, %s115
      %p117 = scmp.eq.s32.totalorder %s28, 0
      %p118 = por %p116, %p117
      %s120 = sadd.s32 %s119, 1
      %p123 = scmp.eq.s32.totalorder %s22, 1
      %p124 = scmp.ne.s32.totalorder %s119, %s121
      %p125 = scmp.eq.s32.totalorder %s22, 0
      %p126 = por %p124, %p125
      %p127 = scmp.ne.s32.totalorder %s119, %s121
      %p128 = scmp.eq.s32.totalorder %s27, 1
      %p129 = por %p127, %p128
      %p130 = scmp.ne.s32.totalorder %s121, %s122
      %p131 = scmp.eq.s32.totalorder %s27, 0
      %p132 = por %p130, %p131
      %p133 = scmp.ne.s32.totalorder %s121, %s122
      %p134 = scmp.eq.s32.totalorder %s28, 1
      %p135 = por %p133, %p134
      %p137 = scmp.ne.s32.totalorder %s122, %s136
      %p138 = scmp.eq.s32.totalorder %s28, 0
      %p139 = por %p137, %p138
      %s141 = sadd.s32 %s140, 1
      %p144 = scmp.eq.s32.totalorder %s22, 1
      %p145 = scmp.ne.s32.totalorder %s140, %s142
      %p146 = scmp.eq.s32.totalorder %s22, 0
      %p147 = por %p145, %p146
      %p148 = scmp.ne.s32.totalorder %s140, %s142
      %p149 = scmp.eq.s32.totalorder %s27, 1
      %p150 = por %p148, %p149
      %p151 = scmp.ne.s32.totalorder %s142, %s143
      %p152 = scmp.eq.s32.totalorder %s27, 0
      %p153 = por %p151, %p152
      %p154 = scmp.ne.s32.totalorder %s142, %s143
      %p155 = scmp.eq.s32.totalorder %s28, 1
      %p156 = por %p154, %p155
      %p158 = scmp.ne.s32.totalorder %s143, %s157
      %p159 = scmp.eq.s32.totalorder %s28, 0
      %p160 = por %p158, %p159
      %s162 = sadd.s32 %s161, 1
      %p165 = scmp.eq.s32.totalorder %s22, 1
      %p166 = scmp.ne.s32.totalorder %s161, %s163
      %p167 = scmp.eq.s32.totalorder %s22, 0
      %p168 = por %p166, %p167
      %p169 = scmp.ne.s32.totalorder %s161, %s163
      %p170 = scmp.eq.s32.totalorder %s27, 1
      %p171 = por %p169, %p170
      %p172 = scmp.ne.s32.totalorder %s163, %s164
      %p173 = scmp.eq.s32.totalorder %s27, 0
      %p174 = por %p172, %p173
      %p175 = scmp.ne.s32.totalorder %s163, %s164
      %p176 = scmp.eq.s32.totalorder %s28, 1
      %p177 = por %p175, %p176
      %p179 = scmp.ne.s32.totalorder %s164, %s178
      %p180 = scmp.eq.s32.totalorder %s28, 0
      %p181 = por %p179, %p180
      %s182 = ssub.s32 %s22, %s29
      %p183 = scmp.eq.s32.totalorder %s182, 0
      %s185 = sadd.s32 %s184, 1
      %s186 = scalar_select %p183, %s184, %s185
      %p189 = pneg %p183
      %p190 = scmp.eq.s32.totalorder %s22, 1
      %p191 = por %p189, %p190
      %p192 = scmp.ne.s32.totalorder %s184, %s187
      %p193 = scmp.eq.s32.totalorder %s22, 0
      %p194 = por %p192, %p193
      %p195 = scmp.ne.s32.totalorder %s184, %s187
      %p196 = scmp.eq.s32.totalorder %s27, 1
      %p197 = por %p195, %p196
      %p198 = scmp.ne.s32.totalorder %s187, %s188
      %p199 = scmp.eq.s32.totalorder %s27, 0
      %p200 = por %p198, %p199
      %p201 = scmp.ne.s32.totalorder %s187, %s188
      %p202 = scmp.eq.s32.totalorder %s28, 1
      %p203 = por %p201, %p202
      %p205 = scmp.ne.s32.totalorder %s188, %s204
      %p206 = scmp.eq.s32.totalorder %s28, 0
      %p207 = por %p205, %p206
      %p208 = scmp.le.s32.totalorder 1, %s22
      %p209 = scmp.lt.s32.totalorder %s22, 3
      %p210 = pnand %p208, %p209
      %p211 = pneg %p210
      // Predicated region
      $region9: #{tpu_custom_call.1} parent=5 // pred_check
        _
      $region10: #{tpu_custom_call.1} parent=5 // pred_check_branch
        %213 = sbr.rel (%p210) target = $region12
      $region11: #{tpu_custom_call.1} parent=5 // pred_region
        %s214 = ssub.s32 %s22, 1
        // Predicated region
        $region13: #{tpu_custom_call.1} parent=11 // pred_check
          %p215 = pneg %p69
        $region14: #{tpu_custom_call.1} parent=11 // pred_check_branch
          %217 = sbr.rel (%p215) target = $region16
        $region15: #{tpu_custom_call.1} parent=11 // pred_region
          %s219 = ssub.s32 6144, 6144
          %220 = vsyncadd [#allocation6], %s219
          %s221 = sshll.u32 [#allocation5], 4
          %s222 = int_to_ptr.vmem [resolvable:$true] %s221
          %227 = dma.hbm_to_vmem [thread:$0]  %s1, 6144, %s222, [#allocation6], 128, 128, 8
        $region16: #{tpu_custom_call.1} parent=11 // pred_fallthru
          _
        // Predicated region
        $region17: #{tpu_custom_call.1} parent=11 // pred_check
          %p228 = pneg %p90
        $region18: #{tpu_custom_call.1} parent=11 // pred_check_branch
          %230 = sbr.rel (%p228) target = $region20
        $region19: #{tpu_custom_call.1} parent=11 // pred_region
          %s232 = ssub.s32 4096, 4096
          %233 = vsyncadd [#allocation6], %s232
          %s234 = sshll.u32 [#allocation7], 4
          %s235 = int_to_ptr.vmem [resolvable:$true] %s234
          %240 = dma.hbm_to_vmem [thread:$0]  %s2, 4096, %s235, [#allocation6], 128, 128, 8
        $region20: #{tpu_custom_call.1} parent=11 // pred_fallthru
          _
        // Predicated region
        $region21: #{tpu_custom_call.1} parent=11 // pred_check
          %p241 = pneg %p111
        $region22: #{tpu_custom_call.1} parent=11 // pred_check_branch
          %243 = sbr.rel (%p241) target = $region24
        $region23: #{tpu_custom_call.1} parent=11 // pred_region
          %s245 = ssub.s32 10240, 10240
          %246 = vsyncadd [#allocation9], %s245
          %s247 = sshll.u32 [#allocation8], 4
          %s248 = int_to_ptr.vmem [resolvable:$true] %s247
          %253 = dma.hbm_to_vmem [thread:$0]  %s3, 10240, %s248, [#allocation9], 128, 128, 8
        $region24: #{tpu_custom_call.1} parent=11 // pred_fallthru
          _
        // Predicated region
        $region25: #{tpu_custom_call.1} parent=11 // pred_check
          %p254 = pneg %p132
        $region26: #{tpu_custom_call.1} parent=11 // pred_check_branch
          %256 = sbr.rel (%p254) target = $region28
        $region27: #{tpu_custom_call.1} parent=11 // pred_region
          %s258 = ssub.s32 4096, 4096
          %259 = vsyncadd [#allocation9], %s258
          %s260 = sshll.u32 [#allocation10], 4
          %s261 = int_to_ptr.vmem [resolvable:$true] %s260
          %266 = dma.hbm_to_vmem [thread:$0]  %s4, 4096, %s261, [#allocation9], 128, 128, 8
        $region28: #{tpu_custom_call.1} parent=11 // pred_fallthru
          _
        // Predicated region
        $region29: #{tpu_custom_call.1} parent=11 // pred_check
          %p267 = pneg %p153
        $region30: #{tpu_custom_call.1} parent=11 // pred_check_branch
          %269 = sbr.rel (%p267) target = $region32
        $region31: #{tpu_custom_call.1} parent=11 // pred_region
          %s271 = ssub.s32 4096, 4096
          %272 = vsyncadd [#allocation12], %s271
          %s273 = sshll.u32 [#allocation11], 4
          %s274 = int_to_ptr.vmem [resolvable:$true] %s273
          %279 = dma.hbm_to_vmem [thread:$0]  %s5, 4096, %s274, [#allocation12], 128, 128, 8
        $region32: #{tpu_custom_call.1} parent=11 // pred_fallthru
          _
        // Predicated region
        $region33: #{tpu_custom_call.1} parent=11 // pred_check
          %p280 = pneg %p174
        $region34: #{tpu_custom_call.1} parent=11 // pred_check_branch
          %282 = sbr.rel (%p280) target = $region36
        $region35: #{tpu_custom_call.1} parent=11 // pred_region
          _
        $region36: #{tpu_custom_call.1} parent=11 // pred_fallthru
          _
      $region12: #{tpu_custom_call.1} parent=5 // pred_fallthru
        _
      %p283 = scmp.lt.s32.totalorder %s22, 2
      // Predicated region
      $region37: #{tpu_custom_call.1} parent=5 // pred_check
        %p284 = pneg %p283
      $region38: #{tpu_custom_call.1} parent=5 // pred_check_branch
        %286 = sbr.rel (%p284) target = $region40
      $region39: #{tpu_custom_call.1} parent=5 // pred_region
        // Predicated region
        $region41: #{tpu_custom_call.1} parent=39 // pred_check
          %p287 = pneg %p42
        $region42: #{tpu_custom_call.1} parent=39 // pred_check_branch
          %289 = sbr.rel (%p287) target = $region44
        $region43: #{tpu_custom_call.1} parent=39 // pred_region
          %s290 = sand.u32 %s32, 1
          %s291 = scalar_lea.sflag [#allocation3], %s290
          %s292 = sand.u32 %s32, 1
          %s293 = smul.addr %s292, 8
          %s294 = scalar_lea.vmem [#allocation2], %s293
          %s296 = ssub.s32 128, 128
          %297 = vsyncadd %s291, %s296
          %s298 = smul.addr %s22, 2
          %s299 = smul.addr %s298, 64
          %s300 = scalar_lea.hbm %s0, %s299
          %s301 = sshll.u32 %s294, 4
          %s302 = int_to_ptr.vmem [resolvable:$true] %s301
          %307 = dma.hbm_to_vmem [thread:$0]  %s300, 128, %s302, %s291, 64, 64, 4
        $region44: #{tpu_custom_call.1} parent=39 // pred_fallthru
          _
      $region40: #{tpu_custom_call.1} parent=5 // pred_fallthru
        _
      %p308 = scmp.le.s32.totalorder 1, %s22
      %p309 = scmp.lt.s32.totalorder %s22, 3
      %p310 = pnand %p308, %p309
      %p311 = pneg %p310
      // Predicated region
      $region45: #{tpu_custom_call.1} parent=5 // pred_check
        _
      $region46: #{tpu_custom_call.1} parent=5 // pred_check_branch
        %313 = sbr.rel (%p310) target = $region48
      $region47: #{tpu_custom_call.1} parent=5 // pred_region
        %s314 = ssub.s32 %s22, 1
        %s315 = sand.u32 %s35, 1
        %s316 = scalar_lea.sflag [#allocation3], %s315
        %s317 = sand.u32 %s35, 1
        %s318 = smul.addr %s317, 8
        %s319 = scalar_lea.vmem [#allocation2], %s318
        // Predicated region
        $region49: #{tpu_custom_call.1} parent=47 // pred_check
          %p320 = pneg %p48
        $region50: #{tpu_custom_call.1} parent=47 // pred_check_branch
          %322 = sbr.rel (%p320) target = $region52
        $region51: #{tpu_custom_call.1} parent=47 // pred_region
          %323 = dma.done %s316, 128
        $region52: #{tpu_custom_call.1} parent=47 // pred_fallthru
          _
        // Predicated region
        $region53: #{tpu_custom_call.1} parent=47 // pred_check
          %p324 = pneg %p69
        $region54: #{tpu_custom_call.1} parent=47 // pred_check_branch
          %326 = sbr.rel (%p324) target = $region56
        $region55: #{tpu_custom_call.1} parent=47 // pred_region
          %327 = dma.done [#allocation6], 6144
        $region56: #{tpu_custom_call.1} parent=47 // pred_fallthru
          _
        // Predicated region
        $region57: #{tpu_custom_call.1} parent=47 // pred_check
          %p328 = pneg %p90
        $region58: #{tpu_custom_call.1} parent=47 // pred_check_branch
          %330 = sbr.rel (%p328) target = $region60
        $region59: #{tpu_custom_call.1} parent=47 // pred_region
          %331 = dma.done [#allocation6], 4096
        $region60: #{tpu_custom_call.1} parent=47 // pred_fallthru
          _
        // Predicated region
        $region61: #{tpu_custom_call.1} parent=47 // pred_check
          %p332 = pneg %p111
        $region62: #{tpu_custom_call.1} parent=47 // pred_check_branch
          %334 = sbr.rel (%p332) target = $region64
        $region63: #{tpu_custom_call.1} parent=47 // pred_region
          %335 = dma.done [#allocation9], 10240
        $region64: #{tpu_custom_call.1} parent=47 // pred_fallthru
          _
        // Predicated region
        $region65: #{tpu_custom_call.1} parent=47 // pred_check
          %p336 = pneg %p132
        $region66: #{tpu_custom_call.1} parent=47 // pred_check_branch
          %338 = sbr.rel (%p336) target = $region68
        $region67: #{tpu_custom_call.1} parent=47 // pred_region
          %339 = dma.done [#allocation9], 4096
        $region68: #{tpu_custom_call.1} parent=47 // pred_fallthru
          _
        // Predicated region
        $region69: #{tpu_custom_call.1} parent=47 // pred_check
          %p340 = pneg %p153
        $region70: #{tpu_custom_call.1} parent=47 // pred_check_branch
          %342 = sbr.rel (%p340) target = $region72
        $region71: #{tpu_custom_call.1} parent=47 // pred_region
          %343 = dma.done [#allocation12], 4096
        $region72: #{tpu_custom_call.1} parent=47 // pred_fallthru
          _
        %s344 = sand.u32 %s35, 1
        %s345 = scalar_lea.sflag [#allocation3], %s344
        %s346 = sand.u32 %s35, 1
        %s347 = smul.addr %s346, 8
        %s348 = scalar_lea.vmem [#allocation2], %s347
        %p349 = pneg %p48
        %p350 = pneg %p45
        %p351 = pneg %p69
        %p352 = pneg %p66
        %p353 = pneg %p90
        %p354 = pneg %p87
        %p355 = pneg %p111
        %p356 = pneg %p108
        %p357 = pneg %p132
        %p358 = pneg %p129
        %p359 = pneg %p153
        %p360 = pneg %p150
        %p361 = pneg %p174
        %p362 = pneg %p171
        %p363 = pneg %p200
        %p364 = pneg %p197
        %s365 = sand.u32 %s187, 1
        %s366 = scalar_lea.sflag [#allocation4], %s365
        %s367 = sand.u32 %s187, 1
        %s368 = smul.addr %s367, 16
        %s369 = scalar_lea.vmem [#allocation13], %s368
        %v373 = vld [vmem:[%s319] sm:$0xf]
        %v374 = vld [vmem:[%s319 + $0x4] sm:$0xf]
        %v375 = vunpack.c.l.bf16 %v373
        %v376 = vunpack.c.l.bf16 %v374
        %v377 = vlaneseq
        %v378 = vshrl.u32 %v377, 7
        %v379 = vadd.s32 %v378, 8
        %s380 = scalar_lea.vmem [#allocation8], 256
        %v381 = vld [vmem:[%s380] sm:$0xff]
        %v382 = vld [vmem:[%s380 + $0x8] sm:$0xff]
        %v383 = vld [vmem:[%s380 + $0x10] sm:$0xff]
        %v384 = vld [vmem:[%s380 + $0x18] sm:$0xff]
        %v385 = vld [vmem:[%s380 + $0x20] sm:$0xff]
        %v386 = vld [vmem:[%s380 + $0x28] sm:$0xff]
        %v387 = vld [vmem:[%s380 + $0x30] sm:$0xff]
        %v388 = vld [vmem:[%s380 + $0x38] sm:$0xff]
        %v389 = vld [vmem:[%s380 + $0x40] sm:$0xff]
        %v390 = vld [vmem:[%s380 + $0x48] sm:$0xff]
        %v391 = vld [vmem:[%s380 + $0x50] sm:$0xff]
        %v392 = vld [vmem:[%s380 + $0x58] sm:$0xff]
        %v393 = vld [vmem:[%s380 + $0x60] sm:$0xff]
        %v394 = vld [vmem:[%s380 + $0x68] sm:$0xff]
        %v395 = vld [vmem:[%s380 + $0x70] sm:$0xff]
        %v396 = vld [vmem:[%s380 + $0x78] sm:$0xff]
        %s397 = scalar_lea.vmem [#allocation5], 128
        %v398 = vld [vmem:[%s397] sm:$0xff]
        %v399 = vld [vmem:[%s397 + $0x8] sm:$0xff]
        %v400 = vld [vmem:[%s397 + $0x10] sm:$0xff]
        %v401 = vld [vmem:[%s397 + $0x18] sm:$0xff]
        %v402 = vld [vmem:[%s397 + $0x20] sm:$0xff]
        %v403 = vld [vmem:[%s397 + $0x28] sm:$0xff]
        %v404 = vld [vmem:[%s397 + $0x30] sm:$0xff]
        %v405 = vld [vmem:[%s397 + $0x38] sm:$0xff]
        %v406 = vld [vmem:[%s397 + $0x40] sm:$0xff]
        %v407 = vld [vmem:[%s397 + $0x48] sm:$0xff]
        %v408 = vld [vmem:[%s397 + $0x50] sm:$0xff]
        %v409 = vld [vmem:[%s397 + $0x58] sm:$0xff]
        %v410 = vld [vmem:[%s397 + $0x60] sm:$0xff]
        %v411 = vld [vmem:[%s397 + $0x68] sm:$0xff]
        %v412 = vld [vmem:[%s397 + $0x70] sm:$0xff]
        %v413 = vld [vmem:[%s397 + $0x78] sm:$0xff]
        %v414 = vrot.slane %v375, 6
        %v415 = vrot.slane %v376, 6
        %vm416 = vcmp.lt.s32.totalorder %v378, 2
        %v417 = vsel %vm416, %v414, %v415
        %v418 = vsel %vm416, %v415, %v414
        %v419 = vpack.c.bf16 %v417, %v418
        %v420 = vadd.s32 %v378, 4294967294
        %v421 = vadd.s32 %v379, 4294967294
        %vm422 = vcmp.ge.s32.totalorder %v420, 0
        %vm423 = vcmp.ge.s32.totalorder %v421, 0
        %vm424 = vmpackc.low %vm422, %vm422
        %vm425 = vmpackc.low %vm423, %vm423
        %v426 = vsel %vm424, 65537, 0
        %v427 = vsel %vm425, 65537, 0
        %v428 = vunpack.c.l.b16 %v426
        %v429 = vunpack.c.l.b16 %v427
        %v430 = vpack.c.b16 %v429, %v428
        %vm431 = vcmp.ne.s16.totalorder %v430, 0
        %v432 = vsel %vm431, %v419, 0
        %v433 = vld [vmem:[#allocation8] sm:$0xff]
        %v434 = vld [vmem:[#allocation8 + $0x8] sm:$0xff]
        %v435 = vld [vmem:[#allocation8 + $0x10] sm:$0xff]
        %v436 = vld [vmem:[#allocation8 + $0x18] sm:$0xff]
        %v437 = vld [vmem:[#allocation8 + $0x20] sm:$0xff]
        %v438 = vld [vmem:[#allocation8 + $0x28] sm:$0xff]
        %v439 = vld [vmem:[#allocation8 + $0x30] sm:$0xff]
        %v440 = vld [vmem:[#allocation8 + $0x38] sm:$0xff]
        %v441 = vld [vmem:[#allocation8 + $0x40] sm:$0xff]
        %v442 = vld [vmem:[#allocation8 + $0x48] sm:$0xff]
        %v443 = vld [vmem:[#allocation8 + $0x50] sm:$0xff]
        %v444 = vld [vmem:[#allocation8 + $0x58] sm:$0xff]
        %v445 = vld [vmem:[#allocation8 + $0x60] sm:$0xff]
        %v446 = vld [vmem:[#allocation8 + $0x68] sm:$0xff]
        %v447 = vld [vmem:[#allocation8 + $0x70] sm:$0xff]
        %v448 = vld [vmem:[#allocation8 + $0x78] sm:$0xff]
        %v465 = vunpack.c.l.b16 %v433
        %v466 = vunpack.c.h.b16 %v433
        %v467 = vunpack.c.l.b16 %v434
        %v468 = vunpack.c.h.b16 %v434
        %v469 = vunpack.c.l.b16 %v435
        %v470 = vunpack.c.h.b16 %v435
        %v471 = vunpack.c.l.b16 %v436
        %v472 = vunpack.c.h.b16 %v436
        %v473 = vunpack.c.l.b16 %v437
        %v474 = vunpack.c.h.b16 %v437
        %v475 = vunpack.c.l.b16 %v438
        %v476 = vunpack.c.h.b16 %v438
        %v477 = vunpack.c.l.b16 %v439
        %v478 = vunpack.c.h.b16 %v439
        %v479 = vunpack.c.l.b16 %v440
        %v480 = vunpack.c.h.b16 %v440
        %v481 = vunpack.c.l.b16 %v441
        %v482 = vunpack.c.h.b16 %v441
        %v483 = vunpack.c.l.b16 %v442
        %v484 = vunpack.c.h.b16 %v442
        %v485 = vunpack.c.l.b16 %v443
        %v486 = vunpack.c.h.b16 %v443
        %v487 = vunpack.c.l.b16 %v444
        %v488 = vunpack.c.h.b16 %v444
        %v489 = vunpack.c.l.b16 %v445
        %v490 = vunpack.c.h.b16 %v445
        %v491 = vunpack.c.l.b16 %v446
        %v492 = vunpack.c.h.b16 %v446
        %v493 = vunpack.c.l.b16 %v447
        %v494 = vunpack.c.h.b16 %v447
        %v495 = vunpack.c.l.b16 %v448
        %v496 = vunpack.c.h.b16 %v448
        %v497 = vpack.c.b16 %v467, %v465
        %v498 = vpack.c.b16 %v468, %v466
        %v499 = vpack.c.b16 %v471, %v469
        %v500 = vpack.c.b16 %v472, %v470
        %v501 = vpack.c.b16 %v475, %v473
        %v502 = vpack.c.b16 %v476, %v474
        %v503 = vpack.c.b16 %v479, %v477
        %v504 = vpack.c.b16 %v480, %v478
        %v505 = vpack.c.b16 %v483, %v481
        %v506 = vpack.c.b16 %v484, %v482
        %v507 = vpack.c.b16 %v487, %v485
        %v508 = vpack.c.b16 %v488, %v486
        %v509 = vpack.c.b16 %v491, %v489
        %v510 = vpack.c.b16 %v492, %v490
        %v511 = vpack.c.b16 %v495, %v493
        %v512 = vpack.c.b16 %v496, %v494
        %529 = vmatprep.subr.bf16.mxu0 %v498
        %530 = vmatpush1.bf16.msra.mxu0 %v497
        %531 = vmatprep.subr.bf16.mxu0 %v500
        %532 = vmatpush1.bf16.msra.mxu0 %v499
        %533 = vmatprep.subr.bf16.mxu0 %v502
        %534 = vmatpush1.bf16.msra.mxu0 %v501
        %535 = vmatprep.subr.bf16.mxu0 %v504
        %536 = vmatpush1.bf16.msra.mxu0 %v503
        %537 = vmatprep.subr.bf16.mxu0 %v506
        %538 = vmatpush1.bf16.msra.mxu0 %v505
        %539 = vmatprep.subr.bf16.mxu0 %v508
        %540 = vmatpush1.bf16.msra.mxu0 %v507
        %541 = vmatprep.subr.bf16.mxu0 %v510
        %542 = vmatpush1.bf16.msra.mxu0 %v509
        %543 = vmatprep.subr.bf16.mxu0 %v512
        %544 = vmatpush1.bf16.msra.mxu0 %v511
        %545 = vmatprep.subr.bf16.mxu0 0
        %546 = vmatpush1.bf16.msra.mxu0 0
        %547 = vmatprep.subr.bf16.mxu0 0
        %548 = vmatpush1.bf16.msra.mxu0 0
        %549 = vmatprep.subr.bf16.mxu0 0
        %550 = vmatpush1.bf16.msra.mxu0 0
        %551 = vmatprep.subr.bf16.mxu0 0
        %552 = vmatpush1.bf16.msra.mxu0 0
        %553 = vmatprep.subr.bf16.mxu0 0
        %554 = vmatpush1.bf16.msra.mxu0 0
        %555 = vmatprep.subr.bf16.mxu0 0
        %556 = vmatpush1.bf16.msra.mxu0 0
        %557 = vmatprep.subr.bf16.mxu0 0
        %558 = vmatpush1.bf16.msra.mxu0 0
        %559 = vmatprep.subr.bf16.mxu0 0
        %560 = vmatpush1.bf16.msra.mxu0 0
        %561 = vmatprep.mubr.bf16.mxu0 0
        %562 = vmatmul.mubr.bf16.gmra.mrb[0].mxu0 %v432
        %v563 = vpop.f32.mrb[0].mxu0
        %v564 = vadd.f32 0.0, %v563
        %v565 = vpop.f32.mrb[0].mxu0
        %v566 = vadd.f32 0.0, %v565
        %v567 = vpop.f32.mrb[0].mxu0
        %v568 = vadd.f32 0.0, %v567
        %v569 = vpop.f32.mrb[0].mxu0
        %v570 = vadd.f32 0.0, %v569
        %571 = vdwg.mxu0
        %v574 = vunpack.c.l.b16 %v373
        %v575 = vunpack.c.l.b16 %v374
        %v576 = vpack.c.b16 %v575, %v574
        %v594 = vunpack.c.l.b16 %v381
        %v595 = vunpack.c.h.b16 %v381
        %v596 = vunpack.c.l.b16 %v382
        %v597 = vunpack.c.h.b16 %v382
        %v598 = vunpack.c.l.b16 %v383
        %v599 = vunpack.c.h.b16 %v383
        %v600 = vunpack.c.l.b16 %v384
        %v601 = vunpack.c.h.b16 %v384
        %v602 = vunpack.c.l.b16 %v385
        %v603 = vunpack.c.h.b16 %v385
        %v604 = vunpack.c.l.b16 %v386
        %v605 = vunpack.c.h.b16 %v386
        %v606 = vunpack.c.l.b16 %v387
        %v607 = vunpack.c.h.b16 %v387
        %v608 = vunpack.c.l.b16 %v388
        %v609 = vunpack.c.h.b16 %v388
        %v610 = vunpack.c.l.b16 %v389
        %v611 = vunpack.c.h.b16 %v389
        %v612 = vunpack.c.l.b16 %v390
        %v613 = vunpack.c.h.b16 %v390
        %v614 = vunpack.c.l.b16 %v391
        %v615 = vunpack.c.h.b16 %v391
        %v616 = vunpack.c.l.b16 %v392
        %v617 = vunpack.c.h.b16 %v392
        %v618 = vunpack.c.l.b16 %v393
        %v619 = vunpack.c.h.b16 %v393
        %v620 = vunpack.c.l.b16 %v394
        %v621 = vunpack.c.h.b16 %v394
        %v622 = vunpack.c.l.b16 %v395
        %v623 = vunpack.c.h.b16 %v395
        %v624 = vunpack.c.l.b16 %v396
        %v625 = vunpack.c.h.b16 %v396
        %v626 = vpack.c.b16 %v596, %v594
        %v627 = vpack.c.b16 %v597, %v595
        %v628 = vpack.c.b16 %v600, %v598
        %v629 = vpack.c.b16 %v601, %v599
        %v630 = vpack.c.b16 %v604, %v602
        %v631 = vpack.c.b16 %v605, %v603
        %v632 = vpack.c.b16 %v608, %v606
        %v633 = vpack.c.b16 %v609, %v607
        %v634 = vpack.c.b16 %v612, %v610
        %v635 = vpack.c.b16 %v613, %v611
        %v636 = vpack.c.b16 %v616, %v614
        %v637 = vpack.c.b16 %v617, %v615
        %v638 = vpack.c.b16 %v620, %v618
        %v639 = vpack.c.b16 %v621, %v619
        %v640 = vpack.c.b16 %v624, %v622
        %v641 = vpack.c.b16 %v625, %v623
        %658 = vmatprep.subr.bf16.mxu0 %v627
        %659 = vmatpush1.bf16.msra.mxu0 %v626
        %660 = vmatprep.subr.bf16.mxu0 %v629
        %661 = vmatpush1.bf16.msra.mxu0 %v628
        %662 = vmatprep.subr.bf16.mxu0 %v631
        %663 = vmatpush1.bf16.msra.mxu0 %v630
        %664 = vmatprep.subr.bf16.mxu0 %v633
        %665 = vmatpush1.bf16.msra.mxu0 %v632
        %666 = vmatprep.subr.bf16.mxu0 %v635
        %667 = vmatpush1.bf16.msra.mxu0 %v634
        %668 = vmatprep.subr.bf16.mxu0 %v637
        %669 = vmatpush1.bf16.msra.mxu0 %v636
        %670 = vmatprep.subr.bf16.mxu0 %v639
        %671 = vmatpush1.bf16.msra.mxu0 %v638
        %672 = vmatprep.subr.bf16.mxu0 %v641
        %673 = vmatpush1.bf16.msra.mxu0 %v640
        %674 = vmatprep.subr.bf16.mxu0 0
        %675 = vmatpush1.bf16.msra.mxu0 0
        %676 = vmatprep.subr.bf16.mxu0 0
        %677 = vmatpush1.bf16.msra.mxu0 0
        %678 = vmatprep.subr.bf16.mxu0 0
        %679 = vmatpush1.bf16.msra.mxu0 0
        %680 = vmatprep.subr.bf16.mxu0 0
        %681 = vmatpush1.bf16.msra.mxu0 0
        %682 = vmatprep.subr.bf16.mxu0 0
        %683 = vmatpush1.bf16.msra.mxu0 0
        %684 = vmatprep.subr.bf16.mxu0 0
        %685 = vmatpush1.bf16.msra.mxu0 0
        %686 = vmatprep.subr.bf16.mxu0 0
        %687 = vmatpush1.bf16.msra.mxu0 0
        %688 = vmatprep.subr.bf16.mxu0 0
        %689 = vmatpush1.bf16.msra.mxu0 0
        %690 = vmatprep.mubr.bf16.mxu0 0
        %691 = vmatmul.mubr.bf16.gmra.mrb[0].mxu0 %v576
        %v692 = vpop.f32.mrb[0].mxu0
        %v693 = vadd.f32 %v564, %v692
        %v694 = vpop.f32.mrb[0].mxu0
        %v695 = vadd.f32 %v566, %v694
        %v696 = vpop.f32.mrb[0].mxu0
        %v697 = vadd.f32 %v568, %v696
        %v698 = vpop.f32.mrb[0].mxu0
        %v699 = vadd.f32 %v570, %v698
        %700 = vdwg.mxu0
        %v701 = vrot.slane %v375, 7
        %v702 = vrot.slane %v376, 7
        %vm703 = vcmp.lt.s32.totalorder %v378, 1
        %v704 = vsel %vm703, %v701, %v702
        %v705 = vsel %vm703, %v702, %v701
        %v706 = vpack.c.bf16 %v704, %v705
        %v707 = vadd.s32 %v378, 4294967295
        %v708 = vadd.s32 %v379, 4294967295
        %vm709 = vcmp.ge.s32.totalorder %v707, 0
        %vm710 = vcmp.ge.s32.totalorder %v708, 0
        %vm711 = vmpackc.low %vm709, %vm709
        %vm712 = vmpackc.low %vm710, %vm710
        %v713 = vsel %vm711, 65537, 0
        %v714 = vsel %vm712, 65537, 0
        %v715 = vunpack.c.l.b16 %v713
        %v716 = vunpack.c.l.b16 %v714
        %v717 = vpack.c.b16 %v716, %v715
        %vm718 = vcmp.ne.s16.totalorder %v717, 0
        %v719 = vsel %vm718, %v706, 0
        %s720 = scalar_lea.vmem [#allocation8], 128
        %v721 = vld [vmem:[%s720] sm:$0xff]
        %v722 = vld [vmem:[%s720 + $0x8] sm:$0xff]
        %v723 = vld [vmem:[%s720 + $0x10] sm:$0xff]
        %v724 = vld [vmem:[%s720 + $0x18] sm:$0xff]
        %v725 = vld [vmem:[%s720 + $0x20] sm:$0xff]
        %v726 = vld [vmem:[%s720 + $0x28] sm:$0xff]
        %v727 = vld [vmem:[%s720 + $0x30] sm:$0xff]
        %v728 = vld [vmem:[%s720 + $0x38] sm:$0xff]
        %v729 = vld [vmem:[%s720 + $0x40] sm:$0xff]
        %v730 = vld [vmem:[%s720 + $0x48] sm:$0xff]
        %v731 = vld [vmem:[%s720 + $0x50] sm:$0xff]
        %v732 = vld [vmem:[%s720 + $0x58] sm:$0xff]
        %v733 = vld [vmem:[%s720 + $0x60] sm:$0xff]
        %v734 = vld [vmem:[%s720 + $0x68] sm:$0xff]
        %v735 = vld [vmem:[%s720 + $0x70] sm:$0xff]
        %v736 = vld [vmem:[%s720 + $0x78] sm:$0xff]
        %v753 = vunpack.c.l.b16 %v721
        %v754 = vunpack.c.h.b16 %v721
        %v755 = vunpack.c.l.b16 %v722
        %v756 = vunpack.c.h.b16 %v722
        %v757 = vunpack.c.l.b16 %v723
        %v758 = vunpack.c.h.b16 %v723
        %v759 = vunpack.c.l.b16 %v724
        %v760 = vunpack.c.h.b16 %v724
        %v761 = vunpack.c.l.b16 %v725
        %v762 = vunpack.c.h.b16 %v725
        %v763 = vunpack.c.l.b16 %v726
        %v764 = vunpack.c.h.b16 %v726
        %v765 = vunpack.c.l.b16 %v727
        %v766 = vunpack.c.h.b16 %v727
        %v767 = vunpack.c.l.b16 %v728
        %v768 = vunpack.c.h.b16 %v728
        %v769 = vunpack.c.l.b16 %v729
        %v770 = vunpack.c.h.b16 %v729
        %v771 = vunpack.c.l.b16 %v730
        %v772 = vunpack.c.h.b16 %v730
        %v773 = vunpack.c.l.b16 %v731
        %v774 = vunpack.c.h.b16 %v731
        %v775 = vunpack.c.l.b16 %v732
        %v776 = vunpack.c.h.b16 %v732
        %v777 = vunpack.c.l.b16 %v733
        %v778 = vunpack.c.h.b16 %v733
        %v779 = vunpack.c.l.b16 %v734
        %v780 = vunpack.c.h.b16 %v734
        %v781 = vunpack.c.l.b16 %v735
        %v782 = vunpack.c.h.b16 %v735
        %v783 = vunpack.c.l.b16 %v736
        %v784 = vunpack.c.h.b16 %v736
        %v785 = vpack.c.b16 %v755, %v753
        %v786 = vpack.c.b16 %v756, %v754
        %v787 = vpack.c.b16 %v759, %v757
        %v788 = vpack.c.b16 %v760, %v758
        %v789 = vpack.c.b16 %v763, %v761
        %v790 = vpack.c.b16 %v764, %v762
        %v791 = vpack.c.b16 %v767, %v765
        %v792 = vpack.c.b16 %v768, %v766
        %v793 = vpack.c.b16 %v771, %v769
        %v794 = vpack.c.b16 %v772, %v770
        %v795 = vpack.c.b16 %v775, %v773
        %v796 = vpack.c.b16 %v776, %v774
        %v797 = vpack.c.b16 %v779, %v777
        %v798 = vpack.c.b16 %v780, %v778
        %v799 = vpack.c.b16 %v783, %v781
        %v800 = vpack.c.b16 %v784, %v782
        %817 = vmatprep.subr.bf16.mxu0 %v786
        %818 = vmatpush1.bf16.msra.mxu0 %v785
        %819 = vmatprep.subr.bf16.mxu0 %v788
        %820 = vmatpush1.bf16.msra.mxu0 %v787
        %821 = vmatprep.subr.bf16.mxu0 %v790
        %822 = vmatpush1.bf16.msra.mxu0 %v789
        %823 = vmatprep.subr.bf16.mxu0 %v792
        %824 = vmatpush1.bf16.msra.mxu0 %v791
        %825 = vmatprep.subr.bf16.mxu0 %v794
        %826 = vmatpush1.bf16.msra.mxu0 %v793
        %827 = vmatprep.subr.bf16.mxu0 %v796
        %828 = vmatpush1.bf16.msra.mxu0 %v795
        %829 = vmatprep.subr.bf16.mxu0 %v798
        %830 = vmatpush1.bf16.msra.mxu0 %v797
        %831 = vmatprep.subr.bf16.mxu0 %v800
        %832 = vmatpush1.bf16.msra.mxu0 %v799
        %833 = vmatprep.subr.bf16.mxu0 0
        %834 = vmatpush1.bf16.msra.mxu0 0
        %835 = vmatprep.subr.bf16.mxu0 0
        %836 = vmatpush1.bf16.msra.mxu0 0
        %837 = vmatprep.subr.bf16.mxu0 0
        %838 = vmatpush1.bf16.msra.mxu0 0
        %839 = vmatprep.subr.bf16.mxu0 0
        %840 = vmatpush1.bf16.msra.mxu0 0
        %841 = vmatprep.subr.bf16.mxu0 0
        %842 = vmatpush1.bf16.msra.mxu0 0
        %843 = vmatprep.subr.bf16.mxu0 0
        %844 = vmatpush1.bf16.msra.mxu0 0
        %845 = vmatprep.subr.bf16.mxu0 0
        %846 = vmatpush1.bf16.msra.mxu0 0
        %847 = vmatprep.subr.bf16.mxu0 0
        %848 = vmatpush1.bf16.msra.mxu0 0
        %849 = vmatprep.mubr.bf16.mxu0 0
        %850 = vmatmul.mubr.bf16.gmra.mrb[0].mxu0 %v719
        %v851 = vpop.f32.mrb[0].mxu0
        %v852 = vadd.f32 0.0, %v851
        %v853 = vpop.f32.mrb[0].mxu0
        %v854 = vadd.f32 0.0, %v853
        %v855 = vpop.f32.mrb[0].mxu0
        %v856 = vadd.f32 0.0, %v855
        %v857 = vpop.f32.mrb[0].mxu0
        %v858 = vadd.f32 0.0, %v857
        %859 = vdwg.mxu0
        %v860 = vadd.f32 %v693, %v852
        %v861 = vadd.f32 %v695, %v854
        %v862 = vadd.f32 %v697, %v856
        %v863 = vadd.f32 %v699, %v858
        %v864 = vld [vmem:[#allocation5] sm:$0xff]
        %v865 = vld [vmem:[#allocation5 + $0x8] sm:$0xff]
        %v866 = vld [vmem:[#allocation5 + $0x10] sm:$0xff]
        %v867 = vld [vmem:[#allocation5 + $0x18] sm:$0xff]
        %v868 = vld [vmem:[#allocation5 + $0x20] sm:$0xff]
        %v869 = vld [vmem:[#allocation5 + $0x28] sm:$0xff]
        %v870 = vld [vmem:[#allocation5 + $0x30] sm:$0xff]
        %v871 = vld [vmem:[#allocation5 + $0x38] sm:$0xff]
        %v872 = vld [vmem:[#allocation5 + $0x40] sm:$0xff]
        %v873 = vld [vmem:[#allocation5 + $0x48] sm:$0xff]
        %v874 = vld [vmem:[#allocation5 + $0x50] sm:$0xff]
        %v875 = vld [vmem:[#allocation5 + $0x58] sm:$0xff]
        %v876 = vld [vmem:[#allocation5 + $0x60] sm:$0xff]
        %v877 = vld [vmem:[#allocation5 + $0x68] sm:$0xff]
        %v878 = vld [vmem:[#allocation5 + $0x70] sm:$0xff]
        %v879 = vld [vmem:[#allocation5 + $0x78] sm:$0xff]
        %v896 = vunpack.c.l.b16 %v864
        %v897 = vunpack.c.h.b16 %v864
        %v898 = vunpack.c.l.b16 %v865
        %v899 = vunpack.c.h.b16 %v865
        %v900 = vunpack.c.l.b16 %v866
        %v901 = vunpack.c.h.b16 %v866
        %v902 = vunpack.c.l.b16 %v867
        %v903 = vunpack.c.h.b16 %v867
        %v904 = vunpack.c.l.b16 %v868
        %v905 = vunpack.c.h.b16 %v868
        %v906 = vunpack.c.l.b16 %v869
        %v907 = vunpack.c.h.b16 %v869
        %v908 = vunpack.c.l.b16 %v870
        %v909 = vunpack.c.h.b16 %v870
        %v910 = vunpack.c.l.b16 %v871
        %v911 = vunpack.c.h.b16 %v871
        %v912 = vunpack.c.l.b16 %v872
        %v913 = vunpack.c.h.b16 %v872
        %v914 = vunpack.c.l.b16 %v873
        %v915 = vunpack.c.h.b16 %v873
        %v916 = vunpack.c.l.b16 %v874
        %v917 = vunpack.c.h.b16 %v874
        %v918 = vunpack.c.l.b16 %v875
        %v919 = vunpack.c.h.b16 %v875
        %v920 = vunpack.c.l.b16 %v876
        %v921 = vunpack.c.h.b16 %v876
        %v922 = vunpack.c.l.b16 %v877
        %v923 = vunpack.c.h.b16 %v877
        %v924 = vunpack.c.l.b16 %v878
        %v925 = vunpack.c.h.b16 %v878
        %v926 = vunpack.c.l.b16 %v879
        %v927 = vunpack.c.h.b16 %v879
        %v928 = vpack.c.b16 %v898, %v896
        %v929 = vpack.c.b16 %v899, %v897
        %v930 = vpack.c.b16 %v902, %v900
        %v931 = vpack.c.b16 %v903, %v901
        %v932 = vpack.c.b16 %v906, %v904
        %v933 = vpack.c.b16 %v907, %v905
        %v934 = vpack.c.b16 %v910, %v908
        %v935 = vpack.c.b16 %v911, %v909
        %v936 = vpack.c.b16 %v914, %v912
        %v937 = vpack.c.b16 %v915, %v913
        %v938 = vpack.c.b16 %v918, %v916
        %v939 = vpack.c.b16 %v919, %v917
        %v940 = vpack.c.b16 %v922, %v920
        %v941 = vpack.c.b16 %v923, %v921
        %v942 = vpack.c.b16 %v926, %v924
        %v943 = vpack.c.b16 %v927, %v925
        %960 = vmatprep.subr.bf16.mxu0 %v929
        %961 = vmatpush1.bf16.msra.mxu0 %v928
        %962 = vmatprep.subr.bf16.mxu0 %v931
        %963 = vmatpush1.bf16.msra.mxu0 %v930
        %964 = vmatprep.subr.bf16.mxu0 %v933
        %965 = vmatpush1.bf16.msra.mxu0 %v932
        %966 = vmatprep.subr.bf16.mxu0 %v935
        %967 = vmatpush1.bf16.msra.mxu0 %v934
        %968 = vmatprep.subr.bf16.mxu0 %v937
        %969 = vmatpush1.bf16.msra.mxu0 %v936
        %970 = vmatprep.subr.bf16.mxu0 %v939
        %971 = vmatpush1.bf16.msra.mxu0 %v938
        %972 = vmatprep.subr.bf16.mxu0 %v941
        %973 = vmatpush1.bf16.msra.mxu0 %v940
        %974 = vmatprep.subr.bf16.mxu0 %v943
        %975 = vmatpush1.bf16.msra.mxu0 %v942
        %976 = vmatprep.subr.bf16.mxu0 0
        %977 = vmatpush1.bf16.msra.mxu0 0
        %978 = vmatprep.subr.bf16.mxu0 0
        %979 = vmatpush1.bf16.msra.mxu0 0
        %980 = vmatprep.subr.bf16.mxu0 0
        %981 = vmatpush1.bf16.msra.mxu0 0
        %982 = vmatprep.subr.bf16.mxu0 0
        %983 = vmatpush1.bf16.msra.mxu0 0
        %984 = vmatprep.subr.bf16.mxu0 0
        %985 = vmatpush1.bf16.msra.mxu0 0
        %986 = vmatprep.subr.bf16.mxu0 0
        %987 = vmatpush1.bf16.msra.mxu0 0
        %988 = vmatprep.subr.bf16.mxu0 0
        %989 = vmatpush1.bf16.msra.mxu0 0
        %990 = vmatprep.subr.bf16.mxu0 0
        %991 = vmatpush1.bf16.msra.mxu0 0
        %992 = vmatprep.mubr.bf16.mxu0 0
        %993 = vmatmul.mubr.bf16.gmra.mrb[0].mxu0 %v719
        %v994 = vpop.f32.mrb[0].mxu0
        %v995 = vadd.f32 0.0, %v994
        %v996 = vpop.f32.mrb[0].mxu0
        %v997 = vadd.f32 0.0, %v996
        %v998 = vpop.f32.mrb[0].mxu0
        %v999 = vadd.f32 0.0, %v998
        %v1000 = vpop.f32.mrb[0].mxu0
        %v1001 = vadd.f32 0.0, %v1000
        %1002 = vdwg.mxu0
        %v1019 = vunpack.c.l.b16 %v398
        %v1020 = vunpack.c.h.b16 %v398
        %v1021 = vunpack.c.l.b16 %v399
        %v1022 = vunpack.c.h.b16 %v399
        %v1023 = vunpack.c.l.b16 %v400
        %v1024 = vunpack.c.h.b16 %v400
        %v1025 = vunpack.c.l.b16 %v401
        %v1026 = vunpack.c.h.b16 %v401
        %v1027 = vunpack.c.l.b16 %v402
        %v1028 = vunpack.c.h.b16 %v402
        %v1029 = vunpack.c.l.b16 %v403
        %v1030 = vunpack.c.h.b16 %v403
        %v1031 = vunpack.c.l.b16 %v404
        %v1032 = vunpack.c.h.b16 %v404
        %v1033 = vunpack.c.l.b16 %v405
        %v1034 = vunpack.c.h.b16 %v405
        %v1035 = vunpack.c.l.b16 %v406
        %v1036 = vunpack.c.h.b16 %v406
        %v1037 = vunpack.c.l.b16 %v407
        %v1038 = vunpack.c.h.b16 %v407
        %v1039 = vunpack.c.l.b16 %v408
        %v1040 = vunpack.c.h.b16 %v408
        %v1041 = vunpack.c.l.b16 %v409
        %v1042 = vunpack.c.h.b16 %v409
        %v1043 = vunpack.c.l.b16 %v410
        %v1044 = vunpack.c.h.b16 %v410
        %v1045 = vunpack.c.l.b16 %v411
        %v1046 = vunpack.c.h.b16 %v411
        %v1047 = vunpack.c.l.b16 %v412
        %v1048 = vunpack.c.h.b16 %v412
        %v1049 = vunpack.c.l.b16 %v413
        %v1050 = vunpack.c.h.b16 %v413
        %v1051 = vpack.c.b16 %v1021, %v1019
        %v1052 = vpack.c.b16 %v1022, %v1020
        %v1053 = vpack.c.b16 %v1025, %v1023
        %v1054 = vpack.c.b16 %v1026, %v1024
        %v1055 = vpack.c.b16 %v1029, %v1027
        %v1056 = vpack.c.b16 %v1030, %v1028
        %v1057 = vpack.c.b16 %v1033, %v1031
        %v1058 = vpack.c.b16 %v1034, %v1032
        %v1059 = vpack.c.b16 %v1037, %v1035
        %v1060 = vpack.c.b16 %v1038, %v1036
        %v1061 = vpack.c.b16 %v1041, %v1039
        %v1062 = vpack.c.b16 %v1042, %v1040
        %v1063 = vpack.c.b16 %v1045, %v1043
        %v1064 = vpack.c.b16 %v1046, %v1044
        %v1065 = vpack.c.b16 %v1049, %v1047
        %v1066 = vpack.c.b16 %v1050, %v1048
        %1083 = vmatprep.subr.bf16.mxu0 %v1052
        %1084 = vmatpush1.bf16.msra.mxu0 %v1051
        %1085 = vmatprep.subr.bf16.mxu0 %v1054
        %1086 = vmatpush1.bf16.msra.mxu0 %v1053
        %1087 = vmatprep.subr.bf16.mxu0 %v1056
        %1088 = vmatpush1.bf16.msra.mxu0 %v1055
        %1089 = vmatprep.subr.bf16.mxu0 %v1058
        %1090 = vmatpush1.bf16.msra.mxu0 %v1057
        %1091 = vmatprep.subr.bf16.mxu0 %v1060
        %1092 = vmatpush1.bf16.msra.mxu0 %v1059
        %1093 = vmatprep.subr.bf16.mxu0 %v1062
        %1094 = vmatpush1.bf16.msra.mxu0 %v1061
        %1095 = vmatprep.subr.bf16.mxu0 %v1064
        %1096 = vmatpush1.bf16.msra.mxu0 %v1063
        %1097 = vmatprep.subr.bf16.mxu0 %v1066
        %1098 = vmatpush1.bf16.msra.mxu0 %v1065
        %1099 = vmatprep.subr.bf16.mxu0 0
        %1100 = vmatpush1.bf16.msra.mxu0 0
        %1101 = vmatprep.subr.bf16.mxu0 0
        %1102 = vmatpush1.bf16.msra.mxu0 0
        %1103 = vmatprep.subr.bf16.mxu0 0
        %1104 = vmatpush1.bf16.msra.mxu0 0
        %1105 = vmatprep.subr.bf16.mxu0 0
        %1106 = vmatpush1.bf16.msra.mxu0 0
        %1107 = vmatprep.subr.bf16.mxu0 0
        %1108 = vmatpush1.bf16.msra.mxu0 0
        %1109 = vmatprep.subr.bf16.mxu0 0
        %1110 = vmatpush1.bf16.msra.mxu0 0
        %1111 = vmatprep.subr.bf16.mxu0 0
        %1112 = vmatpush1.bf16.msra.mxu0 0
        %1113 = vmatprep.subr.bf16.mxu0 0
        %1114 = vmatpush1.bf16.msra.mxu0 0
        %1115 = vmatprep.mubr.bf16.mxu0 0
        %1116 = vmatmul.mubr.bf16.gmra.mrb[0].mxu0 %v576
        %v1117 = vpop.f32.mrb[0].mxu0
        %v1118 = vadd.f32 %v995, %v1117
        %v1119 = vpop.f32.mrb[0].mxu0
        %v1120 = vadd.f32 %v997, %v1119
        %v1121 = vpop.f32.mrb[0].mxu0
        %v1122 = vadd.f32 %v999, %v1121
        %v1123 = vpop.f32.mrb[0].mxu0
        %v1124 = vadd.f32 %v1001, %v1123
        %1125 = vdwg.mxu0
        %v1126 = vrot.slane %v375, 1
        %v1127 = vrot.slane %v376, 1
        %vm1128 = vcmp.lt.s32.totalorder %v378, 7
        %v1129 = vsel %vm1128, %v1126, %v1127
        %v1130 = vsel %vm1128, %v1127, %v1126
        %v1131 = vpack.c.bf16 %v1130, %v1129
        %v1132 = vadd.s32 %v378, 1
        %v1133 = vadd.s32 %v379, 1
        %vm1134 = vcmp.lt.s32.totalorder %v1132, 16
        %vm1135 = vcmp.lt.s32.totalorder %v1133, 16
        %vm1136 = vmpackc.low %vm1134, %vm1134
        %vm1137 = vmpackc.low %vm1135, %vm1135
        %v1138 = vsel %vm1136, 65537, 0
        %v1139 = vsel %vm1137, 65537, 0
        %v1140 = vunpack.c.l.b16 %v1138
        %v1141 = vunpack.c.l.b16 %v1139
        %v1142 = vpack.c.b16 %v1141, %v1140
        %vm1143 = vcmp.ne.s16.totalorder %v1142, 0
        %v1144 = vsel %vm1143, %v1131, 0
        %s1145 = scalar_lea.vmem [#allocation8], 384
        %v1146 = vld [vmem:[%s1145] sm:$0xff]
        %v1147 = vld [vmem:[%s1145 + $0x8] sm:$0xff]
        %v1148 = vld [vmem:[%s1145 + $0x10] sm:$0xff]
        %v1149 = vld [vmem:[%s1145 + $0x18] sm:$0xff]
        %v1150 = vld [vmem:[%s1145 + $0x20] sm:$0xff]
        %v1151 = vld [vmem:[%s1145 + $0x28] sm:$0xff]
        %v1152 = vld [vmem:[%s1145 + $0x30] sm:$0xff]
        %v1153 = vld [vmem:[%s1145 + $0x38] sm:$0xff]
        %v1154 = vld [vmem:[%s1145 + $0x40] sm:$0xff]
        %v1155 = vld [vmem:[%s1145 + $0x48] sm:$0xff]
        %v1156 = vld [vmem:[%s1145 + $0x50] sm:$0xff]
        %v1157 = vld [vmem:[%s1145 + $0x58] sm:$0xff]
        %v1158 = vld [vmem:[%s1145 + $0x60] sm:$0xff]
        %v1159 = vld [vmem:[%s1145 + $0x68] sm:$0xff]
        %v1160 = vld [vmem:[%s1145 + $0x70] sm:$0xff]
        %v1161 = vld [vmem:[%s1145 + $0x78] sm:$0xff]
        %v1178 = vunpack.c.l.b16 %v1146
        %v1179 = vunpack.c.h.b16 %v1146
        %v1180 = vunpack.c.l.b16 %v1147
        %v1181 = vunpack.c.h.b16 %v1147
        %v1182 = vunpack.c.l.b16 %v1148
        %v1183 = vunpack.c.h.b16 %v1148
        %v1184 = vunpack.c.l.b16 %v1149
        %v1185 = vunpack.c.h.b16 %v1149
        %v1186 = vunpack.c.l.b16 %v1150
        %v1187 = vunpack.c.h.b16 %v1150
        %v1188 = vunpack.c.l.b16 %v1151
        %v1189 = vunpack.c.h.b16 %v1151
        %v1190 = vunpack.c.l.b16 %v1152
        %v1191 = vunpack.c.h.b16 %v1152
        %v1192 = vunpack.c.l.b16 %v1153
        %v1193 = vunpack.c.h.b16 %v1153
        %v1194 = vunpack.c.l.b16 %v1154
        %v1195 = vunpack.c.h.b16 %v1154
        %v1196 = vunpack.c.l.b16 %v1155
        %v1197 = vunpack.c.h.b16 %v1155
        %v1198 = vunpack.c.l.b16 %v1156
        %v1199 = vunpack.c.h.b16 %v1156
        %v1200 = vunpack.c.l.b16 %v1157
        %v1201 = vunpack.c.h.b16 %v1157
        %v1202 = vunpack.c.l.b16 %v1158
        %v1203 = vunpack.c.h.b16 %v1158
        %v1204 = vunpack.c.l.b16 %v1159
        %v1205 = vunpack.c.h.b16 %v1159
        %v1206 = vunpack.c.l.b16 %v1160
        %v1207 = vunpack.c.h.b16 %v1160
        %v1208 = vunpack.c.l.b16 %v1161
        %v1209 = vunpack.c.h.b16 %v1161
        %v1210 = vpack.c.b16 %v1180, %v1178
        %v1211 = vpack.c.b16 %v1181, %v1179
        %v1212 = vpack.c.b16 %v1184, %v1182
        %v1213 = vpack.c.b16 %v1185, %v1183
        %v1214 = vpack.c.b16 %v1188, %v1186
        %v1215 = vpack.c.b16 %v1189, %v1187
        %v1216 = vpack.c.b16 %v1192, %v1190
        %v1217 = vpack.c.b16 %v1193, %v1191
        %v1218 = vpack.c.b16 %v1196, %v1194
        %v1219 = vpack.c.b16 %v1197, %v1195
        %v1220 = vpack.c.b16 %v1200, %v1198
        %v1221 = vpack.c.b16 %v1201, %v1199
        %v1222 = vpack.c.b16 %v1204, %v1202
        %v1223 = vpack.c.b16 %v1205, %v1203
        %v1224 = vpack.c.b16 %v1208, %v1206
        %v1225 = vpack.c.b16 %v1209, %v1207
        %1242 = vmatprep.subr.bf16.mxu0 %v1211
        %1243 = vmatpush1.bf16.msra.mxu0 %v1210
        %1244 = vmatprep.subr.bf16.mxu0 %v1213
        %1245 = vmatpush1.bf16.msra.mxu0 %v1212
        %1246 = vmatprep.subr.bf16.mxu0 %v1215
        %1247 = vmatpush1.bf16.msra.mxu0 %v1214
        %1248 = vmatprep.subr.bf16.mxu0 %v1217
        %1249 = vmatpush1.bf16.msra.mxu0 %v1216
        %1250 = vmatprep.subr.bf16.mxu0 %v1219
        %1251 = vmatpush1.bf16.msra.mxu0 %v1218
        %1252 = vmatprep.subr.bf16.mxu0 %v1221
        %1253 = vmatpush1.bf16.msra.mxu0 %v1220
        %1254 = vmatprep.subr.bf16.mxu0 %v1223
        %1255 = vmatpush1.bf16.msra.mxu0 %v1222
        %1256 = vmatprep.subr.bf16.mxu0 %v1225
        %1257 = vmatpush1.bf16.msra.mxu0 %v1224
        %1258 = vmatprep.subr.bf16.mxu0 0
        %1259 = vmatpush1.bf16.msra.mxu0 0
        %1260 = vmatprep.subr.bf16.mxu0 0
        %1261 = vmatpush1.bf16.msra.mxu0 0
        %1262 = vmatprep.subr.bf16.mxu0 0
        %1263 = vmatpush1.bf16.msra.mxu0 0
        %1264 = vmatprep.subr.bf16.mxu0 0
        %1265 = vmatpush1.bf16.msra.mxu0 0
        %1266 = vmatprep.subr.bf16.mxu0 0
        %1267 = vmatpush1.bf16.msra.mxu0 0
        %1268 = vmatprep.subr.bf16.mxu0 0
        %1269 = vmatpush1.bf16.msra.mxu0 0
        %1270 = vmatprep.subr.bf16.mxu0 0
        %1271 = vmatpush1.bf16.msra.mxu0 0
        %1272 = vmatprep.subr.bf16.mxu0 0
        %1273 = vmatpush1.bf16.msra.mxu0 0
        %1274 = vmatprep.mubr.bf16.mxu0 0
        %1275 = vmatmul.mubr.bf16.gmra.mrb[0].mxu0 %v1144
        %v1276 = vpop.f32.mrb[0].mxu0
        %v1277 = vadd.f32 0.0, %v1276
        %v1278 = vpop.f32.mrb[0].mxu0
        %v1279 = vadd.f32 0.0, %v1278
        %v1280 = vpop.f32.mrb[0].mxu0
        %v1281 = vadd.f32 0.0, %v1280
        %v1282 = vpop.f32.mrb[0].mxu0
        %v1283 = vadd.f32 0.0, %v1282
        %1284 = vdwg.mxu0
        %v1285 = vadd.f32 %v860, %v1277
        %v1286 = vadd.f32 %v861, %v1279
        %v1287 = vadd.f32 %v862, %v1281
        %v1288 = vadd.f32 %v863, %v1283
        %s1289 = scalar_lea.vmem [#allocation5], 256
        %v1290 = vld [vmem:[%s1289] sm:$0xff]
        %v1291 = vld [vmem:[%s1289 + $0x8] sm:$0xff]
        %v1292 = vld [vmem:[%s1289 + $0x10] sm:$0xff]
        %v1293 = vld [vmem:[%s1289 + $0x18] sm:$0xff]
        %v1294 = vld [vmem:[%s1289 + $0x20] sm:$0xff]
        %v1295 = vld [vmem:[%s1289 + $0x28] sm:$0xff]
        %v1296 = vld [vmem:[%s1289 + $0x30] sm:$0xff]
        %v1297 = vld [vmem:[%s1289 + $0x38] sm:$0xff]
        %v1298 = vld [vmem:[%s1289 + $0x40] sm:$0xff]
        %v1299 = vld [vmem:[%s1289 + $0x48] sm:$0xff]
        %v1300 = vld [vmem:[%s1289 + $0x50] sm:$0xff]
        %v1301 = vld [vmem:[%s1289 + $0x58] sm:$0xff]
        %v1302 = vld [vmem:[%s1289 + $0x60] sm:$0xff]
        %v1303 = vld [vmem:[%s1289 + $0x68] sm:$0xff]
        %v1304 = vld [vmem:[%s1289 + $0x70] sm:$0xff]
        %v1305 = vld [vmem:[%s1289 + $0x78] sm:$0xff]
        %v1322 = vunpack.c.l.b16 %v1290
        %v1323 = vunpack.c.h.b16 %v1290
        %v1324 = vunpack.c.l.b16 %v1291
        %v1325 = vunpack.c.h.b16 %v1291
        %v1326 = vunpack.c.l.b16 %v1292
        %v1327 = vunpack.c.h.b16 %v1292
        %v1328 = vunpack.c.l.b16 %v1293
        %v1329 = vunpack.c.h.b16 %v1293
        %v1330 = vunpack.c.l.b16 %v1294
        %v1331 = vunpack.c.h.b16 %v1294
        %v1332 = vunpack.c.l.b16 %v1295
        %v1333 = vunpack.c.h.b16 %v1295
        %v1334 = vunpack.c.l.b16 %v1296
        %v1335 = vunpack.c.h.b16 %v1296
        %v1336 = vunpack.c.l.b16 %v1297
        %v1337 = vunpack.c.h.b16 %v1297
        %v1338 = vunpack.c.l.b16 %v1298
        %v1339 = vunpack.c.h.b16 %v1298
        %v1340 = vunpack.c.l.b16 %v1299
        %v1341 = vunpack.c.h.b16 %v1299
        %v1342 = vunpack.c.l.b16 %v1300
        %v1343 = vunpack.c.h.b16 %v1300
        %v1344 = vunpack.c.l.b16 %v1301
        %v1345 = vunpack.c.h.b16 %v1301
        %v1346 = vunpack.c.l.b16 %v1302
        %v1347 = vunpack.c.h.b16 %v1302
        %v1348 = vunpack.c.l.b16 %v1303
        %v1349 = vunpack.c.h.b16 %v1303
        %v1350 = vunpack.c.l.b16 %v1304
        %v1351 = vunpack.c.h.b16 %v1304
        %v1352 = vunpack.c.l.b16 %v1305
        %v1353 = vunpack.c.h.b16 %v1305
        %v1354 = vpack.c.b16 %v1324, %v1322
        %v1355 = vpack.c.b16 %v1325, %v1323
        %v1356 = vpack.c.b16 %v1328, %v1326
        %v1357 = vpack.c.b16 %v1329, %v1327
        %v1358 = vpack.c.b16 %v1332, %v1330
        %v1359 = vpack.c.b16 %v1333, %v1331
        %v1360 = vpack.c.b16 %v1336, %v1334
        %v1361 = vpack.c.b16 %v1337, %v1335
        %v1362 = vpack.c.b16 %v1340, %v1338
        %v1363 = vpack.c.b16 %v1341, %v1339
        %v1364 = vpack.c.b16 %v1344, %v1342
        %v1365 = vpack.c.b16 %v1345, %v1343
        %v1366 = vpack.c.b16 %v1348, %v1346
        %v1367 = vpack.c.b16 %v1349, %v1347
        %v1368 = vpack.c.b16 %v1352, %v1350
        %v1369 = vpack.c.b16 %v1353, %v1351
        %1386 = vmatprep.subr.bf16.mxu0 %v1355
        %1387 = vmatpush1.bf16.msra.mxu0 %v1354
        %1388 = vmatprep.subr.bf16.mxu0 %v1357
        %1389 = vmatpush1.bf16.msra.mxu0 %v1356
        %1390 = vmatprep.subr.bf16.mxu0 %v1359
        %1391 = vmatpush1.bf16.msra.mxu0 %v1358
        %1392 = vmatprep.subr.bf16.mxu0 %v1361
        %1393 = vmatpush1.bf16.msra.mxu0 %v1360
        %1394 = vmatprep.subr.bf16.mxu0 %v1363
        %1395 = vmatpush1.bf16.msra.mxu0 %v1362
        %1396 = vmatprep.subr.bf16.mxu0 %v1365
        %1397 = vmatpush1.bf16.msra.mxu0 %v1364
        %1398 = vmatprep.subr.bf16.mxu0 %v1367
        %1399 = vmatpush1.bf16.msra.mxu0 %v1366
        %1400 = vmatprep.subr.bf16.mxu0 %v1369
        %1401 = vmatpush1.bf16.msra.mxu0 %v1368
        %1402 = vmatprep.subr.bf16.mxu0 0
        %1403 = vmatpush1.bf16.msra.mxu0 0
        %1404 = vmatprep.subr.bf16.mxu0 0
        %1405 = vmatpush1.bf16.msra.mxu0 0
        %1406 = vmatprep.subr.bf16.mxu0 0
        %1407 = vmatpush1.bf16.msra.mxu0 0
        %1408 = vmatprep.subr.bf16.mxu0 0
        %1409 = vmatpush1.bf16.msra.mxu0 0
        %1410 = vmatprep.subr.bf16.mxu0 0
        %1411 = vmatpush1.bf16.msra.mxu0 0
        %1412 = vmatprep.subr.bf16.mxu0 0
        %1413 = vmatpush1.bf16.msra.mxu0 0
        %1414 = vmatprep.subr.bf16.mxu0 0
        %1415 = vmatpush1.bf16.msra.mxu0 0
        %1416 = vmatprep.subr.bf16.mxu0 0
        %1417 = vmatpush1.bf16.msra.mxu0 0
        %1418 = vmatprep.mubr.bf16.mxu0 0
        %1419 = vmatmul.mubr.bf16.gmra.mrb[0].mxu0 %v1144
        %v1420 = vpop.f32.mrb[0].mxu0
        %v1421 = vadd.f32 0.0, %v1420
        %v1422 = vpop.f32.mrb[0].mxu0
        %v1423 = vadd.f32 0.0, %v1422
        %v1424 = vpop.f32.mrb[0].mxu0
        %v1425 = vadd.f32 0.0, %v1424
        %v1426 = vpop.f32.mrb[0].mxu0
        %v1427 = vadd.f32 0.0, %v1426
        %1428 = vdwg.mxu0
        %v1429 = vadd.f32 %v1118, %v1421
        %v1430 = vadd.f32 %v1120, %v1423
        %v1431 = vadd.f32 %v1122, %v1425
        %v1432 = vadd.f32 %v1124, %v1427
        %v1433 = vrot.slane %v375, 2
        %v1434 = vrot.slane %v376, 2
        %vm1435 = vcmp.lt.s32.totalorder %v378, 6
        %v1436 = vsel %vm1435, %v1433, %v1434
        %v1437 = vsel %vm1435, %v1434, %v1433
        %v1438 = vpack.c.bf16 %v1437, %v1436
        %v1439 = vadd.s32 %v378, 2
        %v1440 = vadd.s32 %v379, 2
        %vm1441 = vcmp.lt.s32.totalorder %v1439, 16
        %vm1442 = vcmp.lt.s32.totalorder %v1440, 16
        %vm1443 = vmpackc.low %vm1441, %vm1441
        %vm1444 = vmpackc.low %vm1442, %vm1442
        %v1445 = vsel %vm1443, 65537, 0
        %v1446 = vsel %vm1444, 65537, 0
        %v1447 = vunpack.c.l.b16 %v1445
        %v1448 = vunpack.c.l.b16 %v1446
        %v1449 = vpack.c.b16 %v1448, %v1447
        %vm1450 = vcmp.ne.s16.totalorder %v1449, 0
        %v1451 = vsel %vm1450, %v1438, 0
        %s1452 = scalar_lea.vmem [#allocation8], 512
        %v1453 = vld [vmem:[%s1452] sm:$0xff]
        %v1454 = vld [vmem:[%s1452 + $0x8] sm:$0xff]
        %v1455 = vld [vmem:[%s1452 + $0x10] sm:$0xff]
        %v1456 = vld [vmem:[%s1452 + $0x18] sm:$0xff]
        %v1457 = vld [vmem:[%s1452 + $0x20] sm:$0xff]
        %v1458 = vld [vmem:[%s1452 + $0x28] sm:$0xff]
        %v1459 = vld [vmem:[%s1452 + $0x30] sm:$0xff]
        %v1460 = vld [vmem:[%s1452 + $0x38] sm:$0xff]
        %v1461 = vld [vmem:[%s1452 + $0x40] sm:$0xff]
        %v1462 = vld [vmem:[%s1452 + $0x48] sm:$0xff]
        %v1463 = vld [vmem:[%s1452 + $0x50] sm:$0xff]
        %v1464 = vld [vmem:[%s1452 + $0x58] sm:$0xff]
        %v1465 = vld [vmem:[%s1452 + $0x60] sm:$0xff]
        %v1466 = vld [vmem:[%s1452 + $0x68] sm:$0xff]
        %v1467 = vld [vmem:[%s1452 + $0x70] sm:$0xff]
        %v1468 = vld [vmem:[%s1452 + $0x78] sm:$0xff]
        %v1485 = vunpack.c.l.b16 %v1453
        %v1486 = vunpack.c.h.b16 %v1453
        %v1487 = vunpack.c.l.b16 %v1454
        %v1488 = vunpack.c.h.b16 %v1454
        %v1489 = vunpack.c.l.b16 %v1455
        %v1490 = vunpack.c.h.b16 %v1455
        %v1491 = vunpack.c.l.b16 %v1456
        %v1492 = vunpack.c.h.b16 %v1456
        %v1493 = vunpack.c.l.b16 %v1457
        %v1494 = vunpack.c.h.b16 %v1457
        %v1495 = vunpack.c.l.b16 %v1458
        %v1496 = vunpack.c.h.b16 %v1458
        %v1497 = vunpack.c.l.b16 %v1459
        %v1498 = vunpack.c.h.b16 %v1459
        %v1499 = vunpack.c.l.b16 %v1460
        %v1500 = vunpack.c.h.b16 %v1460
        %v1501 = vunpack.c.l.b16 %v1461
        %v1502 = vunpack.c.h.b16 %v1461
        %v1503 = vunpack.c.l.b16 %v1462
        %v1504 = vunpack.c.h.b16 %v1462
        %v1505 = vunpack.c.l.b16 %v1463
        %v1506 = vunpack.c.h.b16 %v1463
        %v1507 = vunpack.c.l.b16 %v1464
        %v1508 = vunpack.c.h.b16 %v1464
        %v1509 = vunpack.c.l.b16 %v1465
        %v1510 = vunpack.c.h.b16 %v1465
        %v1511 = vunpack.c.l.b16 %v1466
        %v1512 = vunpack.c.h.b16 %v1466
        %v1513 = vunpack.c.l.b16 %v1467
        %v1514 = vunpack.c.h.b16 %v1467
        %v1515 = vunpack.c.l.b16 %v1468
        %v1516 = vunpack.c.h.b16 %v1468
        %v1517 = vpack.c.b16 %v1487, %v1485
        %v1518 = vpack.c.b16 %v1488, %v1486
        %v1519 = vpack.c.b16 %v1491, %v1489
        %v1520 = vpack.c.b16 %v1492, %v1490
        %v1521 = vpack.c.b16 %v1495, %v1493
        %v1522 = vpack.c.b16 %v1496, %v1494
        %v1523 = vpack.c.b16 %v1499, %v1497
        %v1524 = vpack.c.b16 %v1500, %v1498
        %v1525 = vpack.c.b16 %v1503, %v1501
        %v1526 = vpack.c.b16 %v1504, %v1502
        %v1527 = vpack.c.b16 %v1507, %v1505
        %v1528 = vpack.c.b16 %v1508, %v1506
        %v1529 = vpack.c.b16 %v1511, %v1509
        %v1530 = vpack.c.b16 %v1512, %v1510
        %v1531 = vpack.c.b16 %v1515, %v1513
        %v1532 = vpack.c.b16 %v1516, %v1514
        %1549 = vmatprep.subr.bf16.mxu0 %v1518
        %1550 = vmatpush1.bf16.msra.mxu0 %v1517
        %1551 = vmatprep.subr.bf16.mxu0 %v1520
        %1552 = vmatpush1.bf16.msra.mxu0 %v1519
        %1553 = vmatprep.subr.bf16.mxu0 %v1522
        %1554 = vmatpush1.bf16.msra.mxu0 %v1521
        %1555 = vmatprep.subr.bf16.mxu0 %v1524
        %1556 = vmatpush1.bf16.msra.mxu0 %v1523
        %1557 = vmatprep.subr.bf16.mxu0 %v1526
        %1558 = vmatpush1.bf16.msra.mxu0 %v1525
        %1559 = vmatprep.subr.bf16.mxu0 %v1528
        %1560 = vmatpush1.bf16.msra.mxu0 %v1527
        %1561 = vmatprep.subr.bf16.mxu0 %v1530
        %1562 = vmatpush1.bf16.msra.mxu0 %v1529
        %1563 = vmatprep.subr.bf16.mxu0 %v1532
        %1564 = vmatpush1.bf16.msra.mxu0 %v1531
        %1565 = vmatprep.subr.bf16.mxu0 0
        %1566 = vmatpush1.bf16.msra.mxu0 0
        %1567 = vmatprep.subr.bf16.mxu0 0
        %1568 = vmatpush1.bf16.msra.mxu0 0
        %1569 = vmatprep.subr.bf16.mxu0 0
        %1570 = vmatpush1.bf16.msra.mxu0 0
        %1571 = vmatprep.subr.bf16.mxu0 0
        %1572 = vmatpush1.bf16.msra.mxu0 0
        %1573 = vmatprep.subr.bf16.mxu0 0
        %1574 = vmatpush1.bf16.msra.mxu0 0
        %1575 = vmatprep.subr.bf16.mxu0 0
        %1576 = vmatpush1.bf16.msra.mxu0 0
        %1577 = vmatprep.subr.bf16.mxu0 0
        %1578 = vmatpush1.bf16.msra.mxu0 0
        %1579 = vmatprep.subr.bf16.mxu0 0
        %1580 = vmatpush1.bf16.msra.mxu0 0
        %1581 = vmatprep.mubr.bf16.mxu0 0
        %1582 = vmatmul.mubr.bf16.gmra.mrb[0].mxu0 %v1451
        %v1583 = vpop.f32.mrb[0].mxu0
        %v1584 = vadd.f32 0.0, %v1583
        %v1585 = vpop.f32.mrb[0].mxu0
        %v1586 = vadd.f32 0.0, %v1585
        %v1587 = vpop.f32.mrb[0].mxu0
        %v1588 = vadd.f32 0.0, %v1587
        %v1589 = vpop.f32.mrb[0].mxu0
        %v1590 = vadd.f32 0.0, %v1589
        %1591 = vdwg.mxu0
        %v1592 = vadd.f32 %v1285, %v1584
        %v1593 = vadd.f32 %v1286, %v1586
        %v1594 = vadd.f32 %v1287, %v1588
        %v1595 = vadd.f32 %v1288, %v1590
        %v1596 = vld [vmem:[%s6] sm:$0x3]
        %v1598 = vlaneseq
        %v1599 = vshrl.u32 %v1598, 7
        %v1600 = vsub.s32 0, %v1599
        %v1601 = vrot.slane %v1596, %v1600
        %v1602 = vlaneseq
        %v1603 = vshrl.u32 %v1602, 7
        %v1604 = vsub.s32 1, %v1603
        %v1605 = vrot.slane %v1596, %v1604
        %v1608 = vadd.f32 %v1429, %v1601
        %v1609 = vadd.f32 %v1430, %v1605
        %v1610 = vadd.f32 %v1431, %v1601
        %v1611 = vadd.f32 %v1432, %v1605
        %v1612 = vmax.f32 %v1608, 0.0
        %v1613 = vmax.f32 %v1609, 0.0
        %v1614 = vmax.f32 %v1610, 0.0
        %v1615 = vmax.f32 %v1611, 0.0
        %v1616 = vpack.c.bf16 %v1614, %v1612
        %v1617 = vpack.c.bf16 %v1615, %v1613
        %v1618 = vld [vmem:[#allocation7] sm:$0xff]
        %v1619 = vld [vmem:[#allocation7 + $0x8] sm:$0xff]
        %v1620 = vld [vmem:[#allocation7 + $0x10] sm:$0xff]
        %v1621 = vld [vmem:[#allocation7 + $0x18] sm:$0xff]
        %v1622 = vld [vmem:[#allocation7 + $0x20] sm:$0xff]
        %v1623 = vld [vmem:[#allocation7 + $0x28] sm:$0xff]
        %v1624 = vld [vmem:[#allocation7 + $0x30] sm:$0xff]
        %v1625 = vld [vmem:[#allocation7 + $0x38] sm:$0xff]
        %v1626 = vld [vmem:[#allocation7 + $0x40] sm:$0xff]
        %v1627 = vld [vmem:[#allocation7 + $0x48] sm:$0xff]
        %v1628 = vld [vmem:[#allocation7 + $0x50] sm:$0xff]
        %v1629 = vld [vmem:[#allocation7 + $0x58] sm:$0xff]
        %v1630 = vld [vmem:[#allocation7 + $0x60] sm:$0xff]
        %v1631 = vld [vmem:[#allocation7 + $0x68] sm:$0xff]
        %v1632 = vld [vmem:[#allocation7 + $0x70] sm:$0xff]
        %v1633 = vld [vmem:[#allocation7 + $0x78] sm:$0xff]
        %v1634 = vld [vmem:[#allocation7 + $0x80] sm:$0xff]
        %v1635 = vld [vmem:[#allocation7 + $0x88] sm:$0xff]
        %v1636 = vld [vmem:[#allocation7 + $0x90] sm:$0xff]
        %v1637 = vld [vmem:[#allocation7 + $0x98] sm:$0xff]
        %v1638 = vld [vmem:[#allocation7 + $0xa0] sm:$0xff]
        %v1639 = vld [vmem:[#allocation7 + $0xa8] sm:$0xff]
        %v1640 = vld [vmem:[#allocation7 + $0xb0] sm:$0xff]
        %v1641 = vld [vmem:[#allocation7 + $0xb8] sm:$0xff]
        %v1642 = vld [vmem:[#allocation7 + $0xc0] sm:$0xff]
        %v1643 = vld [vmem:[#allocation7 + $0xc8] sm:$0xff]
        %v1644 = vld [vmem:[#allocation7 + $0xd0] sm:$0xff]
        %v1645 = vld [vmem:[#allocation7 + $0xd8] sm:$0xff]
        %v1646 = vld [vmem:[#allocation7 + $0xe0] sm:$0xff]
        %v1647 = vld [vmem:[#allocation7 + $0xe8] sm:$0xff]
        %v1648 = vld [vmem:[#allocation7 + $0xf0] sm:$0xff]
        %v1649 = vld [vmem:[#allocation7 + $0xf8] sm:$0xff]
        %s1650 = scalar_lea.vmem %s6, 2
        %v1651 = vld [vmem:[%s1650] sm:$0x3]
        %v1653 = vlaneseq
        %v1654 = vshrl.u32 %v1653, 7
        %v1655 = vsub.s32 0, %v1654
        %v1656 = vrot.slane %v1651, %v1655
        %v1657 = vlaneseq
        %v1658 = vshrl.u32 %v1657, 7
        %v1659 = vsub.s32 1, %v1658
        %v1660 = vrot.slane %v1651, %v1659
        %v1695 = vunpack.c.l.b16 %v1618
        %v1696 = vunpack.c.h.b16 %v1618
        %v1697 = vunpack.c.l.b16 %v1619
        %v1698 = vunpack.c.h.b16 %v1619
        %v1699 = vunpack.c.l.b16 %v1620
        %v1700 = vunpack.c.h.b16 %v1620
        %v1701 = vunpack.c.l.b16 %v1621
        %v1702 = vunpack.c.h.b16 %v1621
        %v1703 = vunpack.c.l.b16 %v1622
        %v1704 = vunpack.c.h.b16 %v1622
        %v1705 = vunpack.c.l.b16 %v1623
        %v1706 = vunpack.c.h.b16 %v1623
        %v1707 = vunpack.c.l.b16 %v1624
        %v1708 = vunpack.c.h.b16 %v1624
        %v1709 = vunpack.c.l.b16 %v1625
        %v1710 = vunpack.c.h.b16 %v1625
        %v1711 = vunpack.c.l.b16 %v1626
        %v1712 = vunpack.c.h.b16 %v1626
        %v1713 = vunpack.c.l.b16 %v1627
        %v1714 = vunpack.c.h.b16 %v1627
        %v1715 = vunpack.c.l.b16 %v1628
        %v1716 = vunpack.c.h.b16 %v1628
        %v1717 = vunpack.c.l.b16 %v1629
        %v1718 = vunpack.c.h.b16 %v1629
        %v1719 = vunpack.c.l.b16 %v1630
        %v1720 = vunpack.c.h.b16 %v1630
        %v1721 = vunpack.c.l.b16 %v1631
        %v1722 = vunpack.c.h.b16 %v1631
        %v1723 = vunpack.c.l.b16 %v1632
        %v1724 = vunpack.c.h.b16 %v1632
        %v1725 = vunpack.c.l.b16 %v1633
        %v1726 = vunpack.c.h.b16 %v1633
        %v1727 = vunpack.c.l.b16 %v1634
        %v1728 = vunpack.c.h.b16 %v1634
        %v1729 = vunpack.c.l.b16 %v1635
        %v1730 = vunpack.c.h.b16 %v1635
        %v1731 = vunpack.c.l.b16 %v1636
        %v1732 = vunpack.c.h.b16 %v1636
        %v1733 = vunpack.c.l.b16 %v1637
        %v1734 = vunpack.c.h.b16 %v1637
        %v1735 = vunpack.c.l.b16 %v1638
        %v1736 = vunpack.c.h.b16 %v1638
        %v1737 = vunpack.c.l.b16 %v1639
        %v1738 = vunpack.c.h.b16 %v1639
        %v1739 = vunpack.c.l.b16 %v1640
        %v1740 = vunpack.c.h.b16 %v1640
        %v1741 = vunpack.c.l.b16 %v1641
        %v1742 = vunpack.c.h.b16 %v1641
        %v1743 = vunpack.c.l.b16 %v1642
        %v1744 = vunpack.c.h.b16 %v1642
        %v1745 = vunpack.c.l.b16 %v1643
        %v1746 = vunpack.c.h.b16 %v1643
        %v1747 = vunpack.c.l.b16 %v1644
        %v1748 = vunpack.c.h.b16 %v1644
        %v1749 = vunpack.c.l.b16 %v1645
        %v1750 = vunpack.c.h.b16 %v1645
        %v1751 = vunpack.c.l.b16 %v1646
        %v1752 = vunpack.c.h.b16 %v1646
        %v1753 = vunpack.c.l.b16 %v1647
        %v1754 = vunpack.c.h.b16 %v1647
        %v1755 = vunpack.c.l.b16 %v1648
        %v1756 = vunpack.c.h.b16 %v1648
        %v1757 = vunpack.c.l.b16 %v1649
        %v1758 = vunpack.c.h.b16 %v1649
        %v1759 = vpack.c.b16 %v1697, %v1695
        %v1760 = vpack.c.b16 %v1698, %v1696
        %v1761 = vpack.c.b16 %v1701, %v1699
        %v1762 = vpack.c.b16 %v1702, %v1700
        %v1763 = vpack.c.b16 %v1705, %v1703
        %v1764 = vpack.c.b16 %v1706, %v1704
        %v1765 = vpack.c.b16 %v1709, %v1707
        %v1766 = vpack.c.b16 %v1710, %v1708
        %v1767 = vpack.c.b16 %v1713, %v1711
        %v1768 = vpack.c.b16 %v1714, %v1712
        %v1769 = vpack.c.b16 %v1717, %v1715
        %v1770 = vpack.c.b16 %v1718, %v1716
        %v1771 = vpack.c.b16 %v1721, %v1719
        %v1772 = vpack.c.b16 %v1722, %v1720
        %v1773 = vpack.c.b16 %v1725, %v1723
        %v1774 = vpack.c.b16 %v1726, %v1724
        %v1775 = vpack.c.b16 %v1729, %v1727
        %v1776 = vpack.c.b16 %v1730, %v1728
        %v1777 = vpack.c.b16 %v1733, %v1731
        %v1778 = vpack.c.b16 %v1734, %v1732
        %v1779 = vpack.c.b16 %v1737, %v1735
        %v1780 = vpack.c.b16 %v1738, %v1736
        %v1781 = vpack.c.b16 %v1741, %v1739
        %v1782 = vpack.c.b16 %v1742, %v1740
        %v1783 = vpack.c.b16 %v1745, %v1743
        %v1784 = vpack.c.b16 %v1746, %v1744
        %v1785 = vpack.c.b16 %v1749, %v1747
        %v1786 = vpack.c.b16 %v1750, %v1748
        %v1787 = vpack.c.b16 %v1753, %v1751
        %v1788 = vpack.c.b16 %v1754, %v1752
        %v1789 = vpack.c.b16 %v1757, %v1755
        %v1790 = vpack.c.b16 %v1758, %v1756
        %1823 = vmatprep.subr.bf16.mxu0 %v1760
        %1824 = vmatpush1.bf16.msra.mxu0 %v1759
        %1825 = vmatprep.subr.bf16.mxu0 %v1762
        %1826 = vmatpush1.bf16.msra.mxu0 %v1761
        %1827 = vmatprep.subr.bf16.mxu0 %v1764
        %1828 = vmatpush1.bf16.msra.mxu0 %v1763
        %1829 = vmatprep.subr.bf16.mxu0 %v1766
        %1830 = vmatpush1.bf16.msra.mxu0 %v1765
        %1831 = vmatprep.subr.bf16.mxu0 %v1768
        %1832 = vmatpush1.bf16.msra.mxu0 %v1767
        %1833 = vmatprep.subr.bf16.mxu0 %v1770
        %1834 = vmatpush1.bf16.msra.mxu0 %v1769
        %1835 = vmatprep.subr.bf16.mxu0 %v1772
        %1836 = vmatpush1.bf16.msra.mxu0 %v1771
        %1837 = vmatprep.subr.bf16.mxu0 %v1774
        %1838 = vmatpush1.bf16.msra.mxu0 %v1773
        %1839 = vmatprep.subr.bf16.mxu0 %v1776
        %1840 = vmatpush1.bf16.msra.mxu0 %v1775
        %1841 = vmatprep.subr.bf16.mxu0 %v1778
        %1842 = vmatpush1.bf16.msra.mxu0 %v1777
        %1843 = vmatprep.subr.bf16.mxu0 %v1780
        %1844 = vmatpush1.bf16.msra.mxu0 %v1779
        %1845 = vmatprep.subr.bf16.mxu0 %v1782
        %1846 = vmatpush1.bf16.msra.mxu0 %v1781
        %1847 = vmatprep.subr.bf16.mxu0 %v1784
        %1848 = vmatpush1.bf16.msra.mxu0 %v1783
        %1849 = vmatprep.subr.bf16.mxu0 %v1786
        %1850 = vmatpush1.bf16.msra.mxu0 %v1785
        %1851 = vmatprep.subr.bf16.mxu0 %v1788
        %1852 = vmatpush1.bf16.msra.mxu0 %v1787
        %1853 = vmatprep.subr.bf16.mxu0 %v1790
        %1854 = vmatpush1.bf16.msra.mxu0 %v1789
        %1855 = vmatprep.mubr.bf16.mxu0 %v1617
        %1856 = vmatmul.mubr.bf16.gmra.mrb[0].mxu0 %v1616
        %v1857 = vpop.f32.mrb[0].mxu0
        %v1858 = vadd.f32 %v1656, %v1857
        %v1859 = vpop.f32.mrb[0].mxu0
        %v1860 = vadd.f32 %v1660, %v1859
        %v1861 = vpop.f32.mrb[0].mxu0
        %v1862 = vadd.f32 %v1656, %v1861
        %v1863 = vpop.f32.mrb[0].mxu0
        %v1864 = vadd.f32 %v1660, %v1863
        %1865 = vdwg.mxu0
        %v1866 = vmax.f32 %v1858, 0.0
        %v1867 = vmax.f32 %v1860, 0.0
        %v1868 = vmax.f32 %v1862, 0.0
        %v1869 = vmax.f32 %v1864, 0.0
        %s1870 = scalar_lea.vmem %s6, 4
        %v1871 = vld [vmem:[%s1870] sm:$0x3]
        %v1873 = vlaneseq
        %v1874 = vshrl.u32 %v1873, 7
        %v1875 = vsub.s32 0, %v1874
        %v1876 = vrot.slane %v1871, %v1875
        %v1877 = vlaneseq
        %v1878 = vshrl.u32 %v1877, 7
        %v1879 = vsub.s32 1, %v1878
        %v1880 = vrot.slane %v1871, %v1879
        %v1883 = vadd.f32 %v1592, %v1876
        %v1884 = vadd.f32 %v1593, %v1880
        %v1885 = vadd.f32 %v1594, %v1876
        %v1886 = vadd.f32 %v1595, %v1880
        %v1887 = vmax.f32 %v1883, 0.0
        %v1888 = vmax.f32 %v1884, 0.0
        %v1889 = vmax.f32 %v1885, 0.0
        %v1890 = vmax.f32 %v1886, 0.0
        %v1891 = vpack.c.bf16 %v1889, %v1887
        %v1892 = vpack.c.bf16 %v1890, %v1888
        %v1893 = vld [vmem:[#allocation10] sm:$0xff]
        %v1894 = vld [vmem:[#allocation10 + $0x8] sm:$0xff]
        %v1895 = vld [vmem:[#allocation10 + $0x10] sm:$0xff]
        %v1896 = vld [vmem:[#allocation10 + $0x18] sm:$0xff]
        %v1897 = vld [vmem:[#allocation10 + $0x20] sm:$0xff]
        %v1898 = vld [vmem:[#allocation10 + $0x28] sm:$0xff]
        %v1899 = vld [vmem:[#allocation10 + $0x30] sm:$0xff]
        %v1900 = vld [vmem:[#allocation10 + $0x38] sm:$0xff]
        %v1901 = vld [vmem:[#allocation10 + $0x40] sm:$0xff]
        %v1902 = vld [vmem:[#allocation10 + $0x48] sm:$0xff]
        %v1903 = vld [vmem:[#allocation10 + $0x50] sm:$0xff]
        %v1904 = vld [vmem:[#allocation10 + $0x58] sm:$0xff]
        %v1905 = vld [vmem:[#allocation10 + $0x60] sm:$0xff]
        %v1906 = vld [vmem:[#allocation10 + $0x68] sm:$0xff]
        %v1907 = vld [vmem:[#allocation10 + $0x70] sm:$0xff]
        %v1908 = vld [vmem:[#allocation10 + $0x78] sm:$0xff]
        %v1909 = vld [vmem:[#allocation10 + $0x80] sm:$0xff]
        %v1910 = vld [vmem:[#allocation10 + $0x88] sm:$0xff]
        %v1911 = vld [vmem:[#allocation10 + $0x90] sm:$0xff]
        %v1912 = vld [vmem:[#allocation10 + $0x98] sm:$0xff]
        %v1913 = vld [vmem:[#allocation10 + $0xa0] sm:$0xff]
        %v1914 = vld [vmem:[#allocation10 + $0xa8] sm:$0xff]
        %v1915 = vld [vmem:[#allocation10 + $0xb0] sm:$0xff]
        %v1916 = vld [vmem:[#allocation10 + $0xb8] sm:$0xff]
        %v1917 = vld [vmem:[#allocation10 + $0xc0] sm:$0xff]
        %v1918 = vld [vmem:[#allocation10 + $0xc8] sm:$0xff]
        %v1919 = vld [vmem:[#allocation10 + $0xd0] sm:$0xff]
        %v1920 = vld [vmem:[#allocation10 + $0xd8] sm:$0xff]
        %v1921 = vld [vmem:[#allocation10 + $0xe0] sm:$0xff]
        %v1922 = vld [vmem:[#allocation10 + $0xe8] sm:$0xff]
        %v1923 = vld [vmem:[#allocation10 + $0xf0] sm:$0xff]
        %v1924 = vld [vmem:[#allocation10 + $0xf8] sm:$0xff]
        %s1925 = scalar_lea.vmem %s6, 6
        %v1926 = vld [vmem:[%s1925] sm:$0x3]
        %v1928 = vlaneseq
        %v1929 = vshrl.u32 %v1928, 7
        %v1930 = vsub.s32 0, %v1929
        %v1931 = vrot.slane %v1926, %v1930
        %v1932 = vlaneseq
        %v1933 = vshrl.u32 %v1932, 7
        %v1934 = vsub.s32 1, %v1933
        %v1935 = vrot.slane %v1926, %v1934
        %v1970 = vunpack.c.l.b16 %v1893
        %v1971 = vunpack.c.h.b16 %v1893
        %v1972 = vunpack.c.l.b16 %v1894
        %v1973 = vunpack.c.h.b16 %v1894
        %v1974 = vunpack.c.l.b16 %v1895
        %v1975 = vunpack.c.h.b16 %v1895
        %v1976 = vunpack.c.l.b16 %v1896
        %v1977 = vunpack.c.h.b16 %v1896
        %v1978 = vunpack.c.l.b16 %v1897
        %v1979 = vunpack.c.h.b16 %v1897
        %v1980 = vunpack.c.l.b16 %v1898
        %v1981 = vunpack.c.h.b16 %v1898
        %v1982 = vunpack.c.l.b16 %v1899
        %v1983 = vunpack.c.h.b16 %v1899
        %v1984 = vunpack.c.l.b16 %v1900
        %v1985 = vunpack.c.h.b16 %v1900
        %v1986 = vunpack.c.l.b16 %v1901
        %v1987 = vunpack.c.h.b16 %v1901
        %v1988 = vunpack.c.l.b16 %v1902
        %v1989 = vunpack.c.h.b16 %v1902
        %v1990 = vunpack.c.l.b16 %v1903
        %v1991 = vunpack.c.h.b16 %v1903
        %v1992 = vunpack.c.l.b16 %v1904
        %v1993 = vunpack.c.h.b16 %v1904
        %v1994 = vunpack.c.l.b16 %v1905
        %v1995 = vunpack.c.h.b16 %v1905
        %v1996 = vunpack.c.l.b16 %v1906
        %v1997 = vunpack.c.h.b16 %v1906
        %v1998 = vunpack.c.l.b16 %v1907
        %v1999 = vunpack.c.h.b16 %v1907
        %v2000 = vunpack.c.l.b16 %v1908
        %v2001 = vunpack.c.h.b16 %v1908
        %v2002 = vunpack.c.l.b16 %v1909
        %v2003 = vunpack.c.h.b16 %v1909
        %v2004 = vunpack.c.l.b16 %v1910
        %v2005 = vunpack.c.h.b16 %v1910
        %v2006 = vunpack.c.l.b16 %v1911
        %v2007 = vunpack.c.h.b16 %v1911
        %v2008 = vunpack.c.l.b16 %v1912
        %v2009 = vunpack.c.h.b16 %v1912
        %v2010 = vunpack.c.l.b16 %v1913
        %v2011 = vunpack.c.h.b16 %v1913
        %v2012 = vunpack.c.l.b16 %v1914
        %v2013 = vunpack.c.h.b16 %v1914
        %v2014 = vunpack.c.l.b16 %v1915
        %v2015 = vunpack.c.h.b16 %v1915
        %v2016 = vunpack.c.l.b16 %v1916
        %v2017 = vunpack.c.h.b16 %v1916
        %v2018 = vunpack.c.l.b16 %v1917
        %v2019 = vunpack.c.h.b16 %v1917
        %v2020 = vunpack.c.l.b16 %v1918
        %v2021 = vunpack.c.h.b16 %v1918
        %v2022 = vunpack.c.l.b16 %v1919
        %v2023 = vunpack.c.h.b16 %v1919
        %v2024 = vunpack.c.l.b16 %v1920
        %v2025 = vunpack.c.h.b16 %v1920
        %v2026 = vunpack.c.l.b16 %v1921
        %v2027 = vunpack.c.h.b16 %v1921
        %v2028 = vunpack.c.l.b16 %v1922
        %v2029 = vunpack.c.h.b16 %v1922
        %v2030 = vunpack.c.l.b16 %v1923
        %v2031 = vunpack.c.h.b16 %v1923
        %v2032 = vunpack.c.l.b16 %v1924
        %v2033 = vunpack.c.h.b16 %v1924
        %v2034 = vpack.c.b16 %v1972, %v1970
        %v2035 = vpack.c.b16 %v1973, %v1971
        %v2036 = vpack.c.b16 %v1976, %v1974
        %v2037 = vpack.c.b16 %v1977, %v1975
        %v2038 = vpack.c.b16 %v1980, %v1978
        %v2039 = vpack.c.b16 %v1981, %v1979
        %v2040 = vpack.c.b16 %v1984, %v1982
        %v2041 = vpack.c.b16 %v1985, %v1983
        %v2042 = vpack.c.b16 %v1988, %v1986
        %v2043 = vpack.c.b16 %v1989, %v1987
        %v2044 = vpack.c.b16 %v1992, %v1990
        %v2045 = vpack.c.b16 %v1993, %v1991
        %v2046 = vpack.c.b16 %v1996, %v1994
        %v2047 = vpack.c.b16 %v1997, %v1995
        %v2048 = vpack.c.b16 %v2000, %v1998
        %v2049 = vpack.c.b16 %v2001, %v1999
        %v2050 = vpack.c.b16 %v2004, %v2002
        %v2051 = vpack.c.b16 %v2005, %v2003
        %v2052 = vpack.c.b16 %v2008, %v2006
        %v2053 = vpack.c.b16 %v2009, %v2007
        %v2054 = vpack.c.b16 %v2012, %v2010
        %v2055 = vpack.c.b16 %v2013, %v2011
        %v2056 = vpack.c.b16 %v2016, %v2014
        %v2057 = vpack.c.b16 %v2017, %v2015
        %v2058 = vpack.c.b16 %v2020, %v2018
        %v2059 = vpack.c.b16 %v2021, %v2019
        %v2060 = vpack.c.b16 %v2024, %v2022
        %v2061 = vpack.c.b16 %v2025, %v2023
        %v2062 = vpack.c.b16 %v2028, %v2026
        %v2063 = vpack.c.b16 %v2029, %v2027
        %v2064 = vpack.c.b16 %v2032, %v2030
        %v2065 = vpack.c.b16 %v2033, %v2031
        %2098 = vmatprep.subr.bf16.mxu0 %v2035
        %2099 = vmatpush1.bf16.msra.mxu0 %v2034
        %2100 = vmatprep.subr.bf16.mxu0 %v2037
        %2101 = vmatpush1.bf16.msra.mxu0 %v2036
        %2102 = vmatprep.subr.bf16.mxu0 %v2039
        %2103 = vmatpush1.bf16.msra.mxu0 %v2038
        %2104 = vmatprep.subr.bf16.mxu0 %v2041
        %2105 = vmatpush1.bf16.msra.mxu0 %v2040
        %2106 = vmatprep.subr.bf16.mxu0 %v2043
        %2107 = vmatpush1.bf16.msra.mxu0 %v2042
        %2108 = vmatprep.subr.bf16.mxu0 %v2045
        %2109 = vmatpush1.bf16.msra.mxu0 %v2044
        %2110 = vmatprep.subr.bf16.mxu0 %v2047
        %2111 = vmatpush1.bf16.msra.mxu0 %v2046
        %2112 = vmatprep.subr.bf16.mxu0 %v2049
        %2113 = vmatpush1.bf16.msra.mxu0 %v2048
        %2114 = vmatprep.subr.bf16.mxu0 %v2051
        %2115 = vmatpush1.bf16.msra.mxu0 %v2050
        %2116 = vmatprep.subr.bf16.mxu0 %v2053
        %2117 = vmatpush1.bf16.msra.mxu0 %v2052
        %2118 = vmatprep.subr.bf16.mxu0 %v2055
        %2119 = vmatpush1.bf16.msra.mxu0 %v2054
        %2120 = vmatprep.subr.bf16.mxu0 %v2057
        %2121 = vmatpush1.bf16.msra.mxu0 %v2056
        %2122 = vmatprep.subr.bf16.mxu0 %v2059
        %2123 = vmatpush1.bf16.msra.mxu0 %v2058
        %2124 = vmatprep.subr.bf16.mxu0 %v2061
        %2125 = vmatpush1.bf16.msra.mxu0 %v2060
        %2126 = vmatprep.subr.bf16.mxu0 %v2063
        %2127 = vmatpush1.bf16.msra.mxu0 %v2062
        %2128 = vmatprep.subr.bf16.mxu0 %v2065
        %2129 = vmatpush1.bf16.msra.mxu0 %v2064
        %2130 = vmatprep.mubr.bf16.mxu0 %v1892
        %2131 = vmatmul.mubr.bf16.gmra.mrb[0].mxu0 %v1891
        %v2132 = vpop.f32.mrb[0].mxu0
        %v2133 = vadd.f32 %v1931, %v2132
        %v2134 = vpop.f32.mrb[0].mxu0
        %v2135 = vadd.f32 %v1935, %v2134
        %v2136 = vpop.f32.mrb[0].mxu0
        %v2137 = vadd.f32 %v1931, %v2136
        %v2138 = vpop.f32.mrb[0].mxu0
        %v2139 = vadd.f32 %v1935, %v2138
        %2140 = vdwg.mxu0
        %v2141 = vmax.f32 %v2133, 0.0
        %v2142 = vmax.f32 %v2135, 0.0
        %v2143 = vmax.f32 %v2137, 0.0
        %v2144 = vmax.f32 %v2139, 0.0
        %v2145 = vadd.f32 %v1866, %v2141
        %v2146 = vadd.f32 %v1867, %v2142
        %v2147 = vadd.f32 %v1868, %v2143
        %v2148 = vadd.f32 %v1869, %v2144
        %v2149 = vpack.c.bf16 %v2147, %v2145
        %v2150 = vpack.c.bf16 %v2148, %v2146
        %v2151 = vld [vmem:[#allocation11] sm:$0xff]
        %v2152 = vld [vmem:[#allocation11 + $0x8] sm:$0xff]
        %v2153 = vld [vmem:[#allocation11 + $0x10] sm:$0xff]
        %v2154 = vld [vmem:[#allocation11 + $0x18] sm:$0xff]
        %v2155 = vld [vmem:[#allocation11 + $0x20] sm:$0xff]
        %v2156 = vld [vmem:[#allocation11 + $0x28] sm:$0xff]
        %v2157 = vld [vmem:[#allocation11 + $0x30] sm:$0xff]
        %v2158 = vld [vmem:[#allocation11 + $0x38] sm:$0xff]
        %v2159 = vld [vmem:[#allocation11 + $0x40] sm:$0xff]
        %v2160 = vld [vmem:[#allocation11 + $0x48] sm:$0xff]
        %v2161 = vld [vmem:[#allocation11 + $0x50] sm:$0xff]
        %v2162 = vld [vmem:[#allocation11 + $0x58] sm:$0xff]
        %v2163 = vld [vmem:[#allocation11 + $0x60] sm:$0xff]
        %v2164 = vld [vmem:[#allocation11 + $0x68] sm:$0xff]
        %v2165 = vld [vmem:[#allocation11 + $0x70] sm:$0xff]
        %v2166 = vld [vmem:[#allocation11 + $0x78] sm:$0xff]
        %v2167 = vld [vmem:[#allocation11 + $0x80] sm:$0xff]
        %v2168 = vld [vmem:[#allocation11 + $0x88] sm:$0xff]
        %v2169 = vld [vmem:[#allocation11 + $0x90] sm:$0xff]
        %v2170 = vld [vmem:[#allocation11 + $0x98] sm:$0xff]
        %v2171 = vld [vmem:[#allocation11 + $0xa0] sm:$0xff]
        %v2172 = vld [vmem:[#allocation11 + $0xa8] sm:$0xff]
        %v2173 = vld [vmem:[#allocation11 + $0xb0] sm:$0xff]
        %v2174 = vld [vmem:[#allocation11 + $0xb8] sm:$0xff]
        %v2175 = vld [vmem:[#allocation11 + $0xc0] sm:$0xff]
        %v2176 = vld [vmem:[#allocation11 + $0xc8] sm:$0xff]
        %v2177 = vld [vmem:[#allocation11 + $0xd0] sm:$0xff]
        %v2178 = vld [vmem:[#allocation11 + $0xd8] sm:$0xff]
        %v2179 = vld [vmem:[#allocation11 + $0xe0] sm:$0xff]
        %v2180 = vld [vmem:[#allocation11 + $0xe8] sm:$0xff]
        %v2181 = vld [vmem:[#allocation11 + $0xf0] sm:$0xff]
        %v2182 = vld [vmem:[#allocation11 + $0xf8] sm:$0xff]
        %s2183 = scalar_lea.vmem %s6, 8
        %v2184 = vld [vmem:[%s2183] sm:$0x3]
        %v2186 = vlaneseq
        %v2187 = vshrl.u32 %v2186, 7
        %v2188 = vsub.s32 0, %v2187
        %v2189 = vrot.slane %v2184, %v2188
        %v2190 = vlaneseq
        %v2191 = vshrl.u32 %v2190, 7
        %v2192 = vsub.s32 1, %v2191
        %v2193 = vrot.slane %v2184, %v2192
        %v2228 = vunpack.c.l.b16 %v2151
        %v2229 = vunpack.c.h.b16 %v2151
        %v2230 = vunpack.c.l.b16 %v2152
        %v2231 = vunpack.c.h.b16 %v2152
        %v2232 = vunpack.c.l.b16 %v2153
        %v2233 = vunpack.c.h.b16 %v2153
        %v2234 = vunpack.c.l.b16 %v2154
        %v2235 = vunpack.c.h.b16 %v2154
        %v2236 = vunpack.c.l.b16 %v2155
        %v2237 = vunpack.c.h.b16 %v2155
        %v2238 = vunpack.c.l.b16 %v2156
        %v2239 = vunpack.c.h.b16 %v2156
        %v2240 = vunpack.c.l.b16 %v2157
        %v2241 = vunpack.c.h.b16 %v2157
        %v2242 = vunpack.c.l.b16 %v2158
        %v2243 = vunpack.c.h.b16 %v2158
        %v2244 = vunpack.c.l.b16 %v2159
        %v2245 = vunpack.c.h.b16 %v2159
        %v2246 = vunpack.c.l.b16 %v2160
        %v2247 = vunpack.c.h.b16 %v2160
        %v2248 = vunpack.c.l.b16 %v2161
        %v2249 = vunpack.c.h.b16 %v2161
        %v2250 = vunpack.c.l.b16 %v2162
        %v2251 = vunpack.c.h.b16 %v2162
        %v2252 = vunpack.c.l.b16 %v2163
        %v2253 = vunpack.c.h.b16 %v2163
        %v2254 = vunpack.c.l.b16 %v2164
        %v2255 = vunpack.c.h.b16 %v2164
        %v2256 = vunpack.c.l.b16 %v2165
        %v2257 = vunpack.c.h.b16 %v2165
        %v2258 = vunpack.c.l.b16 %v2166
        %v2259 = vunpack.c.h.b16 %v2166
        %v2260 = vunpack.c.l.b16 %v2167
        %v2261 = vunpack.c.h.b16 %v2167
        %v2262 = vunpack.c.l.b16 %v2168
        %v2263 = vunpack.c.h.b16 %v2168
        %v2264 = vunpack.c.l.b16 %v2169
        %v2265 = vunpack.c.h.b16 %v2169
        %v2266 = vunpack.c.l.b16 %v2170
        %v2267 = vunpack.c.h.b16 %v2170
        %v2268 = vunpack.c.l.b16 %v2171
        %v2269 = vunpack.c.h.b16 %v2171
        %v2270 = vunpack.c.l.b16 %v2172
        %v2271 = vunpack.c.h.b16 %v2172
        %v2272 = vunpack.c.l.b16 %v2173
        %v2273 = vunpack.c.h.b16 %v2173
        %v2274 = vunpack.c.l.b16 %v2174
        %v2275 = vunpack.c.h.b16 %v2174
        %v2276 = vunpack.c.l.b16 %v2175
        %v2277 = vunpack.c.h.b16 %v2175
        %v2278 = vunpack.c.l.b16 %v2176
        %v2279 = vunpack.c.h.b16 %v2176
        %v2280 = vunpack.c.l.b16 %v2177
        %v2281 = vunpack.c.h.b16 %v2177
        %v2282 = vunpack.c.l.b16 %v2178
        %v2283 = vunpack.c.h.b16 %v2178
        %v2284 = vunpack.c.l.b16 %v2179
        %v2285 = vunpack.c.h.b16 %v2179
        %v2286 = vunpack.c.l.b16 %v2180
        %v2287 = vunpack.c.h.b16 %v2180
        %v2288 = vunpack.c.l.b16 %v2181
        %v2289 = vunpack.c.h.b16 %v2181
        %v2290 = vunpack.c.l.b16 %v2182
        %v2291 = vunpack.c.h.b16 %v2182
        %v2292 = vpack.c.b16 %v2230, %v2228
        %v2293 = vpack.c.b16 %v2231, %v2229
        %v2294 = vpack.c.b16 %v2234, %v2232
        %v2295 = vpack.c.b16 %v2235, %v2233
        %v2296 = vpack.c.b16 %v2238, %v2236
        %v2297 = vpack.c.b16 %v2239, %v2237
        %v2298 = vpack.c.b16 %v2242, %v2240
        %v2299 = vpack.c.b16 %v2243, %v2241
        %v2300 = vpack.c.b16 %v2246, %v2244
        %v2301 = vpack.c.b16 %v2247, %v2245
        %v2302 = vpack.c.b16 %v2250, %v2248
        %v2303 = vpack.c.b16 %v2251, %v2249
        %v2304 = vpack.c.b16 %v2254, %v2252
        %v2305 = vpack.c.b16 %v2255, %v2253
        %v2306 = vpack.c.b16 %v2258, %v2256
        %v2307 = vpack.c.b16 %v2259, %v2257
        %v2308 = vpack.c.b16 %v2262, %v2260
        %v2309 = vpack.c.b16 %v2263, %v2261
        %v2310 = vpack.c.b16 %v2266, %v2264
        %v2311 = vpack.c.b16 %v2267, %v2265
        %v2312 = vpack.c.b16 %v2270, %v2268
        %v2313 = vpack.c.b16 %v2271, %v2269
        %v2314 = vpack.c.b16 %v2274, %v2272
        %v2315 = vpack.c.b16 %v2275, %v2273
        %v2316 = vpack.c.b16 %v2278, %v2276
        %v2317 = vpack.c.b16 %v2279, %v2277
        %v2318 = vpack.c.b16 %v2282, %v2280
        %v2319 = vpack.c.b16 %v2283, %v2281
        %v2320 = vpack.c.b16 %v2286, %v2284
        %v2321 = vpack.c.b16 %v2287, %v2285
        %v2322 = vpack.c.b16 %v2290, %v2288
        %v2323 = vpack.c.b16 %v2291, %v2289
        %2356 = vmatprep.subr.bf16.mxu0 %v2293
        %2357 = vmatpush1.bf16.msra.mxu0 %v2292
        %2358 = vmatprep.subr.bf16.mxu0 %v2295
        %2359 = vmatpush1.bf16.msra.mxu0 %v2294
        %2360 = vmatprep.subr.bf16.mxu0 %v2297
        %2361 = vmatpush1.bf16.msra.mxu0 %v2296
        %2362 = vmatprep.subr.bf16.mxu0 %v2299
        %2363 = vmatpush1.bf16.msra.mxu0 %v2298
        %2364 = vmatprep.subr.bf16.mxu0 %v2301
        %2365 = vmatpush1.bf16.msra.mxu0 %v2300
        %2366 = vmatprep.subr.bf16.mxu0 %v2303
        %2367 = vmatpush1.bf16.msra.mxu0 %v2302
        %2368 = vmatprep.subr.bf16.mxu0 %v2305
        %2369 = vmatpush1.bf16.msra.mxu0 %v2304
        %2370 = vmatprep.subr.bf16.mxu0 %v2307
        %2371 = vmatpush1.bf16.msra.mxu0 %v2306
        %2372 = vmatprep.subr.bf16.mxu0 %v2309
        %2373 = vmatpush1.bf16.msra.mxu0 %v2308
        %2374 = vmatprep.subr.bf16.mxu0 %v2311
        %2375 = vmatpush1.bf16.msra.mxu0 %v2310
        %2376 = vmatprep.subr.bf16.mxu0 %v2313
        %2377 = vmatpush1.bf16.msra.mxu0 %v2312
        %2378 = vmatprep.subr.bf16.mxu0 %v2315
        %2379 = vmatpush1.bf16.msra.mxu0 %v2314
        %2380 = vmatprep.subr.bf16.mxu0 %v2317
        %2381 = vmatpush1.bf16.msra.mxu0 %v2316
        %2382 = vmatprep.subr.bf16.mxu0 %v2319
        %2383 = vmatpush1.bf16.msra.mxu0 %v2318
        %2384 = vmatprep.subr.bf16.mxu0 %v2321
        %2385 = vmatpush1.bf16.msra.mxu0 %v2320
        %2386 = vmatprep.subr.bf16.mxu0 %v2323
        %2387 = vmatpush1.bf16.msra.mxu0 %v2322
        %2388 = vmatprep.mubr.bf16.mxu0 %v2150
        %2389 = vmatmul.mubr.bf16.gmra.mrb[0].mxu0 %v2149
        %v2390 = vpop.f32.mrb[0].mxu0
        %v2391 = vadd.f32 %v2189, %v2390
        %v2392 = vpop.f32.mrb[0].mxu0
        %v2393 = vadd.f32 %v2193, %v2392
        %v2394 = vpop.f32.mrb[0].mxu0
        %v2395 = vadd.f32 %v2189, %v2394
        %v2396 = vpop.f32.mrb[0].mxu0
        %v2397 = vadd.f32 %v2193, %v2396
        %2398 = vdwg.mxu0
        %v2399 = vmax.f32 %v2391, 0.0
        %v2400 = vmax.f32 %v2393, 0.0
        %v2401 = vmax.f32 %v2395, 0.0
        %v2402 = vmax.f32 %v2397, 0.0
        %v2403 = vpack.c.bf16 %v2401, %v2399
        %v2404 = vpack.c.bf16 %v2402, %v2400
        %v2407 = vunpack.c.l.b16 %v2403
        %v2408 = vunpack.c.l.b16 %v2404
        %v2409 = vunpack.c.h.b16 %v2403
        %v2410 = vunpack.c.h.b16 %v2404
        %v2411 = vpack.c.b16 %v2408, %v2407
        %v2412 = vpack.c.b16 %v2410, %v2409
        %2415 = vst [vmem:[%s369] sm:$0xff] %v2411
        %2416 = vst [vmem:[%s369 + $0x8] sm:$0xff] %v2412
        %s2417 = sand.u32 %s187, 1
        %s2418 = scalar_lea.sflag [#allocation4], %s2417
        %s2419 = sand.u32 %s187, 1
        %s2420 = smul.addr %s2419, 16
        %s2421 = scalar_lea.vmem [#allocation13], %s2420
        // Predicated region
        $region73: #{tpu_custom_call.1} parent=47 // pred_check
          %p2422 = pneg %p197
        $region74: #{tpu_custom_call.1} parent=47 // pred_check_branch
          %2424 = sbr.rel (%p2422) target = $region76
        $region75: #{tpu_custom_call.1} parent=47 // pred_region
          %s2426 = ssub.s32 256, 256
          %2427 = vsyncadd %s2418, %s2426
          %s2428 = smul.addr %s27, 4
          %s2429 = smul.addr %s2428, 64
          %s2430 = scalar_lea.hbm %s7, %s2429
          %s2431 = sshll.u32 %s2421, 4
          %s2432 = int_to_ptr.vmem [resolvable:$true] %s2431
          %2437 = dma.vmem_to_hbm [thread:$0]  %s2432, 256, %s2430, %s2418, 128, 128, 8
        $region76: #{tpu_custom_call.1} parent=47 // pred_fallthru
          _
      $region48: #{tpu_custom_call.1} parent=5 // pred_fallthru
        _
      %p2438 = scmp.le.s32.totalorder 2, %s22
      // Predicated region
      $region77: #{tpu_custom_call.1} parent=5 // pred_check
        %p2439 = pneg %p2438
      $region78: #{tpu_custom_call.1} parent=5 // pred_check_branch
        %2441 = sbr.rel (%p2439) target = $region80
      $region79: #{tpu_custom_call.1} parent=5 // pred_region
        %s2442 = ssub.s32 %s22, 2
        // Predicated region
        $region81: #{tpu_custom_call.1} parent=79 // pred_check
          %p2443 = pneg %p203
        $region82: #{tpu_custom_call.1} parent=79 // pred_check_branch
          %2445 = sbr.rel (%p2443) target = $region84
        $region83: #{tpu_custom_call.1} parent=79 // pred_region
          %s2446 = sand.u32 %s188, 1
          %s2447 = scalar_lea.sflag [#allocation4], %s2446
          %s2448 = sand.u32 %s188, 1
          %s2449 = smul.addr %s2448, 16
          %s2450 = scalar_lea.vmem [#allocation13], %s2449
          %2451 = dma.done %s2447, 256
        $region84: #{tpu_custom_call.1} parent=79 // pred_fallthru
          _
      $region80: #{tpu_custom_call.1} parent=5 // pred_fallthru
        _
    $region6: #{tpu_custom_call.1} parent=1 // loop_footer
      %s26 = sadd.s32 1, %s22
    $region7: #{tpu_custom_call.1} parent=1 // loop_footer_branch
      %21 = sbr.rel target = $region3
    $region8: #{tpu_custom_call.1} parent=1 // loop_exit
      _
    %2452 = vsyncpa [#allocation3], 1
    %s2453 = scalar_lea.sflag [#allocation3], 1
    %2454 = vsyncpa %s2453, 1
    %2455 = vsyncpa [#allocation6], 1
    %2456 = vsyncpa [#allocation9], 1
    %2457 = vsyncpa [#allocation12], 1
    %2458 = vsyncpa [#allocation4], 1
    %s2459 = scalar_lea.sflag [#allocation4], 1
    %2460 = vsyncpa %s2459, 1

// kernel: tpu_custom_call.1
$region0: #{tpu_custom_call.1}
  #allocation0 [shape = 'u32[]', space=smem, size = 0x4, offset = 0x4, fixed_abs, tag = 'smem constant byte address 0x4 - core index']
  #allocation1 [shape = 'u32[144,128]{1,0:T(1,128)}', space=vmem, size = 0x12000, scoped, tag = 'internal scratch']
  %s0 = inlined_call_operand.hbm [shape: bf16[2,16,128], index: 0, kind: input, shape index: {}]
  %s1 = inlined_call_operand.hbm [shape: bf16[3,128,256], index: 1, kind: input, shape index: {}]
  %s2 = inlined_call_operand.hbm [shape: bf16[256,256], index: 2, kind: input, shape index: {}]
  %s3 = inlined_call_operand.hbm [shape: bf16[5,128,256], index: 3, kind: input, shape index: {}]
  %s4 = inlined_call_operand.hbm [shape: bf16[256,256], index: 4, kind: input, shape index: {}]
  %s5 = inlined_call_operand.hbm [shape: bf16[256,256], index: 5, kind: input, shape index: {}]
  %s6 = inlined_call_operand.vmem [shape: f32[5,1,256], index: 6, kind: input, shape index: {}]
  %s7 = inlined_call_operand.hbm [shape: bf16[2,16,256], index: 7, kind: output, shape index: {}]
  %s8 = sld [smem:[#allocation0]]
  $region85: #{tpu_custom_call.1} parent=0
    _
  %s10 = ssub.s32 1, %s8
  %s11 = scalar_select 0, %s10, %s8
  $region1: #{tpu_custom_call.1} parent=0
    #allocation2 [shape = 'u8[8192]{0}', space=vmem, size = 0x2000, scoped, tag = 'input window, operand 0']
    #allocation3 [shape = 's32[2]{0}', space=sflag, size = 0x8, scoped, tag = 'scoped memory for tpu_custom_call.1']
    #allocation4 [shape = 's32[2]{0}', space=sflag, size = 0x8, scoped, tag = 'scoped memory for tpu_custom_call.1']
    #allocation5 [shape = 'u8[196608]{0}', space=vmem, size = 0x30000, scoped, tag = 'input window, operand 1, single buffered']
    #allocation6 [shape = 's32[1]{0}', space=sflag, size = 0x4, scoped, tag = 'scoped memory for tpu_custom_call.1']
    #allocation7 [shape = 'u8[131072]{0}', space=vmem, size = 0x20000, scoped, tag = 'input window, operand 2, single buffered']
    #allocation8 [shape = 'u8[327680]{0}', space=vmem, size = 0x50000, scoped, tag = 'input window, operand 3, single buffered']
    #allocation9 [shape = 's32[1]{0}', space=sflag, size = 0x4, scoped, tag = 'scoped memory for tpu_custom_call.1']
    #allocation10 [shape = 'u8[131072]{0}', space=vmem, size = 0x20000, scoped, tag = 'input window, operand 4, single buffered']
    #allocation11 [shape = 'u8[131072]{0}', space=vmem, size = 0x20000, scoped, tag = 'input window, operand 5, single buffered']
    #allocation12 [shape = 's32[1]{0}', space=sflag, size = 0x4, scoped, tag = 'scoped memory for tpu_custom_call.1']
    #allocation13 [shape = 'u8[16384]{0}', space=vmem, size = 0x4000, scoped, tag = 'output window, operand 0']
    %12 = vsyncpa [#allocation3], 0
    %s13 = scalar_lea.sflag [#allocation3], 1
    %14 = vsyncpa %s13, 0
    %15 = vsyncpa [#allocation6], 0
    %16 = vsyncpa [#allocation9], 0
    %17 = vsyncpa [#allocation12], 0
    %18 = vsyncpa [#allocation4], 0
    %s19 = scalar_lea.sflag [#allocation4], 1
    %20 = vsyncpa %s19, 0
    loop: start=0, step=1, limit=4
    $region2: #{tpu_custom_call.1} parent=1 // loop_pre_header
      _
    $region3: #{tpu_custom_call.1} parent=1 // loop_header
      %s22 = sphi 0, %s26
      %p23 = scmp.ge.s32.totalorder %s22, 4
      %s32 = sphi 0, %s34
      %s35 = sphi 0, %s32
      %s36 = sphi 0, %s35
      %s52 = sphi 0, %s36
      %s56 = sphi 0, %s56
      %s58 = sphi 0, %s56
      %s59 = sphi 0, %s58
      %s73 = sphi 0, %s59
      %s77 = sphi 0, %s77
      %s79 = sphi 0, %s77
      %s80 = sphi 0, %s79
      %s94 = sphi 0, %s80
      %s98 = sphi 0, %s98
      %s100 = sphi 0, %s98
      %s101 = sphi 0, %s100
      %s115 = sphi 0, %s101
      %s119 = sphi 0, %s119
      %s121 = sphi 0, %s119
      %s122 = sphi 0, %s121
      %s136 = sphi 0, %s122
      %s140 = sphi 0, %s140
      %s142 = sphi 0, %s140
      %s143 = sphi 0, %s142
      %s157 = sphi 0, %s143
      %s161 = sphi 0, %s161
      %s163 = sphi 0, %s161
      %s164 = sphi 0, %s163
      %s178 = sphi 0, %s164
      %s184 = sphi 0, %s186
      %s187 = sphi 0, %s184
      %s188 = sphi 0, %s187
      %s204 = sphi 0, %s188
    $region4: #{tpu_custom_call.1} parent=1 // loop_header_branch
      %25 = sbr.rel (%p23) target = $region8
    $region5: #{tpu_custom_call.1} parent=1 // loop_body
      %s27 = ssub.s32 %s22, 1
      %s28 = ssub.s32 %s22, 2
      %s29 = sadd.s32 %s22, 1
      %s30 = ssub.s32 %s22, %s29
      %p31 = scmp.eq.s32.totalorder %s30, 0
      %s33 = sadd.s32 %s32, 1
      %s34 = scalar_select %p31, %s32, %s33
      %p37 = pneg %p31
      %p38 = scmp.eq.s32.totalorder %s22, 1
      %p39 = por %p37, %p38
      %p40 = scmp.ne.s32.totalorder %s32, %s35
      %p41 = scmp.eq.s32.totalorder %s22, 0
      %p42 = por %p40, %p41
      %p43 = scmp.ne.s32.totalorder %s32, %s35
      %p44 = scmp.eq.s32.totalorder %s27, 1
      %p45 = por %p43, %p44
      %p46 = scmp.ne.s32.totalorder %s35, %s36
      %p47 = scmp.eq.s32.totalorder %s27, 0
      %p48 = por %p46, %p47
      %p49 = scmp.ne.s32.totalorder %s35, %s36
      %p50 = scmp.eq.s32.totalorder %s28, 1
      %p51 = por %p49, %p50
      %p53 = scmp.ne.s32.totalorder %s36, %s52
      %p54 = scmp.eq.s32.totalorder %s28, 0
      %p55 = por %p53, %p54
      %s57 = sadd.s32 %s56, 1
      %p60 = scmp.eq.s32.totalorder %s22, 1
      %p61 = scmp.ne.s32.totalorder %s56, %s58
      %p62 = scmp.eq.s32.totalorder %s22, 0
      %p63 = por %p61, %p62
      %p64 = scmp.ne.s32.totalorder %s56, %s58
      %p65 = scmp.eq.s32.totalorder %s27, 1
      %p66 = por %p64, %p65
      %p67 = scmp.ne.s32.totalorder %s58, %s59
      %p68 = scmp.eq.s32.totalorder %s27, 0
      %p69 = por %p67, %p68
      %p70 = scmp.ne.s32.totalorder %s58, %s59
      %p71 = scmp.eq.s32.totalorder %s28, 1
      %p72 = por %p70, %p71
      %p74 = scmp.ne.s32.totalorder %s59, %s73
      %p75 = scmp.eq.s32.totalorder %s28, 0
      %p76 = por %p74, %p75
      %s78 = sadd.s32 %s77, 1
      %p81 = scmp.eq.s32.totalorder %s22, 1
      %p82 = scmp.ne.s32.totalorder %s77, %s79
      %p83 = scmp.eq.s32.totalorder %s22, 0
      %p84 = por %p82, %p83
      %p85 = scmp.ne.s32.totalorder %s77, %s79
      %p86 = scmp.eq.s32.totalorder %s27, 1
      %p87 = por %p85, %p86
      %p88 = scmp.ne.s32.totalorder %s79, %s80
      %p89 = scmp.eq.s32.totalorder %s27, 0
      %p90 = por %p88, %p89
      %p91 = scmp.ne.s32.totalorder %s79, %s80
      %p92 = scmp.eq.s32.totalorder %s28, 1
      %p93 = por %p91, %p92
      %p95 = scmp.ne.s32.totalorder %s80, %s94
      %p96 = scmp.eq.s32.totalorder %s28, 0
      %p97 = por %p95, %p96
      %s99 = sadd.s32 %s98, 1
      %p102 = scmp.eq.s32.totalorder %s22, 1
      %p103 = scmp.ne.s32.totalorder %s98, %s100
      %p104 = scmp.eq.s32.totalorder %s22, 0
      %p105 = por %p103, %p104
      %p106 = scmp.ne.s32.totalorder %s98, %s100
      %p107 = scmp.eq.s32.totalorder %s27, 1
      %p108 = por %p106, %p107
      %p109 = scmp.ne.s32.totalorder %s100, %s101
      %p110 = scmp.eq.s32.totalorder %s27, 0
      %p111 = por %p109, %p110
      %p112 = scmp.ne.s32.totalorder %s100, %s101
      %p113 = scmp.eq.s32.totalorder %s28, 1
      %p114 = por %p112, %p113
      %p116 = scmp.ne.s32.totalorder %s101, %s115
      %p117 = scmp.eq.s32.totalorder %s28, 0
      %p118 = por %p116, %p117
      %s120 = sadd.s32 %s119, 1
      %p123 = scmp.eq.s32.totalorder %s22, 1
      %p124 = scmp.ne.s32.totalorder %s119, %s121
      %p125 = scmp.eq.s32.totalorder %s22, 0
      %p126 = por %p124, %p125
      %p127 = scmp.ne.s32.totalorder %s119, %s121
      %p128 = scmp.eq.s32.totalorder %s27, 1
      %p129 = por %p127, %p128
      %p130 = scmp.ne.s32.totalorder %s121, %s122
      %p131 = scmp.eq.s32.totalorder %s27, 0
      %p132 = por %p130, %p131
      %p133 = scmp.ne.s32.totalorder %s121, %s122
      %p134 = scmp.eq.s32.totalorder %s28, 1
      %p135 = por %p133, %p134
      %p137 = scmp.ne.s32.totalorder %s122, %s136
      %p138 = scmp.eq.s32.totalorder %s28, 0
      %p139 = por %p137, %p138
      %s141 = sadd.s32 %s140, 1
      %p144 = scmp.eq.s32.totalorder %s22, 1
      %p145 = scmp.ne.s32.totalorder %s140, %s142
      %p146 = scmp.eq.s32.totalorder %s22, 0
      %p147 = por %p145, %p146
      %p148 = scmp.ne.s32.totalorder %s140, %s142
      %p149 = scmp.eq.s32.totalorder %s27, 1
      %p150 = por %p148, %p149
      %p151 = scmp.ne.s32.totalorder %s142, %s143
      %p152 = scmp.eq.s32.totalorder %s27, 0
      %p153 = por %p151, %p152
      %p154 = scmp.ne.s32.totalorder %s142, %s143
      %p155 = scmp.eq.s32.totalorder %s28, 1
      %p156 = por %p154, %p155
      %p158 = scmp.ne.s32.totalorder %s143, %s157
      %p159 = scmp.eq.s32.totalorder %s28, 0
      %p160 = por %p158, %p159
      %s162 = sadd.s32 %s161, 1
      %p165 = scmp.eq.s32.totalorder %s22, 1
      %p166 = scmp.ne.s32.totalorder %s161, %s163
      %p167 = scmp.eq.s32.totalorder %s22, 0
      %p168 = por %p166, %p167
      %p169 = scmp.ne.s32.totalorder %s161, %s163
      %p170 = scmp.eq.s32.totalorder %s27, 1
      %p171 = por %p169, %p170
      %p172 = scmp.ne.s32.totalorder %s163, %s164
      %p173 = scmp.eq.s32.totalorder %s27, 0
      %p174 = por %p172, %p173
      %p175 = scmp.ne.s32.totalorder %s163, %s164
      %p176 = scmp.eq.s32.totalorder %s28, 1
      %p177 = por %p175, %p176
      %p179 = scmp.ne.s32.totalorder %s164, %s178
      %p180 = scmp.eq.s32.totalorder %s28, 0
      %p181 = por %p179, %p180
      %s182 = ssub.s32 %s22, %s29
      %p183 = scmp.eq.s32.totalorder %s182, 0
      %s185 = sadd.s32 %s184, 1
      %s186 = scalar_select %p183, %s184, %s185
      %p189 = pneg %p183
      %p190 = scmp.eq.s32.totalorder %s22, 1
      %p191 = por %p189, %p190
      %p192 = scmp.ne.s32.totalorder %s184, %s187
      %p193 = scmp.eq.s32.totalorder %s22, 0
      %p194 = por %p192, %p193
      %p195 = scmp.ne.s32.totalorder %s184, %s187
      %p196 = scmp.eq.s32.totalorder %s27, 1
      %p197 = por %p195, %p196
      %p198 = scmp.ne.s32.totalorder %s187, %s188
      %p199 = scmp.eq.s32.totalorder %s27, 0
      %p200 = por %p198, %p199
      %p201 = scmp.ne.s32.totalorder %s187, %s188
      %p202 = scmp.eq.s32.totalorder %s28, 1
      %p203 = por %p201, %p202
      %p205 = scmp.ne.s32.totalorder %s188, %s204
      %p206 = scmp.eq.s32.totalorder %s28, 0
      %p207 = por %p205, %p206
      %p208 = scmp.le.s32.totalorder 1, %s22
      %p209 = scmp.lt.s32.totalorder %s22, 3
      %p210 = pnand %p208, %p209
      %p211 = pneg %p210
      // Predicated region
      $region9: #{tpu_custom_call.1} parent=5 // pred_check
        _
      $region10: #{tpu_custom_call.1} parent=5 // pred_check_branch
        %213 = sbr.rel (%p210) target = $region12
      $region11: #{tpu_custom_call.1} parent=5 // pred_region
        %s214 = ssub.s32 %s22, 1
        // Predicated region
        $region13: #{tpu_custom_call.1} parent=11 // pred_check
          %p215 = pneg %p69
        $region14: #{tpu_custom_call.1} parent=11 // pred_check_branch
          %217 = sbr.rel (%p215) target = $region16
        $region15: #{tpu_custom_call.1} parent=11 // pred_region
          %s219 = ssub.s32 6144, 6144
          %220 = vsyncadd [#allocation6], %s219
          %s221 = sshll.u32 [#allocation5], 4
          %s222 = int_to_ptr.vmem [resolvable:$true] %s221
          %227 = dma.hbm_to_vmem [thread:$0]  %s1, 6144, %s222, [#allocation6], 128, 128, 8
        $region16: #{tpu_custom_call.1} parent=11 // pred_fallthru
          _
        // Predicated region
        $region17: #{tpu_custom_call.1} parent=11 // pred_check
          %p228 = pneg %p90
        $region18: #{tpu_custom_call.1} parent=11 // pred_check_branch
          %230 = sbr.rel (%p228) target = $region20
        $region19: #{tpu_custom_call.1} parent=11 // pred_region
          %s232 = ssub.s32 4096, 4096
          %233 = vsyncadd [#allocation6], %s232
          %s234 = sshll.u32 [#allocation7], 4
          %s235 = int_to_ptr.vmem [resolvable:$true] %s234
          %240 = dma.hbm_to_vmem [thread:$0]  %s2, 4096, %s235, [#allocation6], 128, 128, 8
        $region20: #{tpu_custom_call.1} parent=11 // pred_fallthru
          _
        // Predicated region
        $region21: #{tpu_custom_call.1} parent=11 // pred_check
          %p241 = pneg %p111
        $region22: #{tpu_custom_call.1} parent=11 // pred_check_branch
          %243 = sbr.rel (%p241) target = $region24
        $region23: #{tpu_custom_call.1} parent=11 // pred_region
          %s245 = ssub.s32 10240, 10240
          %246 = vsyncadd [#allocation9], %s245
          %s247 = sshll.u32 [#allocation8], 4
          %s248 = int_to_ptr.vmem [resolvable:$true] %s247
          %253 = dma.hbm_to_vmem [thread:$0]  %s3, 10240, %s248, [#allocation9], 128, 128, 8
        $region24: #{tpu_custom_call.1} parent=11 // pred_fallthru
          _
        // Predicated region
        $region25: #{tpu_custom_call.1} parent=11 // pred_check
          %p254 = pneg %p132
        $region26: #{tpu_custom_call.1} parent=11 // pred_check_branch
          %256 = sbr.rel (%p254) target = $region28
        $region27: #{tpu_custom_call.1} parent=11 // pred_region
          %s258 = ssub.s32 4096, 4096
          %259 = vsyncadd [#allocation9], %s258
          %s260 = sshll.u32 [#allocation10], 4
          %s261 = int_to_ptr.vmem [resolvable:$true] %s260
          %266 = dma.hbm_to_vmem [thread:$0]  %s4, 4096, %s261, [#allocation9], 128, 128, 8
        $region28: #{tpu_custom_call.1} parent=11 // pred_fallthru
          _
        // Predicated region
        $region29: #{tpu_custom_call.1} parent=11 // pred_check
          %p267 = pneg %p153
        $region30: #{tpu_custom_call.1} parent=11 // pred_check_branch
          %269 = sbr.rel (%p267) target = $region32
        $region31: #{tpu_custom_call.1} parent=11 // pred_region
          %s271 = ssub.s32 4096, 4096
          %272 = vsyncadd [#allocation12], %s271
          %s273 = sshll.u32 [#allocation11], 4
          %s274 = int_to_ptr.vmem [resolvable:$true] %s273
          %279 = dma.hbm_to_vmem [thread:$0]  %s5, 4096, %s274, [#allocation12], 128, 128, 8
        $region32: #{tpu_custom_call.1} parent=11 // pred_fallthru
          _
        // Predicated region
        $region33: #{tpu_custom_call.1} parent=11 // pred_check
          %p280 = pneg %p174
        $region34: #{tpu_custom_call.1} parent=11 // pred_check_branch
          %282 = sbr.rel (%p280) target = $region36
        $region35: #{tpu_custom_call.1} parent=11 // pred_region
          _
        $region36: #{tpu_custom_call.1} parent=11 // pred_fallthru
          _
      $region12: #{tpu_custom_call.1} parent=5 // pred_fallthru
        _
      %p283 = scmp.lt.s32.totalorder %s22, 2
      // Predicated region
      $region37: #{tpu_custom_call.1} parent=5 // pred_check
        %p284 = pneg %p283
      $region38: #{tpu_custom_call.1} parent=5 // pred_check_branch
        %286 = sbr.rel (%p284) target = $region40
      $region39: #{tpu_custom_call.1} parent=5 // pred_region
        // Predicated region
        $region41: #{tpu_custom_call.1} parent=39 // pred_check
          %p287 = pneg %p42
        $region42: #{tpu_custom_call.1} parent=39 // pred_check_branch
          %289 = sbr.rel (%p287) target = $region44
        $region43: #{tpu_custom_call.1} parent=39 // pred_region
          %s290 = sand.u32 %s32, 1
          %s291 = scalar_lea.sflag [#allocation3], %s290
          %s292 = sand.u32 %s32, 1
          %s293 = smul.addr %s292, 8
          %s294 = scalar_lea.vmem [#allocation2], %s293
          %s296 = ssub.s32 128, 128
          %297 = vsyncadd %s291, %s296
          %s298 = smul.addr %s22, 2
          %s299 = smul.addr %s298, 64
          %s300 = scalar_lea.hbm %s0, %s299
          %s301 = sshll.u32 %s294, 4
          %s302 = int_to_ptr.vmem [resolvable:$true] %s301
          %307 = dma.hbm_to_vmem [thread:$0]  %s300, 128, %s302, %s291, 64, 64, 4
        $region44: #{tpu_custom_call.1} parent=39 // pred_fallthru
          _
      $region40: #{tpu_custom_call.1} parent=5 // pred_fallthru
        _
      %p308 = scmp.le.s32.totalorder 1, %s22
      %p309 = scmp.lt.s32.totalorder %s22, 3
      %p310 = pnand %p308, %p309
      %p311 = pneg %p310
      // Predicated region
      $region45: #{tpu_custom_call.1} parent=5 // pred_check
        _
      $region46: #{tpu_custom_call.1} parent=5 // pred_check_branch
        %313 = sbr.rel (%p310) target = $region48
      $region47: #{tpu_custom_call.1} parent=5 // pred_region
        %s314 = ssub.s32 %s22, 1
        %s315 = sand.u32 %s35, 1
        %s316 = scalar_lea.sflag [#allocation3], %s315
        %s317 = sand.u32 %s35, 1
        %s318 = smul.addr %s317, 8
        %s319 = scalar_lea.vmem [#allocation2], %s318
        // Predicated region
        $region49: #{tpu_custom_call.1} parent=47 // pred_check
          %p320 = pneg %p48
        $region50: #{tpu_custom_call.1} parent=47 // pred_check_branch
          %322 = sbr.rel (%p320) target = $region52
        $region51: #{tpu_custom_call.1} parent=47 // pred_region
          %323 = dma.done %s316, 128
        $region52: #{tpu_custom_call.1} parent=47 // pred_fallthru
          _
        // Predicated region
        $region53: #{tpu_custom_call.1} parent=47 // pred_check
          %p324 = pneg %p69
        $region54: #{tpu_custom_call.1} parent=47 // pred_check_branch
          %326 = sbr.rel (%p324) target = $region56
        $region55: #{tpu_custom_call.1} parent=47 // pred_region
          %327 = dma.done [#allocation6], 6144
        $region56: #{tpu_custom_call.1} parent=47 // pred_fallthru
          _
        // Predicated region
        $region57: #{tpu_custom_call.1} parent=47 // pred_check
          %p328 = pneg %p90
        $region58: #{tpu_custom_call.1} parent=47 // pred_check_branch
          %330 = sbr.rel (%p328) target = $region60
        $region59: #{tpu_custom_call.1} parent=47 // pred_region
          %331 = dma.done [#allocation6], 4096
        $region60: #{tpu_custom_call.1} parent=47 // pred_fallthru
          _
        // Predicated region
        $region61: #{tpu_custom_call.1} parent=47 // pred_check
          %p332 = pneg %p111
        $region62: #{tpu_custom_call.1} parent=47 // pred_check_branch
          %334 = sbr.rel (%p332) target = $region64
        $region63: #{tpu_custom_call.1} parent=47 // pred_region
          %335 = dma.done [#allocation9], 10240
        $region64: #{tpu_custom_call.1} parent=47 // pred_fallthru
          _
        // Predicated region
        $region65: #{tpu_custom_call.1} parent=47 // pred_check
          %p336 = pneg %p132
        $region66: #{tpu_custom_call.1} parent=47 // pred_check_branch
          %338 = sbr.rel (%p336) target = $region68
        $region67: #{tpu_custom_call.1} parent=47 // pred_region
          %339 = dma.done [#allocation9], 4096
        $region68: #{tpu_custom_call.1} parent=47 // pred_fallthru
          _
        // Predicated region
        $region69: #{tpu_custom_call.1} parent=47 // pred_check
          %p340 = pneg %p153
        $region70: #{tpu_custom_call.1} parent=47 // pred_check_branch
          %342 = sbr.rel (%p340) target = $region72
        $region71: #{tpu_custom_call.1} parent=47 // pred_region
          %343 = dma.done [#allocation12], 4096
        $region72: #{tpu_custom_call.1} parent=47 // pred_fallthru
          _
        %s344 = sand.u32 %s35, 1
        %s345 = scalar_lea.sflag [#allocation3], %s344
        %s346 = sand.u32 %s35, 1
        %s347 = smul.addr %s346, 8
        %s348 = scalar_lea.vmem [#allocation2], %s347
        %p349 = pneg %p48
        %p350 = pneg %p45
        %p351 = pneg %p69
        %p352 = pneg %p66
        %p353 = pneg %p90
        %p354 = pneg %p87
        %p355 = pneg %p111
        %p356 = pneg %p108
        %p357 = pneg %p132
        %p358 = pneg %p129
        %p359 = pneg %p153
        %p360 = pneg %p150
        %p361 = pneg %p174
        %p362 = pneg %p171
        %p363 = pneg %p200
        %p364 = pneg %p197
        %s365 = sand.u32 %s187, 1
        %s366 = scalar_lea.sflag [#allocation4], %s365
        %s367 = sand.u32 %s187, 1
        %s368 = smul.addr %s367, 16
        %s369 = scalar_lea.vmem [#allocation13], %s368
        %v373 = vld [vmem:[%s319] sm:$0xf]
        %v374 = vld [vmem:[%s319 + $0x4] sm:$0xf]
        %v375 = vunpack.c.l.bf16 %v373
        %v376 = vunpack.c.l.bf16 %v374
        %v377 = vlaneseq
        %v378 = vshrl.u32 %v377, 7
        %v379 = vadd.s32 %v378, 8
        %s380 = scalar_lea.vmem [#allocation8], 256
        %v381 = vld [vmem:[%s380] sm:$0xff]
        %v382 = vld [vmem:[%s380 + $0x8] sm:$0xff]
        %v383 = vld [vmem:[%s380 + $0x10] sm:$0xff]
        %v384 = vld [vmem:[%s380 + $0x18] sm:$0xff]
        %v385 = vld [vmem:[%s380 + $0x20] sm:$0xff]
        %v386 = vld [vmem:[%s380 + $0x28] sm:$0xff]
        %v387 = vld [vmem:[%s380 + $0x30] sm:$0xff]
        %v388 = vld [vmem:[%s380 + $0x38] sm:$0xff]
        %v389 = vld [vmem:[%s380 + $0x40] sm:$0xff]
        %v390 = vld [vmem:[%s380 + $0x48] sm:$0xff]
        %v391 = vld [vmem:[%s380 + $0x50] sm:$0xff]
        %v392 = vld [vmem:[%s380 + $0x58] sm:$0xff]
        %v393 = vld [vmem:[%s380 + $0x60] sm:$0xff]
        %v394 = vld [vmem:[%s380 + $0x68] sm:$0xff]
        %v395 = vld [vmem:[%s380 + $0x70] sm:$0xff]
        %v396 = vld [vmem:[%s380 + $0x78] sm:$0xff]
        %s397 = scalar_lea.vmem [#allocation5], 128
        %v398 = vld [vmem:[%s397] sm:$0xff]
        %v399 = vld [vmem:[%s397 + $0x8] sm:$0xff]
        %v400 = vld [vmem:[%s397 + $0x10] sm:$0xff]
        %v401 = vld [vmem:[%s397 + $0x18] sm:$0xff]
        %v402 = vld [vmem:[%s397 + $0x20] sm:$0xff]
        %v403 = vld [vmem:[%s397 + $0x28] sm:$0xff]
        %v404 = vld [vmem:[%s397 + $0x30] sm:$0xff]
        %v405 = vld [vmem:[%s397 + $0x38] sm:$0xff]
        %v406 = vld [vmem:[%s397 + $0x40] sm:$0xff]
        %v407 = vld [vmem:[%s397 + $0x48] sm:$0xff]
        %v408 = vld [vmem:[%s397 + $0x50] sm:$0xff]
        %v409 = vld [vmem:[%s397 + $0x58] sm:$0xff]
        %v410 = vld [vmem:[%s397 + $0x60] sm:$0xff]
        %v411 = vld [vmem:[%s397 + $0x68] sm:$0xff]
        %v412 = vld [vmem:[%s397 + $0x70] sm:$0xff]
        %v413 = vld [vmem:[%s397 + $0x78] sm:$0xff]
        %v414 = vrot.slane %v375, 6
        %v415 = vrot.slane %v376, 6
        %vm416 = vcmp.lt.s32.totalorder %v378, 2
        %v417 = vsel %vm416, %v414, %v415
        %v418 = vsel %vm416, %v415, %v414
        %v419 = vpack.c.bf16 %v417, %v418
        %v420 = vadd.s32 %v378, 4294967294
        %v421 = vadd.s32 %v379, 4294967294
        %vm422 = vcmp.ge.s32.totalorder %v420, 0
        %vm423 = vcmp.ge.s32.totalorder %v421, 0
        %vm424 = vmpackc.low %vm422, %vm422
        %vm425 = vmpackc.low %vm423, %vm423
        %v426 = vsel %vm424, 65537, 0
        %v427 = vsel %vm425, 65537, 0
        %v428 = vunpack.c.l.b16 %v426
        %v429 = vunpack.c.l.b16 %v427
        %v430 = vpack.c.b16 %v429, %v428
        %vm431 = vcmp.ne.s16.totalorder %v430, 0
        %v432 = vsel %vm431, %v419, 0
        %v433 = vld [vmem:[#allocation8] sm:$0xff]
        %v434 = vld [vmem:[#allocation8 + $0x8] sm:$0xff]
        %v435 = vld [vmem:[#allocation8 + $0x10] sm:$0xff]
        %v436 = vld [vmem:[#allocation8 + $0x18] sm:$0xff]
        %v437 = vld [vmem:[#allocation8 + $0x20] sm:$0xff]
        %v438 = vld [vmem:[#allocation8 + $0x28] sm:$0xff]
        %v439 = vld [vmem:[#allocation8 + $0x30] sm:$0xff]
        %v440 = vld [vmem:[#allocation8 + $0x38] sm:$0xff]
        %v441 = vld [vmem:[#allocation8 + $0x40] sm:$0xff]
        %v442 = vld [vmem:[#allocation8 + $0x48] sm:$0xff]
        %v443 = vld [vmem:[#allocation8 + $0x50] sm:$0xff]
        %v444 = vld [vmem:[#allocation8 + $0x58] sm:$0xff]
        %v445 = vld [vmem:[#allocation8 + $0x60] sm:$0xff]
        %v446 = vld [vmem:[#allocation8 + $0x68] sm:$0xff]
        %v447 = vld [vmem:[#allocation8 + $0x70] sm:$0xff]
        %v448 = vld [vmem:[#allocation8 + $0x78] sm:$0xff]
        %v465 = vunpack.c.l.b16 %v433
        %v466 = vunpack.c.h.b16 %v433
        %v467 = vunpack.c.l.b16 %v434
        %v468 = vunpack.c.h.b16 %v434
        %v469 = vunpack.c.l.b16 %v435
        %v470 = vunpack.c.h.b16 %v435
        %v471 = vunpack.c.l.b16 %v436
        %v472 = vunpack.c.h.b16 %v436
        %v473 = vunpack.c.l.b16 %v437
        %v474 = vunpack.c.h.b16 %v437
        %v475 = vunpack.c.l.b16 %v438
        %v476 = vunpack.c.h.b16 %v438
        %v477 = vunpack.c.l.b16 %v439
        %v478 = vunpack.c.h.b16 %v439
        %v479 = vunpack.c.l.b16 %v440
        %v480 = vunpack.c.h.b16 %v440
        %v481 = vunpack.c.l.b16 %v441
        %v482 = vunpack.c.h.b16 %v441
        %v483 = vunpack.c.l.b16 %v442
        %v484 = vunpack.c.h.b16 %v442
        %v485 = vunpack.c.l.b16 %v443
        %v486 = vunpack.c.h.b16 %v443
        %v487 = vunpack.c.l.b16 %v444
        %v488 = vunpack.c.h.b16 %v444
        %v489 = vunpack.c.l.b16 %v445
        %v490 = vunpack.c.h.b16 %v445
        %v491 = vunpack.c.l.b16 %v446
        %v492 = vunpack.c.h.b16 %v446
        %v493 = vunpack.c.l.b16 %v447
        %v494 = vunpack.c.h.b16 %v447
        %v495 = vunpack.c.l.b16 %v448
        %v496 = vunpack.c.h.b16 %v448
        %v497 = vpack.c.b16 %v467, %v465
        %v498 = vpack.c.b16 %v468, %v466
        %v499 = vpack.c.b16 %v471, %v469
        %v500 = vpack.c.b16 %v472, %v470
        %v501 = vpack.c.b16 %v475, %v473
        %v502 = vpack.c.b16 %v476, %v474
        %v503 = vpack.c.b16 %v479, %v477
        %v504 = vpack.c.b16 %v480, %v478
        %v505 = vpack.c.b16 %v483, %v481
        %v506 = vpack.c.b16 %v484, %v482
        %v507 = vpack.c.b16 %v487, %v485
        %v508 = vpack.c.b16 %v488, %v486
        %v509 = vpack.c.b16 %v491, %v489
        %v510 = vpack.c.b16 %v492, %v490
        %v511 = vpack.c.b16 %v495, %v493
        %v512 = vpack.c.b16 %v496, %v494
        %529 = vmatprep.subr.bf16.mxu0 %v498
        %530 = vmatpush1.bf16.msra.mxu0 %v497
        %531 = vmatprep.subr.bf16.mxu0 %v500
        %532 = vmatpush1.bf16.msra.mxu0 %v499
        %533 = vmatprep.subr.bf16.mxu0 %v502
        %534 = vmatpush1.bf16.msra.mxu0 %v501
        %535 = vmatprep.subr.bf16.mxu0 %v504
        %536 = vmatpush1.bf16.msra.mxu0 %v503
        %537 = vmatprep.subr.bf16.mxu0 %v506
        %538 = vmatpush1.bf16.msra.mxu0 %v505
        %539 = vmatprep.subr.bf16.mxu0 %v508
        %540 = vmatpush1.bf16.msra.mxu0 %v507
        %541 = vmatprep.subr.bf16.mxu0 %v510
        %542 = vmatpush1.bf16.msra.mxu0 %v509
        %543 = vmatprep.subr.bf16.mxu0 %v512
        %544 = vmatpush1.bf16.msra.mxu0 %v511
        %545 = vmatprep.subr.bf16.mxu0 0
        %546 = vmatpush1.bf16.msra.mxu0 0
        %547 = vmatprep.subr.bf16.mxu0 0
        %548 = vmatpush1.bf16.msra.mxu0 0
        %549 = vmatprep.subr.bf16.mxu0 0
        %550 = vmatpush1.bf16.msra.mxu0 0
        %551 = vmatprep.subr.bf16.mxu0 0
        %552 = vmatpush1.bf16.msra.mxu0 0
        %553 = vmatprep.subr.bf16.mxu0 0
        %554 = vmatpush1.bf16.msra.mxu0 0
        %555 = vmatprep.subr.bf16.mxu0 0
        %556 = vmatpush1.bf16.msra.mxu0 0
        %557 = vmatprep.subr.bf16.mxu0 0
        %558 = vmatpush1.bf16.msra.mxu0 0
        %559 = vmatprep.subr.bf16.mxu0 0
        %560 = vmatpush1.bf16.msra.mxu0 0
        %561 = vmatprep.mubr.bf16.mxu0 0
        %562 = vmatmul.mubr.bf16.gmra.mrb[0].mxu0 %v432
        %v563 = vpop.f32.mrb[0].mxu0
        %v564 = vadd.f32 0.0, %v563
        %v565 = vpop.f32.mrb[0].mxu0
        %v566 = vadd.f32 0.0, %v565
        %v567 = vpop.f32.mrb[0].mxu0
        %v568 = vadd.f32 0.0, %v567
        %v569 = vpop.f32.mrb[0].mxu0
        %v570 = vadd.f32 0.0, %v569
        %571 = vdwg.mxu0
        %v574 = vunpack.c.l.b16 %v373
        %v575 = vunpack.c.l.b16 %v374
        %v576 = vpack.c.b16 %v575, %v574
        %v594 = vunpack.c.l.b16 %v381
        %v595 = vunpack.c.h.b16 %v381
        %v596 = vunpack.c.l.b16 %v382
        %v597 = vunpack.c.h.b16 %v382
        %v598 = vunpack.c.l.b16 %v383
        %v599 = vunpack.c.h.b16 %v383
        %v600 = vunpack.c.l.b16 %v384
        %v601 = vunpack.c.h.b16 %v384
        %v602 = vunpack.c.l.b16 %v385
        %v603 = vunpack.c.h.b16 %v385
        %v604 = vunpack.c.l.b16 %v386
        %v605 = vunpack.c.h.b16 %v386
        %v606 = vunpack.c.l.b16 %v387
        %v607 = vunpack.c.h.b16 %v387
        %v608 = vunpack.c.l.b16 %v388
        %v609 = vunpack.c.h.b16 %v388
        %v610 = vunpack.c.l.b16 %v389
        %v611 = vunpack.c.h.b16 %v389
        %v612 = vunpack.c.l.b16 %v390
        %v613 = vunpack.c.h.b16 %v390
        %v614 = vunpack.c.l.b16 %v391
        %v615 = vunpack.c.h.b16 %v391
        %v616 = vunpack.c.l.b16 %v392
        %v617 = vunpack.c.h.b16 %v392
        %v618 = vunpack.c.l.b16 %v393
        %v619 = vunpack.c.h.b16 %v393
        %v620 = vunpack.c.l.b16 %v394
        %v621 = vunpack.c.h.b16 %v394
        %v622 = vunpack.c.l.b16 %v395
        %v623 = vunpack.c.h.b16 %v395
        %v624 = vunpack.c.l.b16 %v396
        %v625 = vunpack.c.h.b16 %v396
        %v626 = vpack.c.b16 %v596, %v594
        %v627 = vpack.c.b16 %v597, %v595
        %v628 = vpack.c.b16 %v600, %v598
        %v629 = vpack.c.b16 %v601, %v599
        %v630 = vpack.c.b16 %v604, %v602
        %v631 = vpack.c.b16 %v605, %v603
        %v632 = vpack.c.b16 %v608, %v606
        %v633 = vpack.c.b16 %v609, %v607
        %v634 = vpack.c.b16 %v612, %v610
        %v635 = vpack.c.b16 %v613, %v611
        %v636 = vpack.c.b16 %v616, %v614
        %v637 = vpack.c.b16 %v617, %v615
        %v638 = vpack.c.b16 %v620, %v618
        %v639 = vpack.c.b16 %v621, %v619
        %v640 = vpack.c.b16 %v624, %v622
        %v641 = vpack.c.b16 %v625, %v623
        %658 = vmatprep.subr.bf16.mxu0 %v627
        %659 = vmatpush1.bf16.msra.mxu0 %v626
        %660 = vmatprep.subr.bf16.mxu0 %v629
        %661 = vmatpush1.bf16.msra.mxu0 %v628
        %662 = vmatprep.subr.bf16.mxu0 %v631
        %663 = vmatpush1.bf16.msra.mxu0 %v630
        %664 = vmatprep.subr.bf16.mxu0 %v633
        %665 = vmatpush1.bf16.msra.mxu0 %v632
        %666 = vmatprep.subr.bf16.mxu0 %v635
        %667 = vmatpush1.bf16.msra.mxu0 %v634
        %668 = vmatprep.subr.bf16.mxu0 %v637
        %669 = vmatpush1.bf16.msra.mxu0 %v636
        %670 = vmatprep.subr.bf16.mxu0 %v639
        %671 = vmatpush1.bf16.msra.mxu0 %v638
        %672 = vmatprep.subr.bf16.mxu0 %v641
        %673 = vmatpush1.bf16.msra.mxu0 %v640
        %674 = vmatprep.subr.bf16.mxu0 0
        %675 = vmatpush1.bf16.msra.mxu0 0
        %676 = vmatprep.subr.bf16.mxu0 0
        %677 = vmatpush1.bf16.msra.mxu0 0
        %678 = vmatprep.subr.bf16.mxu0 0
        %679 = vmatpush1.bf16.msra.mxu0 0
        %680 = vmatprep.subr.bf16.mxu0 0
        %681 = vmatpush1.bf16.msra.mxu0 0
        %682 = vmatprep.subr.bf16.mxu0 0
        %683 = vmatpush1.bf16.msra.mxu0 0
        %684 = vmatprep.subr.bf16.mxu0 0
        %685 = vmatpush1.bf16.msra.mxu0 0
        %686 = vmatprep.subr.bf16.mxu0 0
        %687 = vmatpush1.bf16.msra.mxu0 0
        %688 = vmatprep.subr.bf16.mxu0 0
        %689 = vmatpush1.bf16.msra.mxu0 0
        %690 = vmatprep.mubr.bf16.mxu0 0
        %691 = vmatmul.mubr.bf16.gmra.mrb[0].mxu0 %v576
        %v692 = vpop.f32.mrb[0].mxu0
        %v693 = vadd.f32 %v564, %v692
        %v694 = vpop.f32.mrb[0].mxu0
        %v695 = vadd.f32 %v566, %v694
        %v696 = vpop.f32.mrb[0].mxu0
        %v697 = vadd.f32 %v568, %v696
        %v698 = vpop.f32.mrb[0].mxu0
        %v699 = vadd.f32 %v570, %v698
        %700 = vdwg.mxu0
        %v701 = vrot.slane %v375, 7
        %v702 = vrot.slane %v376, 7
        %vm703 = vcmp.lt.s32.totalorder %v378, 1
        %v704 = vsel %vm703, %v701, %v702
        %v705 = vsel %vm703, %v702, %v701
        %v706 = vpack.c.bf16 %v704, %v705
        %v707 = vadd.s32 %v378, 4294967295
        %v708 = vadd.s32 %v379, 4294967295
        %vm709 = vcmp.ge.s32.totalorder %v707, 0
        %vm710 = vcmp.ge.s32.totalorder %v708, 0
        %vm711 = vmpackc.low %vm709, %vm709
        %vm712 = vmpackc.low %vm710, %vm710
        %v713 = vsel %vm711, 65537, 0
        %v714 = vsel %vm712, 65537, 0
        %v715 = vunpack.c.l.b16 %v713
        %v716 = vunpack.c.l.b16 %v714
        %v717 = vpack.c.b16 %v716, %v715
        %vm718 = vcmp.ne.s16.totalorder %v717, 0
        %v719 = vsel %vm718, %v706, 0
        %s720 = scalar_lea.vmem [#allocation8], 128
        %v721 = vld [vmem:[%s720] sm:$0xff]
        %v722 = vld [vmem:[%s720 + $0x8] sm:$0xff]
        %v723 = vld [vmem:[%s720 + $0x10] sm:$0xff]
        %v724 = vld [vmem:[%s720 + $0x18] sm:$0xff]
        %v725 = vld [vmem:[%s720 + $0x20] sm:$0xff]
        %v726 = vld [vmem:[%s720 + $0x28] sm:$0xff]
        %v727 = vld [vmem:[%s720 + $0x30] sm:$0xff]
        %v728 = vld [vmem:[%s720 + $0x38] sm:$0xff]
        %v729 = vld [vmem:[%s720 + $0x40] sm:$0xff]
        %v730 = vld [vmem:[%s720 + $0x48] sm:$0xff]
        %v731 = vld [vmem:[%s720 + $0x50] sm:$0xff]
        %v732 = vld [vmem:[%s720 + $0x58] sm:$0xff]
        %v733 = vld [vmem:[%s720 + $0x60] sm:$0xff]
        %v734 = vld [vmem:[%s720 + $0x68] sm:$0xff]
        %v735 = vld [vmem:[%s720 + $0x70] sm:$0xff]
        %v736 = vld [vmem:[%s720 + $0x78] sm:$0xff]
        %v753 = vunpack.c.l.b16 %v721
        %v754 = vunpack.c.h.b16 %v721
        %v755 = vunpack.c.l.b16 %v722
        %v756 = vunpack.c.h.b16 %v722
        %v757 = vunpack.c.l.b16 %v723
        %v758 = vunpack.c.h.b16 %v723
        %v759 = vunpack.c.l.b16 %v724
        %v760 = vunpack.c.h.b16 %v724
        %v761 = vunpack.c.l.b16 %v725
        %v762 = vunpack.c.h.b16 %v725
        %v763 = vunpack.c.l.b16 %v726
        %v764 = vunpack.c.h.b16 %v726
        %v765 = vunpack.c.l.b16 %v727
        %v766 = vunpack.c.h.b16 %v727
        %v767 = vunpack.c.l.b16 %v728
        %v768 = vunpack.c.h.b16 %v728
        %v769 = vunpack.c.l.b16 %v729
        %v770 = vunpack.c.h.b16 %v729
        %v771 = vunpack.c.l.b16 %v730
        %v772 = vunpack.c.h.b16 %v730
        %v773 = vunpack.c.l.b16 %v731
        %v774 = vunpack.c.h.b16 %v731
        %v775 = vunpack.c.l.b16 %v732
        %v776 = vunpack.c.h.b16 %v732
        %v777 = vunpack.c.l.b16 %v733
        %v778 = vunpack.c.h.b16 %v733
        %v779 = vunpack.c.l.b16 %v734
        %v780 = vunpack.c.h.b16 %v734
        %v781 = vunpack.c.l.b16 %v735
        %v782 = vunpack.c.h.b16 %v735
        %v783 = vunpack.c.l.b16 %v736
        %v784 = vunpack.c.h.b16 %v736
        %v785 = vpack.c.b16 %v755, %v753
        %v786 = vpack.c.b16 %v756, %v754
        %v787 = vpack.c.b16 %v759, %v757
        %v788 = vpack.c.b16 %v760, %v758
        %v789 = vpack.c.b16 %v763, %v761
        %v790 = vpack.c.b16 %v764, %v762
        %v791 = vpack.c.b16 %v767, %v765
        %v792 = vpack.c.b16 %v768, %v766
        %v793 = vpack.c.b16 %v771, %v769
        %v794 = vpack.c.b16 %v772, %v770
        %v795 = vpack.c.b16 %v775, %v773
        %v796 = vpack.c.b16 %v776, %v774
        %v797 = vpack.c.b16 %v779, %v777
        %v798 = vpack.c.b16 %v780, %v778
        %v799 = vpack.c.b16 %v783, %v781
        %v800 = vpack.c.b16 %v784, %v782
        %817 = vmatprep.subr.bf16.mxu0 %v786
        %818 = vmatpush1.bf16.msra.mxu0 %v785
        %819 = vmatprep.subr.bf16.mxu0 %v788
        %820 = vmatpush1.bf16.msra.mxu0 %v787
        %821 = vmatprep.subr.bf16.mxu0 %v790
        %822 = vmatpush1.bf16.msra.mxu0 %v789
        %823 = vmatprep.subr.bf16.mxu0 %v792
        %824 = vmatpush1.bf16.msra.mxu0 %v791
        %825 = vmatprep.subr.bf16.mxu0 %v794
        %826 = vmatpush1.bf16.msra.mxu0 %v793
        %827 = vmatprep.subr.bf16.mxu0 %v796
        %828 = vmatpush1.bf16.msra.mxu0 %v795
        %829 = vmatprep.subr.bf16.mxu0 %v798
        %830 = vmatpush1.bf16.msra.mxu0 %v797
        %831 = vmatprep.subr.bf16.mxu0 %v800
        %832 = vmatpush1.bf16.msra.mxu0 %v799
        %833 = vmatprep.subr.bf16.mxu0 0
        %834 = vmatpush1.bf16.msra.mxu0 0
        %835 = vmatprep.subr.bf16.mxu0 0
        %836 = vmatpush1.bf16.msra.mxu0 0
        %837 = vmatprep.subr.bf16.mxu0 0
        %838 = vmatpush1.bf16.msra.mxu0 0
        %839 = vmatprep.subr.bf16.mxu0 0
        %840 = vmatpush1.bf16.msra.mxu0 0
        %841 = vmatprep.subr.bf16.mxu0 0
        %842 = vmatpush1.bf16.msra.mxu0 0
        %843 = vmatprep.subr.bf16.mxu0 0
        %844 = vmatpush1.bf16.msra.mxu0 0
        %845 = vmatprep.subr.bf16.mxu0 0
        %846 = vmatpush1.bf16.msra.mxu0 0
        %847 = vmatprep.subr.bf16.mxu0 0
        %848 = vmatpush1.bf16.msra.mxu0 0
        %849 = vmatprep.mubr.bf16.mxu0 0
        %850 = vmatmul.mubr.bf16.gmra.mrb[0].mxu0 %v719
        %v851 = vpop.f32.mrb[0].mxu0
        %v852 = vadd.f32 0.0, %v851
        %v853 = vpop.f32.mrb[0].mxu0
        %v854 = vadd.f32 0.0, %v853
        %v855 = vpop.f32.mrb[0].mxu0
        %v856 = vadd.f32 0.0, %v855
        %v857 = vpop.f32.mrb[0].mxu0
        %v858 = vadd.f32 0.0, %v857
        %859 = vdwg.mxu0
        %v860 = vadd.f32 %v693, %v852
        %v861 = vadd.f32 %v695, %v854
        %v862 = vadd.f32 %v697, %v856
        %v863 = vadd.f32 %v699, %v858
        %v864 = vld [vmem:[#allocation5] sm:$0xff]
        %v865 = vld [vmem:[#allocation5 + $0x8] sm:$0xff]
        %v866 = vld [vmem:[#allocation5 + $0x10] sm:$0xff]
        %v867 = vld [vmem:[#allocation5 + $0x18] sm:$0xff]
        %v868 = vld [vmem:[#allocation5 + $0x20] sm:$0xff]
        %v869 = vld [vmem:[#allocation5 + $0x28] sm:$0xff]
        %v870 = vld [vmem:[#allocation5 + $0x30] sm:$0xff]
        %v871 = vld [vmem:[#allocation5 + $0x38] sm:$0xff]
        %v872 = vld [vmem:[#allocation5 + $0x40] sm:$0xff]
        %v873 = vld [vmem:[#allocation5 + $0x48] sm:$0xff]
        %v874 = vld [vmem:[#allocation5 + $0x50] sm:$0xff]
        %v875 = vld [vmem:[#allocation5 + $0x58] sm:$0xff]
        %v876 = vld [vmem:[#allocation5 + $0x60] sm:$0xff]
        %v877 = vld [vmem:[#allocation5 + $0x68] sm:$0xff]
        %v878 = vld [vmem:[#allocation5 + $0x70] sm:$0xff]
        %v879 = vld [vmem:[#allocation5 + $0x78] sm:$0xff]
        %v896 = vunpack.c.l.b16 %v864
        %v897 = vunpack.c.h.b16 %v864
        %v898 = vunpack.c.l.b16 %v865
        %v899 = vunpack.c.h.b16 %v865
        %v900 = vunpack.c.l.b16 %v866
        %v901 = vunpack.c.h.b16 %v866
        %v902 = vunpack.c.l.b16 %v867
        %v903 = vunpack.c.h.b16 %v867
        %v904 = vunpack.c.l.b16 %v868
        %v905 = vunpack.c.h.b16 %v868
        %v906 = vunpack.c.l.b16 %v869
        %v907 = vunpack.c.h.b16 %v869
        %v908 = vunpack.c.l.b16 %v870
        %v909 = vunpack.c.h.b16 %v870
        %v910 = vunpack.c.l.b16 %v871
        %v911 = vunpack.c.h.b16 %v871
        %v912 = vunpack.c.l.b16 %v872
        %v913 = vunpack.c.h.b16 %v872
        %v914 = vunpack.c.l.b16 %v873
        %v915 = vunpack.c.h.b16 %v873
        %v916 = vunpack.c.l.b16 %v874
        %v917 = vunpack.c.h.b16 %v874
        %v918 = vunpack.c.l.b16 %v875
        %v919 = vunpack.c.h.b16 %v875
        %v920 = vunpack.c.l.b16 %v876
        %v921 = vunpack.c.h.b16 %v876
        %v922 = vunpack.c.l.b16 %v877
        %v923 = vunpack.c.h.b16 %v877
        %v924 = vunpack.c.l.b16 %v878
        %v925 = vunpack.c.h.b16 %v878
        %v926 = vunpack.c.l.b16 %v879
        %v927 = vunpack.c.h.b16 %v879
        %v928 = vpack.c.b16 %v898, %v896
        %v929 = vpack.c.b16 %v899, %v897
        %v930 = vpack.c.b16 %v902, %v900
        %v931 = vpack.c.b16 %v903, %v901
        %v932 = vpack.c.b16 %v906, %v904
        %v933 = vpack.c.b16 %v907, %v905
        %v934 = vpack.c.b16 %v910, %v908
        %v935 = vpack.c.b16 %v911, %v909
        %v936 = vpack.c.b16 %v914, %v912
        %v937 = vpack.c.b16 %v915, %v913
        %v938 = vpack.c.b16 %v918, %v916
        %v939 = vpack.c.b16 %v919, %v917
        %v940 = vpack.c.b16 %v922, %v920
        %v941 = vpack.c.b16 %v923, %v921
        %v942 = vpack.c.b16 %v926, %v924
        %v943 = vpack.c.b16 %v927, %v925
        %960 = vmatprep.subr.bf16.mxu0 %v929
        %961 = vmatpush1.bf16.msra.mxu0 %v928
        %962 = vmatprep.subr.bf16.mxu0 %v931
        %963 = vmatpush1.bf16.msra.mxu0 %v930
        %964 = vmatprep.subr.bf16.mxu0 %v933
        %965 = vmatpush1.bf16.msra.mxu0 %v932
        %966 = vmatprep.subr.bf16.mxu0 %v935
        %967 = vmatpush1.bf16.msra.mxu0 %v934
        %968 = vmatprep.subr.bf16.mxu0 %v937
        %969 = vmatpush1.bf16.msra.mxu0 %v936
        %970 = vmatprep.subr.bf16.mxu0 %v939
        %971 = vmatpush1.bf16.msra.mxu0 %v938
        %972 = vmatprep.subr.bf16.mxu0 %v941
        %973 = vmatpush1.bf16.msra.mxu0 %v940
        %974 = vmatprep.subr.bf16.mxu0 %v943
        %975 = vmatpush1.bf16.msra.mxu0 %v942
        %976 = vmatprep.subr.bf16.mxu0 0
        %977 = vmatpush1.bf16.msra.mxu0 0
        %978 = vmatprep.subr.bf16.mxu0 0
        %979 = vmatpush1.bf16.msra.mxu0 0
        %980 = vmatprep.subr.bf16.mxu0 0
        %981 = vmatpush1.bf16.msra.mxu0 0
        %982 = vmatprep.subr.bf16.mxu0 0
        %983 = vmatpush1.bf16.msra.mxu0 0
        %984 = vmatprep.subr.bf16.mxu0 0
        %985 = vmatpush1.bf16.msra.mxu0 0
        %986 = vmatprep.subr.bf16.mxu0 0
        %987 = vmatpush1.bf16.msra.mxu0 0
        %988 = vmatprep.subr.bf16.mxu0 0
        %989 = vmatpush1.bf16.msra.mxu0 0
        %990 = vmatprep.subr.bf16.mxu0 0
        %991 = vmatpush1.bf16.msra.mxu0 0
        %992 = vmatprep.mubr.bf16.mxu0 0
        %993 = vmatmul.mubr.bf16.gmra.mrb[0].mxu0 %v719
        %v994 = vpop.f32.mrb[0].mxu0
        %v995 = vadd.f32 0.0, %v994
        %v996 = vpop.f32.mrb[0].mxu0
        %v997 = vadd.f32 0.0, %v996
        %v998 = vpop.f32.mrb[0].mxu0
        %v999 = vadd.f32 0.0, %v998
        %v1000 = vpop.f32.mrb[0].mxu0
        %v1001 = vadd.f32 0.0, %v1000
        %1002 = vdwg.mxu0
        %v1019 = vunpack.c.l.b16 %v398
        %v1020 = vunpack.c.h.b16 %v398
        %v1021 = vunpack.c.l.b16 %v399
        %v1022 = vunpack.c.h.b16 %v399
        %v1023 = vunpack.c.l.b16 %v400
        %v1024 = vunpack.c.h.b16 %v400
        %v1025 = vunpack.c.l.b16 %v401
        %v1026 = vunpack.c.h.b16 %v401
        %v1027 = vunpack.c.l.b16 %v402
        %v1028 = vunpack.c.h.b16 %v402
        %v1029 = vunpack.c.l.b16 %v403
        %v1030 = vunpack.c.h.b16 %v403
        %v1031 = vunpack.c.l.b16 %v404
        %v1032 = vunpack.c.h.b16 %v404
        %v1033 = vunpack.c.l.b16 %v405
        %v1034 = vunpack.c.h.b16 %v405
        %v1035 = vunpack.c.l.b16 %v406
        %v1036 = vunpack.c.h.b16 %v406
        %v1037 = vunpack.c.l.b16 %v407
        %v1038 = vunpack.c.h.b16 %v407
        %v1039 = vunpack.c.l.b16 %v408
        %v1040 = vunpack.c.h.b16 %v408
        %v1041 = vunpack.c.l.b16 %v409
        %v1042 = vunpack.c.h.b16 %v409
        %v1043 = vunpack.c.l.b16 %v410
        %v1044 = vunpack.c.h.b16 %v410
        %v1045 = vunpack.c.l.b16 %v411
        %v1046 = vunpack.c.h.b16 %v411
        %v1047 = vunpack.c.l.b16 %v412
        %v1048 = vunpack.c.h.b16 %v412
        %v1049 = vunpack.c.l.b16 %v413
        %v1050 = vunpack.c.h.b16 %v413
        %v1051 = vpack.c.b16 %v1021, %v1019
        %v1052 = vpack.c.b16 %v1022, %v1020
        %v1053 = vpack.c.b16 %v1025, %v1023
        %v1054 = vpack.c.b16 %v1026, %v1024
        %v1055 = vpack.c.b16 %v1029, %v1027
        %v1056 = vpack.c.b16 %v1030, %v1028
        %v1057 = vpack.c.b16 %v1033, %v1031
        %v1058 = vpack.c.b16 %v1034, %v1032
        %v1059 = vpack.c.b16 %v1037, %v1035
        %v1060 = vpack.c.b16 %v1038, %v1036
        %v1061 = vpack.c.b16 %v1041, %v1039
        %v1062 = vpack.c.b16 %v1042, %v1040
        %v1063 = vpack.c.b16 %v1045, %v1043
        %v1064 = vpack.c.b16 %v1046, %v1044
        %v1065 = vpack.c.b16 %v1049, %v1047
        %v1066 = vpack.c.b16 %v1050, %v1048
        %1083 = vmatprep.subr.bf16.mxu0 %v1052
        %1084 = vmatpush1.bf16.msra.mxu0 %v1051
        %1085 = vmatprep.subr.bf16.mxu0 %v1054
        %1086 = vmatpush1.bf16.msra.mxu0 %v1053
        %1087 = vmatprep.subr.bf16.mxu0 %v1056
        %1088 = vmatpush1.bf16.msra.mxu0 %v1055
        %1089 = vmatprep.subr.bf16.mxu0 %v1058
        %1090 = vmatpush1.bf16.msra.mxu0 %v1057
        %1091 = vmatprep.subr.bf16.mxu0 %v1060
        %1092 = vmatpush1.bf16.msra.mxu0 %v1059
        %1093 = vmatprep.subr.bf16.mxu0 %v1062
        %1094 = vmatpush1.bf16.msra.mxu0 %v1061
        %1095 = vmatprep.subr.bf16.mxu0 %v1064
        %1096 = vmatpush1.bf16.msra.mxu0 %v1063
        %1097 = vmatprep.subr.bf16.mxu0 %v1066
        %1098 = vmatpush1.bf16.msra.mxu0 %v1065
        %1099 = vmatprep.subr.bf16.mxu0 0
        %1100 = vmatpush1.bf16.msra.mxu0 0
        %1101 = vmatprep.subr.bf16.mxu0 0
        %1102 = vmatpush1.bf16.msra.mxu0 0
        %1103 = vmatprep.subr.bf16.mxu0 0
        %1104 = vmatpush1.bf16.msra.mxu0 0
        %1105 = vmatprep.subr.bf16.mxu0 0
        %1106 = vmatpush1.bf16.msra.mxu0 0
        %1107 = vmatprep.subr.bf16.mxu0 0
        %1108 = vmatpush1.bf16.msra.mxu0 0
        %1109 = vmatprep.subr.bf16.mxu0 0
        %1110 = vmatpush1.bf16.msra.mxu0 0
        %1111 = vmatprep.subr.bf16.mxu0 0
        %1112 = vmatpush1.bf16.msra.mxu0 0
        %1113 = vmatprep.subr.bf16.mxu0 0
        %1114 = vmatpush1.bf16.msra.mxu0 0
        %1115 = vmatprep.mubr.bf16.mxu0 0
        %1116 = vmatmul.mubr.bf16.gmra.mrb[0].mxu0 %v576
        %v1117 = vpop.f32.mrb[0].mxu0
        %v1118 = vadd.f32 %v995, %v1117
        %v1119 = vpop.f32.mrb[0].mxu0
        %v1120 = vadd.f32 %v997, %v1119
        %v1121 = vpop.f32.mrb[0].mxu0
        %v1122 = vadd.f32 %v999, %v1121
        %v1123 = vpop.f32.mrb[0].mxu0
        %v1124 = vadd.f32 %v1001, %v1123
        %1125 = vdwg.mxu0
        %v1126 = vrot.slane %v375, 1
        %v1127 = vrot.slane %v376, 1
        %vm1128 = vcmp.lt.s32.totalorder %v378, 7
        %v1129 = vsel %vm1128, %v1126, %v1127
        %v1130 = vsel %vm1128, %v1127, %v1126
        %v1131 = vpack.c.bf16 %v1130, %v1129
        %v1132 = vadd.s32 %v378, 1
        %v1133 = vadd.s32 %v379, 1
        %vm1134 = vcmp.lt.s32.totalorder %v1132, 16
        %vm1135 = vcmp.lt.s32.totalorder %v1133, 16
        %vm1136 = vmpackc.low %vm1134, %vm1134
        %vm1137 = vmpackc.low %vm1135, %vm1135
        %v1138 = vsel %vm1136, 65537, 0
        %v1139 = vsel %vm1137, 65537, 0
        %v1140 = vunpack.c.l.b16 %v1138
        %v1141 = vunpack.c.l.b16 %v1139
        %v1142 = vpack.c.b16 %v1141, %v1140
        %vm1143 = vcmp.ne.s16.totalorder %v1142, 0
        %v1144 = vsel %vm1143, %v1131, 0
        %s1145 = scalar_lea.vmem [#allocation8], 384
        %v1146 = vld [vmem:[%s1145] sm:$0xff]
        %v1147 = vld [vmem:[%s1145 + $0x8] sm:$0xff]
        %v1148 = vld [vmem:[%s1145 + $0x10] sm:$0xff]
        %v1149 = vld [vmem:[%s1145 + $0x18] sm:$0xff]
        %v1150 = vld [vmem:[%s1145 + $0x20] sm:$0xff]
        %v1151 = vld [vmem:[%s1145 + $0x28] sm:$0xff]
        %v1152 = vld [vmem:[%s1145 + $0x30] sm:$0xff]
        %v1153 = vld [vmem:[%s1145 + $0x38] sm:$0xff]
        %v1154 = vld [vmem:[%s1145 + $0x40] sm:$0xff]
        %v1155 = vld [vmem:[%s1145 + $0x48] sm:$0xff]
        %v1156 = vld [vmem:[%s1145 + $0x50] sm:$0xff]
        %v1157 = vld [vmem:[%s1145 + $0x58] sm:$0xff]
        %v1158 = vld [vmem:[%s1145 + $0x60] sm:$0xff]
        %v1159 = vld [vmem:[%s1145 + $0x68] sm:$0xff]
        %v1160 = vld [vmem:[%s1145 + $0x70] sm:$0xff]
        %v1161 = vld [vmem:[%s1145 + $0x78] sm:$0xff]
        %v1178 = vunpack.c.l.b16 %v1146
        %v1179 = vunpack.c.h.b16 %v1146
        %v1180 = vunpack.c.l.b16 %v1147
        %v1181 = vunpack.c.h.b16 %v1147
        %v1182 = vunpack.c.l.b16 %v1148
        %v1183 = vunpack.c.h.b16 %v1148
        %v1184 = vunpack.c.l.b16 %v1149
        %v1185 = vunpack.c.h.b16 %v1149
        %v1186 = vunpack.c.l.b16 %v1150
        %v1187 = vunpack.c.h.b16 %v1150
        %v1188 = vunpack.c.l.b16 %v1151
        %v1189 = vunpack.c.h.b16 %v1151
        %v1190 = vunpack.c.l.b16 %v1152
        %v1191 = vunpack.c.h.b16 %v1152
        %v1192 = vunpack.c.l.b16 %v1153
        %v1193 = vunpack.c.h.b16 %v1153
        %v1194 = vunpack.c.l.b16 %v1154
        %v1195 = vunpack.c.h.b16 %v1154
        %v1196 = vunpack.c.l.b16 %v1155
        %v1197 = vunpack.c.h.b16 %v1155
        %v1198 = vunpack.c.l.b16 %v1156
        %v1199 = vunpack.c.h.b16 %v1156
        %v1200 = vunpack.c.l.b16 %v1157
        %v1201 = vunpack.c.h.b16 %v1157
        %v1202 = vunpack.c.l.b16 %v1158
        %v1203 = vunpack.c.h.b16 %v1158
        %v1204 = vunpack.c.l.b16 %v1159
        %v1205 = vunpack.c.h.b16 %v1159
        %v1206 = vunpack.c.l.b16 %v1160
        %v1207 = vunpack.c.h.b16 %v1160
        %v1208 = vunpack.c.l.b16 %v1161
        %v1209 = vunpack.c.h.b16 %v1161
        %v1210 = vpack.c.b16 %v1180, %v1178
        %v1211 = vpack.c.b16 %v1181, %v1179
        %v1212 = vpack.c.b16 %v1184, %v1182
        %v1213 = vpack.c.b16 %v1185, %v1183
        %v1214 = vpack.c.b16 %v1188, %v1186
        %v1215 = vpack.c.b16 %v1189, %v1187
        %v1216 = vpack.c.b16 %v1192, %v1190
        %v1217 = vpack.c.b16 %v1193, %v1191
        %v1218 = vpack.c.b16 %v1196, %v1194
        %v1219 = vpack.c.b16 %v1197, %v1195
        %v1220 = vpack.c.b16 %v1200, %v1198
        %v1221 = vpack.c.b16 %v1201, %v1199
        %v1222 = vpack.c.b16 %v1204, %v1202
        %v1223 = vpack.c.b16 %v1205, %v1203
        %v1224 = vpack.c.b16 %v1208, %v1206
        %v1225 = vpack.c.b16 %v1209, %v1207
        %1242 = vmatprep.subr.bf16.mxu0 %v1211
        %1243 = vmatpush1.bf16.msra.mxu0 %v1210
        %1244 = vmatprep.subr.bf16.mxu0 %v1213
        %1245 = vmatpush1.bf16.msra.mxu0 %v1212
        %1246 = vmatprep.subr.bf16.mxu0 %v1215
        %1247 = vmatpush1.bf16.msra.mxu0 %v1214
        %1248 = vmatprep.subr.bf16.mxu0 %v1217
        %1249 = vmatpush1.bf16.msra.mxu0 %v1216
        %1250 = vmatprep.subr.bf16.mxu0 %v1219
        %1251 = vmatpush1.bf16.msra.mxu0 %v1218
        %1252 = vmatprep.subr.bf16.mxu0 %v1221
        %1253 = vmatpush1.bf16.msra.mxu0 %v1220
        %1254 = vmatprep.subr.bf16.mxu0 %v1223
        %1255 = vmatpush1.bf16.msra.mxu0 %v1222
        %1256 = vmatprep.subr.bf16.mxu0 %v1225
        %1257 = vmatpush1.bf16.msra.mxu0 %v1224
        %1258 = vmatprep.subr.bf16.mxu0 0
        %1259 = vmatpush1.bf16.msra.mxu0 0
        %1260 = vmatprep.subr.bf16.mxu0 0
        %1261 = vmatpush1.bf16.msra.mxu0 0
        %1262 = vmatprep.subr.bf16.mxu0 0
        %1263 = vmatpush1.bf16.msra.mxu0 0
        %1264 = vmatprep.subr.bf16.mxu0 0
        %1265 = vmatpush1.bf16.msra.mxu0 0
        %1266 = vmatprep.subr.bf16.mxu0 0
        %1267 = vmatpush1.bf16.msra.mxu0 0
        %1268 = vmatprep.subr.bf16.mxu0 0
        %1269 = vmatpush1.bf16.msra.mxu0 0
        %1270 = vmatprep.subr.bf16.mxu0 0
        %1271 = vmatpush1.bf16.msra.mxu0 0
        %1272 = vmatprep.subr.bf16.mxu0 0
        %1273 = vmatpush1.bf16.msra.mxu0 0
        %1274 = vmatprep.mubr.bf16.mxu0 0
        %1275 = vmatmul.mubr.bf16.gmra.mrb[0].mxu0 %v1144
        %v1276 = vpop.f32.mrb[0].mxu0
        %v1277 = vadd.f32 0.0, %v1276
        %v1278 = vpop.f32.mrb[0].mxu0
        %v1279 = vadd.f32 0.0, %v1278
        %v1280 = vpop.f32.mrb[0].mxu0
        %v1281 = vadd.f32 0.0, %v1280
        %v1282 = vpop.f32.mrb[0].mxu0
        %v1283 = vadd.f32 0.0, %v1282
        %1284 = vdwg.mxu0
        %v1285 = vadd.f32 %v860, %v1277
        %v1286 = vadd.f32 %v861, %v1279
        %v1287 = vadd.f32 %v862, %v1281
        %v1288 = vadd.f32 %v863, %v1283
        %s1289 = scalar_lea.vmem [#allocation5], 256
        %v1290 = vld [vmem:[%s1289] sm:$0xff]
        %v1291 = vld [vmem:[%s1289 + $0x8] sm:$0xff]
        %v1292 = vld [vmem:[%s1289 + $0x10] sm:$0xff]
        %v1293 = vld [vmem:[%s1289 + $0x18] sm:$0xff]
        %v1294 = vld [vmem:[%s1289 + $0x20] sm:$0xff]
        %v1295 = vld [vmem:[%s1289 + $0x28] sm:$0xff]
        %v1296 = vld [vmem:[%s1289 + $0x30] sm:$0xff]
        %v1297 = vld [vmem:[%s1289 + $0x38] sm:$0xff]
        %v1298 = vld [vmem:[%s1289 + $0x40] sm:$0xff]
        %v1299 = vld [vmem:[%s1289 + $0x48] sm:$0xff]
        %v1300 = vld [vmem:[%s1289 + $0x50] sm:$0xff]
        %v1301 = vld [vmem:[%s1289 + $0x58] sm:$0xff]
        %v1302 = vld [vmem:[%s1289 + $0x60] sm:$0xff]
        %v1303 = vld [vmem:[%s1289 + $0x68] sm:$0xff]
        %v1304 = vld [vmem:[%s1289 + $0x70] sm:$0xff]
        %v1305 = vld [vmem:[%s1289 + $0x78] sm:$0xff]
        %v1322 = vunpack.c.l.b16 %v1290
        %v1323 = vunpack.c.h.b16 %v1290
        %v1324 = vunpack.c.l.b16 %v1291
        %v1325 = vunpack.c.h.b16 %v1291
        %v1326 = vunpack.c.l.b16 %v1292
        %v1327 = vunpack.c.h.b16 %v1292
        %v1328 = vunpack.c.l.b16 %v1293
        %v1329 = vunpack.c.h.b16 %v1293
        %v1330 = vunpack.c.l.b16 %v1294
        %v1331 = vunpack.c.h.b16 %v1294
        %v1332 = vunpack.c.l.b16 %v1295
        %v1333 = vunpack.c.h.b16 %v1295
        %v1334 = vunpack.c.l.b16 %v1296
        %v1335 = vunpack.c.h.b16 %v1296
        %v1336 = vunpack.c.l.b16 %v1297
        %v1337 = vunpack.c.h.b16 %v1297
        %v1338 = vunpack.c.l.b16 %v1298
        %v1339 = vunpack.c.h.b16 %v1298
        %v1340 = vunpack.c.l.b16 %v1299
        %v1341 = vunpack.c.h.b16 %v1299
        %v1342 = vunpack.c.l.b16 %v1300
        %v1343 = vunpack.c.h.b16 %v1300
        %v1344 = vunpack.c.l.b16 %v1301
        %v1345 = vunpack.c.h.b16 %v1301
        %v1346 = vunpack.c.l.b16 %v1302
        %v1347 = vunpack.c.h.b16 %v1302
        %v1348 = vunpack.c.l.b16 %v1303
        %v1349 = vunpack.c.h.b16 %v1303
        %v1350 = vunpack.c.l.b16 %v1304
        %v1351 = vunpack.c.h.b16 %v1304
        %v1352 = vunpack.c.l.b16 %v1305
        %v1353 = vunpack.c.h.b16 %v1305
        %v1354 = vpack.c.b16 %v1324, %v1322
        %v1355 = vpack.c.b16 %v1325, %v1323
        %v1356 = vpack.c.b16 %v1328, %v1326
        %v1357 = vpack.c.b16 %v1329, %v1327
        %v1358 = vpack.c.b16 %v1332, %v1330
        %v1359 = vpack.c.b16 %v1333, %v1331
        %v1360 = vpack.c.b16 %v1336, %v1334
        %v1361 = vpack.c.b16 %v1337, %v1335
        %v1362 = vpack.c.b16 %v1340, %v1338
        %v1363 = vpack.c.b16 %v1341, %v1339
        %v1364 = vpack.c.b16 %v1344, %v1342
        %v1365 = vpack.c.b16 %v1345, %v1343
        %v1366 = vpack.c.b16 %v1348, %v1346
        %v1367 = vpack.c.b16 %v1349, %v1347
        %v1368 = vpack.c.b16 %v1352, %v1350
        %v1369 = vpack.c.b16 %v1353, %v1351
        %1386 = vmatprep.subr.bf16.mxu0 %v1355
        %1387 = vmatpush1.bf16.msra.mxu0 %v1354
        %1388 = vmatprep.subr.bf16.mxu0 %v1357
        %1389 = vmatpush1.bf16.msra.mxu0 %v1356
        %1390 = vmatprep.subr.bf16.mxu0 %v1359
        %1391 = vmatpush1.bf16.msra.mxu0 %v1358
        %1392 = vmatprep.subr.bf16.mxu0 %v1361
        %1393 = vmatpush1.bf16.msra.mxu0 %v1360
        %1394 = vmatprep.subr.bf16.mxu0 %v1363
        %1395 = vmatpush1.bf16.msra.mxu0 %v1362
        %1396 = vmatprep.subr.bf16.mxu0 %v1365
        %1397 = vmatpush1.bf16.msra.mxu0 %v1364
        %1398 = vmatprep.subr.bf16.mxu0 %v1367
        %1399 = vmatpush1.bf16.msra.mxu0 %v1366
        %1400 = vmatprep.subr.bf16.mxu0 %v1369
        %1401 = vmatpush1.bf16.msra.mxu0 %v1368
        %1402 = vmatprep.subr.bf16.mxu0 0
        %1403 = vmatpush1.bf16.msra.mxu0 0
        %1404 = vmatprep.subr.bf16.mxu0 0
        %1405 = vmatpush1.bf16.msra.mxu0 0
        %1406 = vmatprep.subr.bf16.mxu0 0
        %1407 = vmatpush1.bf16.msra.mxu0 0
        %1408 = vmatprep.subr.bf16.mxu0 0
        %1409 = vmatpush1.bf16.msra.mxu0 0
        %1410 = vmatprep.subr.bf16.mxu0 0
        %1411 = vmatpush1.bf16.msra.mxu0 0
        %1412 = vmatprep.subr.bf16.mxu0 0
        %1413 = vmatpush1.bf16.msra.mxu0 0
        %1414 = vmatprep.subr.bf16.mxu0 0
        %1415 = vmatpush1.bf16.msra.mxu0 0
        %1416 = vmatprep.subr.bf16.mxu0 0
        %1417 = vmatpush1.bf16.msra.mxu0 0
        %1418 = vmatprep.mubr.bf16.mxu0 0
        %1419 = vmatmul.mubr.bf16.gmra.mrb[0].mxu0 %v1144
        %v1420 = vpop.f32.mrb[0].mxu0
        %v1421 = vadd.f32 0.0, %v1420
        %v1422 = vpop.f32.mrb[0].mxu0
        %v1423 = vadd.f32 0.0, %v1422
        %v1424 = vpop.f32.mrb[0].mxu0
        %v1425 = vadd.f32 0.0, %v1424
        %v1426 = vpop.f32.mrb[0].mxu0
        %v1427 = vadd.f32 0.0, %v1426
        %1428 = vdwg.mxu0
        %v1429 = vadd.f32 %v1118, %v1421
        %v1430 = vadd.f32 %v1120, %v1423
        %v1431 = vadd.f32 %v1122, %v1425
        %v1432 = vadd.f32 %v1124, %v1427
        %v1433 = vrot.slane %v375, 2
        %v1434 = vrot.slane %v376, 2
        %vm1435 = vcmp.lt.s32.totalorder %v378, 6
        %v1436 = vsel %vm1435, %v1433, %v1434
        %v1437 = vsel %vm1435, %v1434, %v1433
        %v1438 = vpack.c.bf16 %v1437, %v1436
        %v1439 = vadd.s32 %v378, 2
        %v1440 = vadd.s32 %v379, 2
        %vm1441 = vcmp.lt.s32.totalorder %v1439, 16
        %vm1442 = vcmp.lt.s32.totalorder %v1440, 16
        %vm1443 = vmpackc.low %vm1441, %vm1441
        %vm1444 = vmpackc.low %vm1442, %vm1442
        %v1445 = vsel %vm1443, 65537, 0
        %v1446 = vsel %vm1444, 65537, 0
        %v1447 = vunpack.c.l.b16 %v1445
        %v1448 = vunpack.c.l.b16 %v1446
        %v1449 = vpack.c.b16 %v1448, %v1447
        %vm1450 = vcmp.ne.s16.totalorder %v1449, 0
        %v1451 = vsel %vm1450, %v1438, 0
        %s1452 = scalar_lea.vmem [#allocation8], 512
        %v1453 = vld [vmem:[%s1452] sm:$0xff]
        %v1454 = vld [vmem:[%s1452 + $0x8] sm:$0xff]
        %v1455 = vld [vmem:[%s1452 + $0x10] sm:$0xff]
        %v1456 = vld [vmem:[%s1452 + $0x18] sm:$0xff]
        %v1457 = vld [vmem:[%s1452 + $0x20] sm:$0xff]
        %v1458 = vld [vmem:[%s1452 + $0x28] sm:$0xff]
        %v1459 = vld [vmem:[%s1452 + $0x30] sm:$0xff]
        %v1460 = vld [vmem:[%s1452 + $0x38] sm:$0xff]
        %v1461 = vld [vmem:[%s1452 + $0x40] sm:$0xff]
        %v1462 = vld [vmem:[%s1452 + $0x48] sm:$0xff]
        %v1463 = vld [vmem:[%s1452 + $0x50] sm:$0xff]
        %v1464 = vld [vmem:[%s1452 + $0x58] sm:$0xff]
        %v1465 = vld [vmem:[%s1452 + $0x60] sm:$0xff]
        %v1466 = vld [vmem:[%s1452 + $0x68] sm:$0xff]
        %v1467 = vld [vmem:[%s1452 + $0x70] sm:$0xff]
        %v1468 = vld [vmem:[%s1452 + $0x78] sm:$0xff]
        %v1485 = vunpack.c.l.b16 %v1453
        %v1486 = vunpack.c.h.b16 %v1453
        %v1487 = vunpack.c.l.b16 %v1454
        %v1488 = vunpack.c.h.b16 %v1454
        %v1489 = vunpack.c.l.b16 %v1455
        %v1490 = vunpack.c.h.b16 %v1455
        %v1491 = vunpack.c.l.b16 %v1456
        %v1492 = vunpack.c.h.b16 %v1456
        %v1493 = vunpack.c.l.b16 %v1457
        %v1494 = vunpack.c.h.b16 %v1457
        %v1495 = vunpack.c.l.b16 %v1458
        %v1496 = vunpack.c.h.b16 %v1458
        %v1497 = vunpack.c.l.b16 %v1459
        %v1498 = vunpack.c.h.b16 %v1459
        %v1499 = vunpack.c.l.b16 %v1460
        %v1500 = vunpack.c.h.b16 %v1460
        %v1501 = vunpack.c.l.b16 %v1461
        %v1502 = vunpack.c.h.b16 %v1461
        %v1503 = vunpack.c.l.b16 %v1462
        %v1504 = vunpack.c.h.b16 %v1462
        %v1505 = vunpack.c.l.b16 %v1463
        %v1506 = vunpack.c.h.b16 %v1463
        %v1507 = vunpack.c.l.b16 %v1464
        %v1508 = vunpack.c.h.b16 %v1464
        %v1509 = vunpack.c.l.b16 %v1465
        %v1510 = vunpack.c.h.b16 %v1465
        %v1511 = vunpack.c.l.b16 %v1466
        %v1512 = vunpack.c.h.b16 %v1466
        %v1513 = vunpack.c.l.b16 %v1467
        %v1514 = vunpack.c.h.b16 %v1467
        %v1515 = vunpack.c.l.b16 %v1468
        %v1516 = vunpack.c.h.b16 %v1468
        %v1517 = vpack.c.b16 %v1487, %v1485
        %v1518 = vpack.c.b16 %v1488, %v1486
        %v1519 = vpack.c.b16 %v1491, %v1489
        %v1520 = vpack.c.b16 %v1492, %v1490
        %v1521 = vpack.c.b16 %v1495, %v1493
        %v1522 = vpack.c.b16 %v1496, %v1494
        %v1523 = vpack.c.b16 %v1499, %v1497
        %v1524 = vpack.c.b16 %v1500, %v1498
        %v1525 = vpack.c.b16 %v1503, %v1501
        %v1526 = vpack.c.b16 %v1504, %v1502
        %v1527 = vpack.c.b16 %v1507, %v1505
        %v1528 = vpack.c.b16 %v1508, %v1506
        %v1529 = vpack.c.b16 %v1511, %v1509
        %v1530 = vpack.c.b16 %v1512, %v1510
        %v1531 = vpack.c.b16 %v1515, %v1513
        %v1532 = vpack.c.b16 %v1516, %v1514
        %1549 = vmatprep.subr.bf16.mxu0 %v1518
        %1550 = vmatpush1.bf16.msra.mxu0 %v1517
        %1551 = vmatprep.subr.bf16.mxu0 %v1520
        %1552 = vmatpush1.bf16.msra.mxu0 %v1519
        %1553 = vmatprep.subr.bf16.mxu0 %v1522
        %1554 = vmatpush1.bf16.msra.mxu0 %v1521
        %1555 = vmatprep.subr.bf16.mxu0 %v1524
        %1556 = vmatpush1.bf16.msra.mxu0 %v1523
        %1557 = vmatprep.subr.bf16.mxu0 %v1526
        %1558 = vmatpush1.bf16.msra.mxu0 %v1525
        %1559 = vmatprep.subr.bf16.mxu0 %v1528
        %1560 = vmatpush1.bf16.msra.mxu0 %v1527
        %1561 = vmatprep.subr.bf16.mxu0 %v1530
        %1562 = vmatpush1.bf16.msra.mxu0 %v1529
        %1563 = vmatprep.subr.bf16.mxu0 %v1532
        %1564 = vmatpush1.bf16.msra.mxu0 %v1531
        %1565 = vmatprep.subr.bf16.mxu0 0
        %1566 = vmatpush1.bf16.msra.mxu0 0
        %1567 = vmatprep.subr.bf16.mxu0 0
        %1568 = vmatpush1.bf16.msra.mxu0 0
        %1569 = vmatprep.subr.bf16.mxu0 0
        %1570 = vmatpush1.bf16.msra.mxu0 0
        %1571 = vmatprep.subr.bf16.mxu0 0
        %1572 = vmatpush1.bf16.msra.mxu0 0
        %1573 = vmatprep.subr.bf16.mxu0 0
        %1574 = vmatpush1.bf16.msra.mxu0 0
        %1575 = vmatprep.subr.bf16.mxu0 0
        %1576 = vmatpush1.bf16.msra.mxu0 0
        %1577 = vmatprep.subr.bf16.mxu0 0
        %1578 = vmatpush1.bf16.msra.mxu0 0
        %1579 = vmatprep.subr.bf16.mxu0 0
        %1580 = vmatpush1.bf16.msra.mxu0 0
        %1581 = vmatprep.mubr.bf16.mxu0 0
        %1582 = vmatmul.mubr.bf16.gmra.mrb[0].mxu0 %v1451
        %v1583 = vpop.f32.mrb[0].mxu0
        %v1584 = vadd.f32 0.0, %v1583
        %v1585 = vpop.f32.mrb[0].mxu0
        %v1586 = vadd.f32 0.0, %v1585
        %v1587 = vpop.f32.mrb[0].mxu0
        %v1588 = vadd.f32 0.0, %v1587
        %v1589 = vpop.f32.mrb[0].mxu0
        %v1590 = vadd.f32 0.0, %v1589
        %1591 = vdwg.mxu0
        %v1592 = vadd.f32 %v1285, %v1584
        %v1593 = vadd.f32 %v1286, %v1586
        %v1594 = vadd.f32 %v1287, %v1588
        %v1595 = vadd.f32 %v1288, %v1590
        %v1596 = vld [vmem:[%s6] sm:$0x3]
        %v1598 = vlaneseq
        %v1599 = vshrl.u32 %v1598, 7
        %v1600 = vsub.s32 0, %v1599
        %v1601 = vrot.slane %v1596, %v1600
        %v1602 = vlaneseq
        %v1603 = vshrl.u32 %v1602, 7
        %v1604 = vsub.s32 1, %v1603
        %v1605 = vrot.slane %v1596, %v1604
        %v1608 = vadd.f32 %v1429, %v1601
        %v1609 = vadd.f32 %v1430, %v1605
        %v1610 = vadd.f32 %v1431, %v1601
        %v1611 = vadd.f32 %v1432, %v1605
        %v1612 = vmax.f32 %v1608, 0.0
        %v1613 = vmax.f32 %v1609, 0.0
        %v1614 = vmax.f32 %v1610, 0.0
        %v1615 = vmax.f32 %v1611, 0.0
        %v1616 = vpack.c.bf16 %v1614, %v1612
        %v1617 = vpack.c.bf16 %v1615, %v1613
        %v1618 = vld [vmem:[#allocation7] sm:$0xff]
        %v1619 = vld [vmem:[#allocation7 + $0x8] sm:$0xff]
        %v1620 = vld [vmem:[#allocation7 + $0x10] sm:$0xff]
        %v1621 = vld [vmem:[#allocation7 + $0x18] sm:$0xff]
        %v1622 = vld [vmem:[#allocation7 + $0x20] sm:$0xff]
        %v1623 = vld [vmem:[#allocation7 + $0x28] sm:$0xff]
        %v1624 = vld [vmem:[#allocation7 + $0x30] sm:$0xff]
        %v1625 = vld [vmem:[#allocation7 + $0x38] sm:$0xff]
        %v1626 = vld [vmem:[#allocation7 + $0x40] sm:$0xff]
        %v1627 = vld [vmem:[#allocation7 + $0x48] sm:$0xff]
        %v1628 = vld [vmem:[#allocation7 + $0x50] sm:$0xff]
        %v1629 = vld [vmem:[#allocation7 + $0x58] sm:$0xff]
        %v1630 = vld [vmem:[#allocation7 + $0x60] sm:$0xff]
        %v1631 = vld [vmem:[#allocation7 + $0x68] sm:$0xff]
        %v1632 = vld [vmem:[#allocation7 + $0x70] sm:$0xff]
        %v1633 = vld [vmem:[#allocation7 + $0x78] sm:$0xff]
        %v1634 = vld [vmem:[#allocation7 + $0x80] sm:$0xff]
        %v1635 = vld [vmem:[#allocation7 + $0x88] sm:$0xff]
        %v1636 = vld [vmem:[#allocation7 + $0x90] sm:$0xff]
        %v1637 = vld [vmem:[#allocation7 + $0x98] sm:$0xff]
        %v1638 = vld [vmem:[#allocation7 + $0xa0] sm:$0xff]
        %v1639 = vld [vmem:[#allocation7 + $0xa8] sm:$0xff]
        %v1640 = vld [vmem:[#allocation7 + $0xb0] sm:$0xff]
        %v1641 = vld [vmem:[#allocation7 + $0xb8] sm:$0xff]
        %v1642 = vld [vmem:[#allocation7 + $0xc0] sm:$0xff]
        %v1643 = vld [vmem:[#allocation7 + $0xc8] sm:$0xff]
        %v1644 = vld [vmem:[#allocation7 + $0xd0] sm:$0xff]
        %v1645 = vld [vmem:[#allocation7 + $0xd8] sm:$0xff]
        %v1646 = vld [vmem:[#allocation7 + $0xe0] sm:$0xff]
        %v1647 = vld [vmem:[#allocation7 + $0xe8] sm:$0xff]
        %v1648 = vld [vmem:[#allocation7 + $0xf0] sm:$0xff]
        %v1649 = vld [vmem:[#allocation7 + $0xf8] sm:$0xff]
        %s1650 = scalar_lea.vmem %s6, 2
        %v1651 = vld [vmem:[%s1650] sm:$0x3]
        %v1653 = vlaneseq
        %v1654 = vshrl.u32 %v1653, 7
        %v1655 = vsub.s32 0, %v1654
        %v1656 = vrot.slane %v1651, %v1655
        %v1657 = vlaneseq
        %v1658 = vshrl.u32 %v1657, 7
        %v1659 = vsub.s32 1, %v1658
        %v1660 = vrot.slane %v1651, %v1659
        %v1695 = vunpack.c.l.b16 %v1618
        %v1696 = vunpack.c.h.b16 %v1618
        %v1697 = vunpack.c.l.b16 %v1619
        %v1698 = vunpack.c.h.b16 %v1619
        %v1699 = vunpack.c.l.b16 %v1620
        %v1700 = vunpack.c.h.b16 %v1620
        %v1701 = vunpack.c.l.b16 %v1621
        %v1702 = vunpack.c.h.b16 %v1621
        %v1703 = vunpack.c.l.b16 %v1622
        %v1704 = vunpack.c.h.b16 %v1622
        %v1705 = vunpack.c.l.b16 %v1623
        %v1706 = vunpack.c.h.b16 %v1623
        %v1707 = vunpack.c.l.b16 %v1624
        %v1708 = vunpack.c.h.b16 %v1624
        %v1709 = vunpack.c.l.b16 %v1625
        %v1710 = vunpack.c.h.b16 %v1625
        %v1711 = vunpack.c.l.b16 %v1626
        %v1712 = vunpack.c.h.b16 %v1626
        %v1713 = vunpack.c.l.b16 %v1627
        %v1714 = vunpack.c.h.b16 %v1627
        %v1715 = vunpack.c.l.b16 %v1628
        %v1716 = vunpack.c.h.b16 %v1628
        %v1717 = vunpack.c.l.b16 %v1629
        %v1718 = vunpack.c.h.b16 %v1629
        %v1719 = vunpack.c.l.b16 %v1630
        %v1720 = vunpack.c.h.b16 %v1630
        %v1721 = vunpack.c.l.b16 %v1631
        %v1722 = vunpack.c.h.b16 %v1631
        %v1723 = vunpack.c.l.b16 %v1632
        %v1724 = vunpack.c.h.b16 %v1632
        %v1725 = vunpack.c.l.b16 %v1633
        %v1726 = vunpack.c.h.b16 %v1633
        %v1727 = vunpack.c.l.b16 %v1634
        %v1728 = vunpack.c.h.b16 %v1634
        %v1729 = vunpack.c.l.b16 %v1635
        %v1730 = vunpack.c.h.b16 %v1635
        %v1731 = vunpack.c.l.b16 %v1636
        %v1732 = vunpack.c.h.b16 %v1636
        %v1733 = vunpack.c.l.b16 %v1637
        %v1734 = vunpack.c.h.b16 %v1637
        %v1735 = vunpack.c.l.b16 %v1638
        %v1736 = vunpack.c.h.b16 %v1638
        %v1737 = vunpack.c.l.b16 %v1639
        %v1738 = vunpack.c.h.b16 %v1639
        %v1739 = vunpack.c.l.b16 %v1640
        %v1740 = vunpack.c.h.b16 %v1640
        %v1741 = vunpack.c.l.b16 %v1641
        %v1742 = vunpack.c.h.b16 %v1641
        %v1743 = vunpack.c.l.b16 %v1642
        %v1744 = vunpack.c.h.b16 %v1642
        %v1745 = vunpack.c.l.b16 %v1643
        %v1746 = vunpack.c.h.b16 %v1643
        %v1747 = vunpack.c.l.b16 %v1644
        %v1748 = vunpack.c.h.b16 %v1644
        %v1749 = vunpack.c.l.b16 %v1645
        %v1750 = vunpack.c.h.b16 %v1645
        %v1751 = vunpack.c.l.b16 %v1646
        %v1752 = vunpack.c.h.b16 %v1646
        %v1753 = vunpack.c.l.b16 %v1647
        %v1754 = vunpack.c.h.b16 %v1647
        %v1755 = vunpack.c.l.b16 %v1648
        %v1756 = vunpack.c.h.b16 %v1648
        %v1757 = vunpack.c.l.b16 %v1649
        %v1758 = vunpack.c.h.b16 %v1649
        %v1759 = vpack.c.b16 %v1697, %v1695
        %v1760 = vpack.c.b16 %v1698, %v1696
        %v1761 = vpack.c.b16 %v1701, %v1699
        %v1762 = vpack.c.b16 %v1702, %v1700
        %v1763 = vpack.c.b16 %v1705, %v1703
        %v1764 = vpack.c.b16 %v1706, %v1704
        %v1765 = vpack.c.b16 %v1709, %v1707
        %v1766 = vpack.c.b16 %v1710, %v1708
        %v1767 = vpack.c.b16 %v1713, %v1711
        %v1768 = vpack.c.b16 %v1714, %v1712
        %v1769 = vpack.c.b16 %v1717, %v1715
        %v1770 = vpack.c.b16 %v1718, %v1716
        %v1771 = vpack.c.b16 %v1721, %v1719
        %v1772 = vpack.c.b16 %v1722, %v1720
        %v1773 = vpack.c.b16 %v1725, %v1723
        %v1774 = vpack.c.b16 %v1726, %v1724
        %v1775 = vpack.c.b16 %v1729, %v1727
        %v1776 = vpack.c.b16 %v1730, %v1728
        %v1777 = vpack.c.b16 %v1733, %v1731
        %v1778 = vpack.c.b16 %v1734, %v1732
        %v1779 = vpack.c.b16 %v1737, %v1735
        %v1780 = vpack.c.b16 %v1738, %v1736
        %v1781 = vpack.c.b16 %v1741, %v1739
        %v1782 = vpack.c.b16 %v1742, %v1740
        %v1783 = vpack.c.b16 %v1745, %v1743
        %v1784 = vpack.c.b16 %v1746, %v1744
        %v1785 = vpack.c.b16 %v1749, %v1747
        %v1786 = vpack.c.b16 %v1750, %v1748
        %v1787 = vpack.c.b16 %v1753, %v1751
        %v1788 = vpack.c.b16 %v1754, %v1752
        %v1789 = vpack.c.b16 %v1757, %v1755
        %v1790 = vpack.c.b16 %v1758, %v1756
        %1823 = vmatprep.subr.bf16.mxu0 %v1760
        %1824 = vmatpush1.bf16.msra.mxu0 %v1759
        %1825 = vmatprep.subr.bf16.mxu0 %v1762
        %1826 = vmatpush1.bf16.msra.mxu0 %v1761
        %1827 = vmatprep.subr.bf16.mxu0 %v1764
        %1828 = vmatpush1.bf16.msra.mxu0 %v1763
        %1829 = vmatprep.subr.bf16.mxu0 %v1766
        %1830 = vmatpush1.bf16.msra.mxu0 %v1765
        %1831 = vmatprep.subr.bf16.mxu0 %v1768
        %1832 = vmatpush1.bf16.msra.mxu0 %v1767
        %1833 = vmatprep.subr.bf16.mxu0 %v1770
        %1834 = vmatpush1.bf16.msra.mxu0 %v1769
        %1835 = vmatprep.subr.bf16.mxu0 %v1772
        %1836 = vmatpush1.bf16.msra.mxu0 %v1771
        %1837 = vmatprep.subr.bf16.mxu0 %v1774
        %1838 = vmatpush1.bf16.msra.mxu0 %v1773
        %1839 = vmatprep.subr.bf16.mxu0 %v1776
        %1840 = vmatpush1.bf16.msra.mxu0 %v1775
        %1841 = vmatprep.subr.bf16.mxu0 %v1778
        %1842 = vmatpush1.bf16.msra.mxu0 %v1777
        %1843 = vmatprep.subr.bf16.mxu0 %v1780
        %1844 = vmatpush1.bf16.msra.mxu0 %v1779
        %1845 = vmatprep.subr.bf16.mxu0 %v1782
        %1846 = vmatpush1.bf16.msra.mxu0 %v1781
        %1847 = vmatprep.subr.bf16.mxu0 %v1784
        %1848 = vmatpush1.bf16.msra.mxu0 %v1783
        %1849 = vmatprep.subr.bf16.mxu0 %v1786
        %1850 = vmatpush1.bf16.msra.mxu0 %v1785
        %1851 = vmatprep.subr.bf16.mxu0 %v1788
        %1852 = vmatpush1.bf16.msra.mxu0 %v1787
        %1853 = vmatprep.subr.bf16.mxu0 %v1790
        %1854 = vmatpush1.bf16.msra.mxu0 %v1789
        %1855 = vmatprep.mubr.bf16.mxu0 %v1617
        %1856 = vmatmul.mubr.bf16.gmra.mrb[0].mxu0 %v1616
        %v1857 = vpop.f32.mrb[0].mxu0
        %v1858 = vadd.f32 %v1656, %v1857
        %v1859 = vpop.f32.mrb[0].mxu0
        %v1860 = vadd.f32 %v1660, %v1859
        %v1861 = vpop.f32.mrb[0].mxu0
        %v1862 = vadd.f32 %v1656, %v1861
        %v1863 = vpop.f32.mrb[0].mxu0
        %v1864 = vadd.f32 %v1660, %v1863
        %1865 = vdwg.mxu0
        %v1866 = vmax.f32 %v1858, 0.0
        %v1867 = vmax.f32 %v1860, 0.0
        %v1868 = vmax.f32 %v1862, 0.0
        %v1869 = vmax.f32 %v1864, 0.0
        %s1870 = scalar_lea.vmem %s6, 4
        %v1871 = vld [vmem:[%s1870] sm:$0x3]
        %v1873 = vlaneseq
        %v1874 = vshrl.u32 %v1873, 7
        %v1875 = vsub.s32 0, %v1874
        %v1876 = vrot.slane %v1871, %v1875
        %v1877 = vlaneseq
        %v1878 = vshrl.u32 %v1877, 7
        %v1879 = vsub.s32 1, %v1878
        %v1880 = vrot.slane %v1871, %v1879
        %v1883 = vadd.f32 %v1592, %v1876
        %v1884 = vadd.f32 %v1593, %v1880
        %v1885 = vadd.f32 %v1594, %v1876
        %v1886 = vadd.f32 %v1595, %v1880
        %v1887 = vmax.f32 %v1883, 0.0
        %v1888 = vmax.f32 %v1884, 0.0
        %v1889 = vmax.f32 %v1885, 0.0
        %v1890 = vmax.f32 %v1886, 0.0
        %v1891 = vpack.c.bf16 %v1889, %v1887
        %v1892 = vpack.c.bf16 %v1890, %v1888
        %v1893 = vld [vmem:[#allocation10] sm:$0xff]
        %v1894 = vld [vmem:[#allocation10 + $0x8] sm:$0xff]
        %v1895 = vld [vmem:[#allocation10 + $0x10] sm:$0xff]
        %v1896 = vld [vmem:[#allocation10 + $0x18] sm:$0xff]
        %v1897 = vld [vmem:[#allocation10 + $0x20] sm:$0xff]
        %v1898 = vld [vmem:[#allocation10 + $0x28] sm:$0xff]
        %v1899 = vld [vmem:[#allocation10 + $0x30] sm:$0xff]
        %v1900 = vld [vmem:[#allocation10 + $0x38] sm:$0xff]
        %v1901 = vld [vmem:[#allocation10 + $0x40] sm:$0xff]
        %v1902 = vld [vmem:[#allocation10 + $0x48] sm:$0xff]
        %v1903 = vld [vmem:[#allocation10 + $0x50] sm:$0xff]
        %v1904 = vld [vmem:[#allocation10 + $0x58] sm:$0xff]
        %v1905 = vld [vmem:[#allocation10 + $0x60] sm:$0xff]
        %v1906 = vld [vmem:[#allocation10 + $0x68] sm:$0xff]
        %v1907 = vld [vmem:[#allocation10 + $0x70] sm:$0xff]
        %v1908 = vld [vmem:[#allocation10 + $0x78] sm:$0xff]
        %v1909 = vld [vmem:[#allocation10 + $0x80] sm:$0xff]
        %v1910 = vld [vmem:[#allocation10 + $0x88] sm:$0xff]
        %v1911 = vld [vmem:[#allocation10 + $0x90] sm:$0xff]
        %v1912 = vld [vmem:[#allocation10 + $0x98] sm:$0xff]
        %v1913 = vld [vmem:[#allocation10 + $0xa0] sm:$0xff]
        %v1914 = vld [vmem:[#allocation10 + $0xa8] sm:$0xff]
        %v1915 = vld [vmem:[#allocation10 + $0xb0] sm:$0xff]
        %v1916 = vld [vmem:[#allocation10 + $0xb8] sm:$0xff]
        %v1917 = vld [vmem:[#allocation10 + $0xc0] sm:$0xff]
        %v1918 = vld [vmem:[#allocation10 + $0xc8] sm:$0xff]
        %v1919 = vld [vmem:[#allocation10 + $0xd0] sm:$0xff]
        %v1920 = vld [vmem:[#allocation10 + $0xd8] sm:$0xff]
        %v1921 = vld [vmem:[#allocation10 + $0xe0] sm:$0xff]
        %v1922 = vld [vmem:[#allocation10 + $0xe8] sm:$0xff]
        %v1923 = vld [vmem:[#allocation10 + $0xf0] sm:$0xff]
        %v1924 = vld [vmem:[#allocation10 + $0xf8] sm:$0xff]
        %s1925 = scalar_lea.vmem %s6, 6
        %v1926 = vld [vmem:[%s1925] sm:$0x3]
        %v1928 = vlaneseq
        %v1929 = vshrl.u32 %v1928, 7
        %v1930 = vsub.s32 0, %v1929
        %v1931 = vrot.slane %v1926, %v1930
        %v1932 = vlaneseq
        %v1933 = vshrl.u32 %v1932, 7
        %v1934 = vsub.s32 1, %v1933
        %v1935 = vrot.slane %v1926, %v1934
        %v1970 = vunpack.c.l.b16 %v1893
        %v1971 = vunpack.c.h.b16 %v1893
        %v1972 = vunpack.c.l.b16 %v1894
        %v1973 = vunpack.c.h.b16 %v1894
        %v1974 = vunpack.c.l.b16 %v1895
        %v1975 = vunpack.c.h.b16 %v1895
        %v1976 = vunpack.c.l.b16 %v1896
        %v1977 = vunpack.c.h.b16 %v1896
        %v1978 = vunpack.c.l.b16 %v1897
        %v1979 = vunpack.c.h.b16 %v1897
        %v1980 = vunpack.c.l.b16 %v1898
        %v1981 = vunpack.c.h.b16 %v1898
        %v1982 = vunpack.c.l.b16 %v1899
        %v1983 = vunpack.c.h.b16 %v1899
        %v1984 = vunpack.c.l.b16 %v1900
        %v1985 = vunpack.c.h.b16 %v1900
        %v1986 = vunpack.c.l.b16 %v1901
        %v1987 = vunpack.c.h.b16 %v1901
        %v1988 = vunpack.c.l.b16 %v1902
        %v1989 = vunpack.c.h.b16 %v1902
        %v1990 = vunpack.c.l.b16 %v1903
        %v1991 = vunpack.c.h.b16 %v1903
        %v1992 = vunpack.c.l.b16 %v1904
        %v1993 = vunpack.c.h.b16 %v1904
        %v1994 = vunpack.c.l.b16 %v1905
        %v1995 = vunpack.c.h.b16 %v1905
        %v1996 = vunpack.c.l.b16 %v1906
        %v1997 = vunpack.c.h.b16 %v1906
        %v1998 = vunpack.c.l.b16 %v1907
        %v1999 = vunpack.c.h.b16 %v1907
        %v2000 = vunpack.c.l.b16 %v1908
        %v2001 = vunpack.c.h.b16 %v1908
        %v2002 = vunpack.c.l.b16 %v1909
        %v2003 = vunpack.c.h.b16 %v1909
        %v2004 = vunpack.c.l.b16 %v1910
        %v2005 = vunpack.c.h.b16 %v1910
        %v2006 = vunpack.c.l.b16 %v1911
        %v2007 = vunpack.c.h.b16 %v1911
        %v2008 = vunpack.c.l.b16 %v1912
        %v2009 = vunpack.c.h.b16 %v1912
        %v2010 = vunpack.c.l.b16 %v1913
        %v2011 = vunpack.c.h.b16 %v1913
        %v2012 = vunpack.c.l.b16 %v1914
        %v2013 = vunpack.c.h.b16 %v1914
        %v2014 = vunpack.c.l.b16 %v1915
        %v2015 = vunpack.c.h.b16 %v1915
        %v2016 = vunpack.c.l.b16 %v1916
        %v2017 = vunpack.c.h.b16 %v1916
        %v2018 = vunpack.c.l.b16 %v1917
        %v2019 = vunpack.c.h.b16 %v1917
        %v2020 = vunpack.c.l.b16 %v1918
        %v2021 = vunpack.c.h.b16 %v1918
        %v2022 = vunpack.c.l.b16 %v1919
        %v2023 = vunpack.c.h.b16 %v1919
        %v2024 = vunpack.c.l.b16 %v1920
        %v2025 = vunpack.c.h.b16 %v1920
        %v2026 = vunpack.c.l.b16 %v1921
        %v2027 = vunpack.c.h.b16 %v1921
        %v2028 = vunpack.c.l.b16 %v1922
        %v2029 = vunpack.c.h.b16 %v1922
        %v2030 = vunpack.c.l.b16 %v1923
        %v2031 = vunpack.c.h.b16 %v1923
        %v2032 = vunpack.c.l.b16 %v1924
        %v2033 = vunpack.c.h.b16 %v1924
        %v2034 = vpack.c.b16 %v1972, %v1970
        %v2035 = vpack.c.b16 %v1973, %v1971
        %v2036 = vpack.c.b16 %v1976, %v1974
        %v2037 = vpack.c.b16 %v1977, %v1975
        %v2038 = vpack.c.b16 %v1980, %v1978
        %v2039 = vpack.c.b16 %v1981, %v1979
        %v2040 = vpack.c.b16 %v1984, %v1982
        %v2041 = vpack.c.b16 %v1985, %v1983
        %v2042 = vpack.c.b16 %v1988, %v1986
        %v2043 = vpack.c.b16 %v1989, %v1987
        %v2044 = vpack.c.b16 %v1992, %v1990
        %v2045 = vpack.c.b16 %v1993, %v1991
        %v2046 = vpack.c.b16 %v1996, %v1994
        %v2047 = vpack.c.b16 %v1997, %v1995
        %v2048 = vpack.c.b16 %v2000, %v1998
        %v2049 = vpack.c.b16 %v2001, %v1999
        %v2050 = vpack.c.b16 %v2004, %v2002
        %v2051 = vpack.c.b16 %v2005, %v2003
        %v2052 = vpack.c.b16 %v2008, %v2006
        %v2053 = vpack.c.b16 %v2009, %v2007
        %v2054 = vpack.c.b16 %v2012, %v2010
        %v2055 = vpack.c.b16 %v2013, %v2011
        %v2056 = vpack.c.b16 %v2016, %v2014
        %v2057 = vpack.c.b16 %v2017, %v2015
        %v2058 = vpack.c.b16 %v2020, %v2018
        %v2059 = vpack.c.b16 %v2021, %v2019
        %v2060 = vpack.c.b16 %v2024, %v2022
        %v2061 = vpack.c.b16 %v2025, %v2023
        %v2062 = vpack.c.b16 %v2028, %v2026
        %v2063 = vpack.c.b16 %v2029, %v2027
        %v2064 = vpack.c.b16 %v2032, %v2030
        %v2065 = vpack.c.b16 %v2033, %v2031
        %2098 = vmatprep.subr.bf16.mxu0 %v2035
        %2099 = vmatpush1.bf16.msra.mxu0 %v2034
        %2100 = vmatprep.subr.bf16.mxu0 %v2037
        %2101 = vmatpush1.bf16.msra.mxu0 %v2036
        %2102 = vmatprep.subr.bf16.mxu0 %v2039
        %2103 = vmatpush1.bf16.msra.mxu0 %v2038
        %2104 = vmatprep.subr.bf16.mxu0 %v2041
        %2105 = vmatpush1.bf16.msra.mxu0 %v2040
        %2106 = vmatprep.subr.bf16.mxu0 %v2043
        %2107 = vmatpush1.bf16.msra.mxu0 %v2042
        %2108 = vmatprep.subr.bf16.mxu0 %v2045
        %2109 = vmatpush1.bf16.msra.mxu0 %v2044
        %2110 = vmatprep.subr.bf16.mxu0 %v2047
        %2111 = vmatpush1.bf16.msra.mxu0 %v2046
        %2112 = vmatprep.subr.bf16.mxu0 %v2049
        %2113 = vmatpush1.bf16.msra.mxu0 %v2048
        %2114 = vmatprep.subr.bf16.mxu0 %v2051
        %2115 = vmatpush1.bf16.msra.mxu0 %v2050
        %2116 = vmatprep.subr.bf16.mxu0 %v2053
        %2117 = vmatpush1.bf16.msra.mxu0 %v2052
        %2118 = vmatprep.subr.bf16.mxu0 %v2055
        %2119 = vmatpush1.bf16.msra.mxu0 %v2054
        %2120 = vmatprep.subr.bf16.mxu0 %v2057
        %2121 = vmatpush1.bf16.msra.mxu0 %v2056
        %2122 = vmatprep.subr.bf16.mxu0 %v2059
        %2123 = vmatpush1.bf16.msra.mxu0 %v2058
        %2124 = vmatprep.subr.bf16.mxu0 %v2061
        %2125 = vmatpush1.bf16.msra.mxu0 %v2060
        %2126 = vmatprep.subr.bf16.mxu0 %v2063
        %2127 = vmatpush1.bf16.msra.mxu0 %v2062
        %2128 = vmatprep.subr.bf16.mxu0 %v2065
        %2129 = vmatpush1.bf16.msra.mxu0 %v2064
        %2130 = vmatprep.mubr.bf16.mxu0 %v1892
        %2131 = vmatmul.mubr.bf16.gmra.mrb[0].mxu0 %v1891
        %v2132 = vpop.f32.mrb[0].mxu0
        %v2133 = vadd.f32 %v1931, %v2132
        %v2134 = vpop.f32.mrb[0].mxu0
        %v2135 = vadd.f32 %v1935, %v2134
        %v2136 = vpop.f32.mrb[0].mxu0
        %v2137 = vadd.f32 %v1931, %v2136
        %v2138 = vpop.f32.mrb[0].mxu0
        %v2139 = vadd.f32 %v1935, %v2138
        %2140 = vdwg.mxu0
        %v2141 = vmax.f32 %v2133, 0.0
        %v2142 = vmax.f32 %v2135, 0.0
        %v2143 = vmax.f32 %v2137, 0.0
        %v2144 = vmax.f32 %v2139, 0.0
        %v2145 = vadd.f32 %v1866, %v2141
        %v2146 = vadd.f32 %v1867, %v2142
        %v2147 = vadd.f32 %v1868, %v2143
        %v2148 = vadd.f32 %v1869, %v2144
        %v2149 = vpack.c.bf16 %v2147, %v2145
        %v2150 = vpack.c.bf16 %v2148, %v2146
        %v2151 = vld [vmem:[#allocation11] sm:$0xff]
        %v2152 = vld [vmem:[#allocation11 + $0x8] sm:$0xff]
        %v2153 = vld [vmem:[#allocation11 + $0x10] sm:$0xff]
        %v2154 = vld [vmem:[#allocation11 + $0x18] sm:$0xff]
        %v2155 = vld [vmem:[#allocation11 + $0x20] sm:$0xff]
        %v2156 = vld [vmem:[#allocation11 + $0x28] sm:$0xff]
        %v2157 = vld [vmem:[#allocation11 + $0x30] sm:$0xff]
        %v2158 = vld [vmem:[#allocation11 + $0x38] sm:$0xff]
        %v2159 = vld [vmem:[#allocation11 + $0x40] sm:$0xff]
        %v2160 = vld [vmem:[#allocation11 + $0x48] sm:$0xff]
        %v2161 = vld [vmem:[#allocation11 + $0x50] sm:$0xff]
        %v2162 = vld [vmem:[#allocation11 + $0x58] sm:$0xff]
        %v2163 = vld [vmem:[#allocation11 + $0x60] sm:$0xff]
        %v2164 = vld [vmem:[#allocation11 + $0x68] sm:$0xff]
        %v2165 = vld [vmem:[#allocation11 + $0x70] sm:$0xff]
        %v2166 = vld [vmem:[#allocation11 + $0x78] sm:$0xff]
        %v2167 = vld [vmem:[#allocation11 + $0x80] sm:$0xff]
        %v2168 = vld [vmem:[#allocation11 + $0x88] sm:$0xff]
        %v2169 = vld [vmem:[#allocation11 + $0x90] sm:$0xff]
        %v2170 = vld [vmem:[#allocation11 + $0x98] sm:$0xff]
        %v2171 = vld [vmem:[#allocation11 + $0xa0] sm:$0xff]
        %v2172 = vld [vmem:[#allocation11 + $0xa8] sm:$0xff]
        %v2173 = vld [vmem:[#allocation11 + $0xb0] sm:$0xff]
        %v2174 = vld [vmem:[#allocation11 + $0xb8] sm:$0xff]
        %v2175 = vld [vmem:[#allocation11 + $0xc0] sm:$0xff]
        %v2176 = vld [vmem:[#allocation11 + $0xc8] sm:$0xff]
        %v2177 = vld [vmem:[#allocation11 + $0xd0] sm:$0xff]
        %v2178 = vld [vmem:[#allocation11 + $0xd8] sm:$0xff]
        %v2179 = vld [vmem:[#allocation11 + $0xe0] sm:$0xff]
        %v2180 = vld [vmem:[#allocation11 + $0xe8] sm:$0xff]
        %v2181 = vld [vmem:[#allocation11 + $0xf0] sm:$0xff]
        %v2182 = vld [vmem:[#allocation11 + $0xf8] sm:$0xff]
        %s2183 = scalar_lea.vmem %s6, 8
        %v2184 = vld [vmem:[%s2183] sm:$0x3]
        %v2186 = vlaneseq
        %v2187 = vshrl.u32 %v2186, 7
        %v2188 = vsub.s32 0, %v2187
        %v2189 = vrot.slane %v2184, %v2188
        %v2190 = vlaneseq
        %v2191 = vshrl.u32 %v2190, 7
        %v2192 = vsub.s32 1, %v2191
        %v2193 = vrot.slane %v2184, %v2192
        %v2228 = vunpack.c.l.b16 %v2151
        %v2229 = vunpack.c.h.b16 %v2151
        %v2230 = vunpack.c.l.b16 %v2152
        %v2231 = vunpack.c.h.b16 %v2152
        %v2232 = vunpack.c.l.b16 %v2153
        %v2233 = vunpack.c.h.b16 %v2153
        %v2234 = vunpack.c.l.b16 %v2154
        %v2235 = vunpack.c.h.b16 %v2154
        %v2236 = vunpack.c.l.b16 %v2155
        %v2237 = vunpack.c.h.b16 %v2155
        %v2238 = vunpack.c.l.b16 %v2156
        %v2239 = vunpack.c.h.b16 %v2156
        %v2240 = vunpack.c.l.b16 %v2157
        %v2241 = vunpack.c.h.b16 %v2157
        %v2242 = vunpack.c.l.b16 %v2158
        %v2243 = vunpack.c.h.b16 %v2158
        %v2244 = vunpack.c.l.b16 %v2159
        %v2245 = vunpack.c.h.b16 %v2159
        %v2246 = vunpack.c.l.b16 %v2160
        %v2247 = vunpack.c.h.b16 %v2160
        %v2248 = vunpack.c.l.b16 %v2161
        %v2249 = vunpack.c.h.b16 %v2161
        %v2250 = vunpack.c.l.b16 %v2162
        %v2251 = vunpack.c.h.b16 %v2162
        %v2252 = vunpack.c.l.b16 %v2163
        %v2253 = vunpack.c.h.b16 %v2163
        %v2254 = vunpack.c.l.b16 %v2164
        %v2255 = vunpack.c.h.b16 %v2164
        %v2256 = vunpack.c.l.b16 %v2165
        %v2257 = vunpack.c.h.b16 %v2165
        %v2258 = vunpack.c.l.b16 %v2166
        %v2259 = vunpack.c.h.b16 %v2166
        %v2260 = vunpack.c.l.b16 %v2167
        %v2261 = vunpack.c.h.b16 %v2167
        %v2262 = vunpack.c.l.b16 %v2168
        %v2263 = vunpack.c.h.b16 %v2168
        %v2264 = vunpack.c.l.b16 %v2169
        %v2265 = vunpack.c.h.b16 %v2169
        %v2266 = vunpack.c.l.b16 %v2170
        %v2267 = vunpack.c.h.b16 %v2170
        %v2268 = vunpack.c.l.b16 %v2171
        %v2269 = vunpack.c.h.b16 %v2171
        %v2270 = vunpack.c.l.b16 %v2172
        %v2271 = vunpack.c.h.b16 %v2172
        %v2272 = vunpack.c.l.b16 %v2173
        %v2273 = vunpack.c.h.b16 %v2173
        %v2274 = vunpack.c.l.b16 %v2174
        %v2275 = vunpack.c.h.b16 %v2174
        %v2276 = vunpack.c.l.b16 %v2175
        %v2277 = vunpack.c.h.b16 %v2175
        %v2278 = vunpack.c.l.b16 %v2176
        %v2279 = vunpack.c.h.b16 %v2176
        %v2280 = vunpack.c.l.b16 %v2177
        %v2281 = vunpack.c.h.b16 %v2177
        %v2282 = vunpack.c.l.b16 %v2178
        %v2283 = vunpack.c.h.b16 %v2178
        %v2284 = vunpack.c.l.b16 %v2179
        %v2285 = vunpack.c.h.b16 %v2179
        %v2286 = vunpack.c.l.b16 %v2180
        %v2287 = vunpack.c.h.b16 %v2180
        %v2288 = vunpack.c.l.b16 %v2181
        %v2289 = vunpack.c.h.b16 %v2181
        %v2290 = vunpack.c.l.b16 %v2182
        %v2291 = vunpack.c.h.b16 %v2182
        %v2292 = vpack.c.b16 %v2230, %v2228
        %v2293 = vpack.c.b16 %v2231, %v2229
        %v2294 = vpack.c.b16 %v2234, %v2232
        %v2295 = vpack.c.b16 %v2235, %v2233
        %v2296 = vpack.c.b16 %v2238, %v2236
        %v2297 = vpack.c.b16 %v2239, %v2237
        %v2298 = vpack.c.b16 %v2242, %v2240
        %v2299 = vpack.c.b16 %v2243, %v2241
        %v2300 = vpack.c.b16 %v2246, %v2244
        %v2301 = vpack.c.b16 %v2247, %v2245
        %v2302 = vpack.c.b16 %v2250, %v2248
        %v2303 = vpack.c.b16 %v2251, %v2249
        %v2304 = vpack.c.b16 %v2254, %v2252
        %v2305 = vpack.c.b16 %v2255, %v2253
        %v2306 = vpack.c.b16 %v2258, %v2256
        %v2307 = vpack.c.b16 %v2259, %v2257
        %v2308 = vpack.c.b16 %v2262, %v2260
        %v2309 = vpack.c.b16 %v2263, %v2261
        %v2310 = vpack.c.b16 %v2266, %v2264
        %v2311 = vpack.c.b16 %v2267, %v2265
        %v2312 = vpack.c.b16 %v2270, %v2268
        %v2313 = vpack.c.b16 %v2271, %v2269
        %v2314 = vpack.c.b16 %v2274, %v2272
        %v2315 = vpack.c.b16 %v2275, %v2273
        %v2316 = vpack.c.b16 %v2278, %v2276
        %v2317 = vpack.c.b16 %v2279, %v2277
        %v2318 = vpack.c.b16 %v2282, %v2280
        %v2319 = vpack.c.b16 %v2283, %v2281
        %v2320 = vpack.c.b16 %v2286, %v2284
        %v2321 = vpack.c.b16 %v2287, %v2285
        %v2322 = vpack.c.b16 %v2290, %v2288
        %v2323 = vpack.c.b16 %v2291, %v2289
        %2356 = vmatprep.subr.bf16.mxu0 %v2293
        %2357 = vmatpush1.bf16.msra.mxu0 %v2292
        %2358 = vmatprep.subr.bf16.mxu0 %v2295
        %2359 = vmatpush1.bf16.msra.mxu0 %v2294
        %2360 = vmatprep.subr.bf16.mxu0 %v2297
        %2361 = vmatpush1.bf16.msra.mxu0 %v2296
        %2362 = vmatprep.subr.bf16.mxu0 %v2299
        %2363 = vmatpush1.bf16.msra.mxu0 %v2298
        %2364 = vmatprep.subr.bf16.mxu0 %v2301
        %2365 = vmatpush1.bf16.msra.mxu0 %v2300
        %2366 = vmatprep.subr.bf16.mxu0 %v2303
        %2367 = vmatpush1.bf16.msra.mxu0 %v2302
        %2368 = vmatprep.subr.bf16.mxu0 %v2305
        %2369 = vmatpush1.bf16.msra.mxu0 %v2304
        %2370 = vmatprep.subr.bf16.mxu0 %v2307
        %2371 = vmatpush1.bf16.msra.mxu0 %v2306
        %2372 = vmatprep.subr.bf16.mxu0 %v2309
        %2373 = vmatpush1.bf16.msra.mxu0 %v2308
        %2374 = vmatprep.subr.bf16.mxu0 %v2311
        %2375 = vmatpush1.bf16.msra.mxu0 %v2310
        %2376 = vmatprep.subr.bf16.mxu0 %v2313
        %2377 = vmatpush1.bf16.msra.mxu0 %v2312
        %2378 = vmatprep.subr.bf16.mxu0 %v2315
        %2379 = vmatpush1.bf16.msra.mxu0 %v2314
        %2380 = vmatprep.subr.bf16.mxu0 %v2317
        %2381 = vmatpush1.bf16.msra.mxu0 %v2316
        %2382 = vmatprep.subr.bf16.mxu0 %v2319
        %2383 = vmatpush1.bf16.msra.mxu0 %v2318
        %2384 = vmatprep.subr.bf16.mxu0 %v2321
        %2385 = vmatpush1.bf16.msra.mxu0 %v2320
        %2386 = vmatprep.subr.bf16.mxu0 %v2323
        %2387 = vmatpush1.bf16.msra.mxu0 %v2322
        %2388 = vmatprep.mubr.bf16.mxu0 %v2150
        %2389 = vmatmul.mubr.bf16.gmra.mrb[0].mxu0 %v2149
        %v2390 = vpop.f32.mrb[0].mxu0
        %v2391 = vadd.f32 %v2189, %v2390
        %v2392 = vpop.f32.mrb[0].mxu0
        %v2393 = vadd.f32 %v2193, %v2392
        %v2394 = vpop.f32.mrb[0].mxu0
        %v2395 = vadd.f32 %v2189, %v2394
        %v2396 = vpop.f32.mrb[0].mxu0
        %v2397 = vadd.f32 %v2193, %v2396
        %2398 = vdwg.mxu0
        %v2399 = vmax.f32 %v2391, 0.0
        %v2400 = vmax.f32 %v2393, 0.0
        %v2401 = vmax.f32 %v2395, 0.0
        %v2402 = vmax.f32 %v2397, 0.0
        %v2403 = vpack.c.bf16 %v2401, %v2399
        %v2404 = vpack.c.bf16 %v2402, %v2400
        %v2407 = vunpack.c.l.b16 %v2403
        %v2408 = vunpack.c.l.b16 %v2404
        %v2409 = vunpack.c.h.b16 %v2403
        %v2410 = vunpack.c.h.b16 %v2404
        %v2411 = vpack.c.b16 %v2408, %v2407
        %v2412 = vpack.c.b16 %v2410, %v2409
        %2415 = vst [vmem:[%s369] sm:$0xff] %v2411
        %2416 = vst [vmem:[%s369 + $0x8] sm:$0xff] %v2412
        %s2417 = sand.u32 %s187, 1
        %s2418 = scalar_lea.sflag [#allocation4], %s2417
        %s2419 = sand.u32 %s187, 1
        %s2420 = smul.addr %s2419, 16
        %s2421 = scalar_lea.vmem [#allocation13], %s2420
        // Predicated region
        $region73: #{tpu_custom_call.1} parent=47 // pred_check
          %p2422 = pneg %p197
        $region74: #{tpu_custom_call.1} parent=47 // pred_check_branch
          %2424 = sbr.rel (%p2422) target = $region76
        $region75: #{tpu_custom_call.1} parent=47 // pred_region
          %s2426 = ssub.s32 256, 256
          %2427 = vsyncadd %s2418, %s2426
          %s2428 = smul.addr %s27, 4
          %s2429 = smul.addr %s2428, 64
          %s2430 = scalar_lea.hbm %s7, %s2429
          %s2431 = sshll.u32 %s2421, 4
          %s2432 = int_to_ptr.vmem [resolvable:$true] %s2431
          %2437 = dma.vmem_to_hbm [thread:$0]  %s2432, 256, %s2430, %s2418, 128, 128, 8
        $region76: #{tpu_custom_call.1} parent=47 // pred_fallthru
          _
      $region48: #{tpu_custom_call.1} parent=5 // pred_fallthru
        _
      %p2438 = scmp.le.s32.totalorder 2, %s22
      // Predicated region
      $region77: #{tpu_custom_call.1} parent=5 // pred_check
        %p2439 = pneg %p2438
      $region78: #{tpu_custom_call.1} parent=5 // pred_check_branch
        %2441 = sbr.rel (%p2439) target = $region80
      $region79: #{tpu_custom_call.1} parent=5 // pred_region
        %s2442 = ssub.s32 %s22, 2
        // Predicated region
        $region81: #{tpu_custom_call.1} parent=79 // pred_check
          %p2443 = pneg %p203
        $region82: #{tpu_custom_call.1} parent=79 // pred_check_branch
          %2445 = sbr.rel (%p2443) target = $region84
        $region83: #{tpu_custom_call.1} parent=79 // pred_region
          %s2446 = sand.u32 %s188, 1
          %s2447 = scalar_lea.sflag [#allocation4], %s2446
          %s2448 = sand.u32 %s188, 1
          %s2449 = smul.addr %s2448, 16
          %s2450 = scalar_lea.vmem [#allocation13], %s2449
          %2451 = dma.done %s2447, 256
        $region84: #{tpu_custom_call.1} parent=79 // pred_fallthru
          _
      $region80: #{tpu_custom_call.1} parent=5 // pred_fallthru
        _
    $region6: #{tpu_custom_call.1} parent=1 // loop_footer
      %s26 = sadd.s32 1, %s22
    $region7: #{tpu_custom_call.1} parent=1 // loop_footer_branch
      %21 = sbr.rel target = $region3
    $region8: #{tpu_custom_call.1} parent=1 // loop_exit
      _
    %2452 = vsyncpa [#allocation3], 1
    %s2453 = scalar_lea.sflag [#allocation3], 1
    %2454 = vsyncpa %s2453, 1
    %2455 = vsyncpa [#allocation6], 1
    %2456 = vsyncpa [#allocation9], 1
    %2457 = vsyncpa [#allocation12], 1
    %2458 = vsyncpa [#allocation4], 1
    %s2459 = scalar_lea.sflag [#allocation4], 1
    %2460 = vsyncpa %s2459, 1

</llo_original>
